<compile_context>
chip_gen: v5e
topology: v5e:2x2
jax: 0.10.0
libtpu: 0.0.40
codegen_flags: <defaults>
</compile_context>

<pallas_src>
import functools

import jax
import jax.numpy as jnp
from jax.experimental import pallas as pl
from jax.experimental.pallas import tpu as pltpu


# ---------------------------------------------------------------------------
# Fused Bottleneck kernel (one grid step = one row tile of one image)
# ---------------------------------------------------------------------------
def _bottleneck_kernel(x_body_ref, x_prev_ref, x_next_ref,
                       w1_ref, b1_ref, w2_ref, b2_ref, w3_ref, b3_ref,
                       o_ref, y1_ref, acc_ref,
                       *, tile_rows, width, planes, cout, compute_dtype):
    th, w, cd = tile_rows, width, compute_dtype
    t = pl.program_id(1)
    num_t = pl.num_programs(1)

    # ---- stage 1: 1x1 conv (BN scale folded into weights) + bias + ReLU -----
    # body rows -> y1 scratch rows [1, th + 1)
    xb = x_body_ref[...].reshape(th * w, -1)
    y1b = jnp.dot(xb.astype(cd), w1_ref[...],
                  preferred_element_type=jnp.float32) + b1_ref[...]
    y1_ref[1:th + 1] = jnp.maximum(y1b, 0.0).reshape(th, w, planes)

    # one-row halos above / below the tile; rows outside the image are zero
    # (this IS the zero padding of conv2's input).
    def halo_y1(row_ref, valid):
        xr = row_ref[...].reshape(w, -1)
        yr = jnp.dot(xr.astype(cd), w1_ref[...],
                     preferred_element_type=jnp.float32) + b1_ref[...]
        yr = jnp.maximum(yr, 0.0)
        return jnp.where(valid, yr, 0.0).reshape(1, w, planes)

    y1_ref[0:1] = halo_y1(x_prev_ref, t > 0)
    y1_ref[th + 1:th + 2] = halo_y1(x_next_ref, t < num_t - 1)

    # ---- stage 2: 3x3 conv as 9 MXU matmuls into an f32 VMEM accumulator ----
    acc_ref[...] = jnp.zeros_like(acc_ref)
    for dx in range(3):
        y1_full = y1_ref[...]                       # (th + 2, w, planes) f32
        if dx == 1:
            shifted = y1_full
        else:
            # shifted[.., x, :] == y1[.., x + dx - 1, :], zero at the W edges.
            zcol = jnp.zeros((th + 2, 1, planes), jnp.float32)
            if dx == 0:
                shifted = jnp.concatenate([zcol, y1_full[:, :w - 1, :]], axis=1)
            else:
                shifted = jnp.concatenate([y1_full[:, 1:, :], zcol], axis=1)
        shifted = shifted.astype(cd)
        for dy in range(3):                         # dy taps: free major-dim slices
            lhs = shifted[dy:dy + th].reshape(th * w, planes)
            acc_ref[...] += jnp.dot(lhs, w2_ref[dy * 3 + dx],
                                    preferred_element_type=jnp.float32)

    # ---- stage 3: bias + ReLU, 1x1 conv, bias + residual + ReLU, store ------
    y2 = jnp.maximum(acc_ref[...] + b2_ref[...], 0.0)           # f32
    out = jnp.dot(y2.astype(cd), w3_ref[...],
                  preferred_element_type=jnp.float32) + b3_ref[...]
    out = out + x_body_ref[...].reshape(th * w, cout).astype(jnp.float32)
    out = jnp.maximum(out, 0.0)
    o_ref[...] = out.reshape(th, w, cout).astype(o_ref.dtype)


# ---------------------------------------------------------------------------
# Parameter folding / helpers
# ---------------------------------------------------------------------------
def fold_bn(gamma, beta, mean, var, eps=1e-5):
    scale = gamma / jnp.sqrt(var + eps)
    return scale, beta - mean * scale


def _fold_params(w1, w2, w3, bn1, bn2, bn3, eps):
    s1, b1 = fold_bn(*bn1, eps)
    s2, b2 = fold_bn(*bn2, eps)
    s3, b3 = fold_bn(*bn3, eps)
    return (w1 * s1[None, :],
            w2 * s2[None, None, None, :],
            w3 * s3[None, :],
            b1, b2, b3)


def _pick_tile_rows(h, max_rows=32):
    for cand in range(min(max_rows, h), 0, -1):
        if h % cand == 0:
            return cand
    return h


# ---------------------------------------------------------------------------
# Fused forward (NHWC native; NCHW wrapper below for the PyTorch interface)
# ---------------------------------------------------------------------------
def bottleneck_forward_nhwc(x_nhwc, w1, w2, w3, bn1, bn2, bn3, eps=1e-5,
                            compute_dtype=jnp.bfloat16, tile_rows=None):
    n, h, w, cin = x_nhwc.shape
    planes = w1.shape[1]
    cout = w3.shape[1]
    assert cout == cin, "identity skip requires inplanes == planes * 4"

    th = tile_rows if tile_rows is not None else _pick_tile_rows(h)
    assert h % th == 0, "tile_rows must divide H"
    num_t = h // th

    wf1, wf2, wf3, b1, b2, b3 = _fold_params(w1, w2, w3, bn1, bn2, bn3, eps)
    wf1 = wf1.astype(compute_dtype)
    wf2 = wf2.reshape(9, planes, planes).astype(compute_dtype)   # dy-major
    wf3 = wf3.astype(compute_dtype)
    b1 = b1.reshape(1, planes).astype(jnp.float32)
    b2 = b2.reshape(1, planes).astype(jnp.float32)
    b3 = b3.reshape(1, cout).astype(jnp.float32)

    kernel = functools.partial(
        _bottleneck_kernel, tile_rows=th, width=w, planes=planes, cout=cout,
        compute_dtype=compute_dtype)

    # advisory cost estimate for XLA scheduling around the custom call
    m_total = n * h * w
    flops = 2 * m_total * (cin * planes + 9 * planes * planes + planes * cout)
    bytes_accessed = ((x_nhwc.size + m_total * cout) * x_nhwc.dtype.itemsize
                      + (wf1.size + wf2.size + wf3.size) * wf1.dtype.itemsize
                      + 2 * n * num_t * w * cin * x_nhwc.dtype.itemsize)

    in_specs = [
        # body rows of x (also serves as the residual)
        pl.BlockSpec((None, th, w, cin), lambda i, j: (i, j, 0, 0)),
        # one-row halo above / below the tile (clamped; masked in-kernel)
        pl.BlockSpec((None, 1, w, cin),
                     lambda i, j: (i, jnp.maximum(j * th - 1, 0), 0, 0)),
        pl.BlockSpec((None, 1, w, cin),
                     lambda i, j: (i, jnp.minimum((j + 1) * th, h - 1), 0, 0)),
        # weights / biases: same block every grid step (kept resident in VMEM)
        pl.BlockSpec((cin, planes), lambda i, j: (0, 0)),
        pl.BlockSpec((1, planes), lambda i, j: (0, 0)),
        pl.BlockSpec((9, planes, planes), lambda i, j: (0, 0, 0)),
        pl.BlockSpec((1, planes), lambda i, j: (0, 0)),
        pl.BlockSpec((planes, cout), lambda i, j: (0, 0)),
        pl.BlockSpec((1, cout), lambda i, j: (0, 0)),
    ]
    out_specs = pl.BlockSpec((None, th, w, cout), lambda i, j: (i, j, 0, 0))

    return pl.pallas_call(
        kernel,
        out_shape=jax.ShapeDtypeStruct((n, h, w, cout), x_nhwc.dtype),
        grid=(n, num_t),
        in_specs=in_specs,
        out_specs=out_specs,
        scratch_shapes=[
            pltpu.VMEM((th + 2, w, planes), jnp.float32),   # y1 (+ row halos)
            pltpu.VMEM((th * w, planes), jnp.float32),      # 3x3 accumulator
        ],
        compiler_params=pltpu.CompilerParams(
            dimension_semantics=("parallel", "parallel"),
            # sized for v7x's 64 MiB VMEM; also above the need on v5e/v6e.
            vmem_limit_bytes=32 * 1024 * 1024,
        ),
        cost_estimate=pl.CostEstimate(
            flops=int(flops), transcendentals=0,
            bytes_accessed=int(bytes_accessed)),
    )(x_nhwc, x_nhwc, x_nhwc, wf1, b1, wf2, b2, wf3, b3)


def bottleneck_forward(x_nchw, w1, w2, w3, bn1, bn2, bn3, eps=1e-5,
                       compute_dtype=jnp.bfloat16, tile_rows=None):
    # NCHW boundary kept only for PyTorch-interface compatibility; a
    # channels-last pipeline should call bottleneck_forward_nhwc directly
    # and skip these transposes.
    x = jnp.transpose(x_nchw, (0, 2, 3, 1))
    y = bottleneck_forward_nhwc(x, w1, w2, w3, bn1, bn2, bn3, eps,
                                compute_dtype, tile_rows)
    return jnp.transpose(y, (0, 3, 1, 2))


# ---------------------------------------------------------------------------
# Pure-JAX reference (compute_dtype emulates the kernel's MXU input rounding)
# ---------------------------------------------------------------------------
def reference_forward(x_nchw, w1, w2, w3, bn1, bn2, bn3, eps=1e-5,
                      compute_dtype=jnp.float32):
    wf1, wf2, wf3, b1, b2, b3 = _fold_params(w1, w2, w3, bn1, bn2, bn3, eps)
    c = lambda a: a.astype(compute_dtype).astype(jnp.float32)
    dn = ("NHWC", "HWIO", "NHWC")
    hp = jax.lax.Precision.HIGHEST
    x = jnp.transpose(x_nchw, (0, 2, 3, 1))
    y = jax.lax.conv_general_dilated(c(x), c(wf1)[None, None], (1, 1), "VALID",
                                     dimension_numbers=dn, precision=hp) + b1
    y = jnp.maximum(y, 0.0)
    y = jax.lax.conv_general_dilated(c(y), c(wf2), (1, 1), "SAME",
                                     dimension_numbers=dn, precision=hp) + b2
    y = jnp.maximum(y, 0.0)
    y = jax.lax.conv_general_dilated(c(y), c(wf3)[None, None], (1, 1), "VALID",
                                     dimension_numbers=dn, precision=hp) + b3
    y = jnp.maximum(y + x, 0.0)
    return jnp.transpose(y, (0, 3, 1, 2))


# ---------------------------------------------------------------------------
if __name__ == "__main__":
    key = jax.random.PRNGKey(0)
    keys = jax.random.split(key, 8)

    # small but lane-friendly shapes: batch=2, planes=32, inplanes=128, 16x16
    n, planes, h, w = 2, 32, 16, 16
    inplanes = planes * 4

    x = jax.random.normal(keys[0], (n, inplanes, h, w), jnp.float32)
    w1 = 0.1 * jax.random.normal(keys[1], (inplanes, planes), jnp.float32)
    w2 = 0.1 * jax.random.normal(keys[2], (3, 3, planes, planes), jnp.float32)
    w3 = 0.1 * jax.random.normal(keys[3], (planes, planes * 4), jnp.float32)

    def bn_params(k, c):
        k1, k2, k3, k4 = jax.random.split(k, 4)
        gamma = 1.0 + 0.1 * jax.random.normal(k1, (c,), jnp.float32)
        beta = 0.1 * jax.random.normal(k2, (c,), jnp.float32)
        mean = 0.1 * jax.random.normal(k3, (c,), jnp.float32)
        var = jax.random.uniform(k4, (c,), jnp.float32, minval=0.5, maxval=1.5)
        return gamma, beta, mean, var

    bn1 = bn_params(keys[4], planes)
    bn2 = bn_params(keys[5], planes)
    bn3 = bn_params(keys[6], inplanes)

    # f32 compute path: strict correctness check of the fused algorithm.
    out_f32 = bottleneck_forward(x, w1, w2, w3, bn1, bn2, bn3,
                                 compute_dtype=jnp.float32, tile_rows=8)
    out_f32 = jax.block_until_ready(out_f32)
    ref_f32 = reference_forward(x, w1, w2, w3, bn1, bn2, bn3,
                                compute_dtype=jnp.float32)
    assert out_f32.shape == (n, inplanes, h, w)
    err32 = float(jnp.max(jnp.abs(out_f32 - ref_f32)))
    assert jnp.allclose(out_f32, ref_f32, atol=1e-3, rtol=1e-3), \
        f"f32 path max err {err32}"

    # bf16 MXU path (default / fast path): checked against a reference that
    # rounds the matmul operands to bf16 the same way (f32 accumulation).
    out_bf16 = bottleneck_forward(x, w1, w2, w3, bn1, bn2, bn3,
                                  compute_dtype=jnp.bfloat16, tile_rows=8)
    out_bf16 = jax.block_until_ready(out_bf16)
    ref_bf16 = reference_forward(x, w1, w2, w3, bn1, bn2, bn3,
                                 compute_dtype=jnp.bfloat16)
    errbf = float(jnp.max(jnp.abs(out_bf16 - ref_bf16)))
    assert jnp.allclose(out_bf16, ref_bf16, atol=3e-2, rtol=3e-2), \
        f"bf16 path max err {errbf}"

    print("KERNEL_OK")
</pallas_src>

<mosaic_0001>
module attributes {stable_mosaic.version = 11 : i64} {
  func.func @_bottleneck_kernel(%arg0: i32, %arg1: i32, %arg2: memref<1x8x16x128xf32, #tpu.memory_space<vmem>>, %arg3: memref<1x1x16x128xf32, #tpu.memory_space<vmem>>, %arg4: memref<1x1x16x128xf32, #tpu.memory_space<vmem>>, %arg5: memref<128x32xf32, #tpu.memory_space<vmem>>, %arg6: memref<1x32xf32, #tpu.memory_space<vmem>>, %arg7: memref<9x32x32xf32, #tpu.memory_space<vmem>>, %arg8: memref<1x32xf32, #tpu.memory_space<vmem>>, %arg9: memref<32x128xf32, #tpu.memory_space<vmem>>, %arg10: memref<1x128xf32, #tpu.memory_space<vmem>>, %arg11: memref<1x8x16x128xf32, #tpu.memory_space<vmem>>, %arg12: memref<10x16x32xf32, #tpu.memory_space<vmem>>, %arg13: memref<128x32xf32, #tpu.memory_space<vmem>>) attributes {dimension_semantics = [#tpu.dimension_semantics<parallel>, #tpu.dimension_semantics<parallel>], iteration_bounds = array<i64: 2, 2>, scalar_prefetch = 0 : i64, scratch_operands = 2 : i64, tpu.core_type = #tpu.core_type<tc>, window_params = [{transform_indices = @transform_0, window_bounds = array<i64: 1, 8, 16, 128>}, {transform_indices = @transform_1, window_bounds = array<i64: 1, 1, 16, 128>}, {transform_indices = @transform_2, window_bounds = array<i64: 1, 1, 16, 128>}, {pipeline_mode = #tpu.pipeline_mode<synchronous>, transform_indices = @transform_3, window_bounds = array<i64: 128, 32>}, {pipeline_mode = #tpu.pipeline_mode<synchronous>, transform_indices = @transform_4, window_bounds = array<i64: 1, 32>}, {pipeline_mode = #tpu.pipeline_mode<synchronous>, transform_indices = @transform_5, window_bounds = array<i64: 9, 32, 32>}, {pipeline_mode = #tpu.pipeline_mode<synchronous>, transform_indices = @transform_6, window_bounds = array<i64: 1, 32>}, {pipeline_mode = #tpu.pipeline_mode<synchronous>, transform_indices = @transform_7, window_bounds = array<i64: 32, 128>}, {pipeline_mode = #tpu.pipeline_mode<synchronous>, transform_indices = @transform_8, window_bounds = array<i64: 1, 128>}, {transform_indices = @transform_9, window_bounds = array<i64: 1, 8, 16, 128>}]} {
    %c0 = arith.constant 0 : index
    %c0_0 = arith.constant 0 : index
    %c0_1 = arith.constant 0 : index
    %c0_2 = arith.constant 0 : index
    %0 = vector.load %arg2[%c0, %c0_0, %c0_1, %c0_2] : memref<1x8x16x128xf32, #tpu.memory_space<vmem>>, vector<1x8x16x128xf32>
    %1 = vector.shape_cast %0 : vector<1x8x16x128xf32> to vector<8x16x128xf32>
    %2 = vector.shape_cast %1 : vector<8x16x128xf32> to vector<128x128xf32>
    %c0_3 = arith.constant 0 : index
    %c0_4 = arith.constant 0 : index
    %3 = vector.load %arg5[%c0_3, %c0_4] : memref<128x32xf32, #tpu.memory_space<vmem>>, vector<128x32xf32>
    %cst = arith.constant dense<0.000000e+00> : vector<128x32xf32>
    %4 = tpu.matmul %2, %3, %cst {dimension_numbers = #tpu.dot_dimension_numbers<[1], [0], [0], [1], [0, 0, 1, 1], [], []>} : vector<128x128xf32>, vector<128x32xf32>, vector<128x32xf32> -> vector<128x32xf32>
    %c0_5 = arith.constant 0 : index
    %c0_6 = arith.constant 0 : index
    %5 = vector.load %arg6[%c0_5, %c0_6] : memref<1x32xf32, #tpu.memory_space<vmem>>, vector<1x32xf32>
    %6 = vector.broadcast %5 : vector<1x32xf32> to vector<128x32xf32>
    %7 = arith.addf %4, %6 : vector<128x32xf32>
    %cst_7 = arith.constant 0.000000e+00 : f32
    %8 = vector.broadcast %cst_7 : f32 to vector<128x32xf32>
    %9 = arith.maximumf %7, %8 : vector<128x32xf32>
    %10 = vector.shape_cast %9 : vector<128x32xf32> to vector<8x16x32xf32>
    %c1 = arith.constant 1 : index
    %c0_8 = arith.constant 0 : index
    %c0_9 = arith.constant 0 : index
    %11 = vector.load %arg12[%c1, %c0_8, %c0_9] : memref<10x16x32xf32, #tpu.memory_space<vmem>>, vector<8x16x32xf32>
    tpu.vector_store %arg12[%c1, %c0_8, %c0_9], %10 {strides = array<i32>} : memref<10x16x32xf32, #tpu.memory_space<vmem>>, vector<8x16x32xf32>,
    %c0_i32 = arith.constant 0 : i32
    %12 = arith.cmpi sgt, %arg1, %c0_i32 : i32
    %c0_10 = arith.constant 0 : index
    %c0_11 = arith.constant 0 : index
    %c0_12 = arith.constant 0 : index
    %c0_13 = arith.constant 0 : index
    %13 = vector.load %arg3[%c0_10, %c0_11, %c0_12, %c0_13] : memref<1x1x16x128xf32, #tpu.memory_space<vmem>>, vector<1x1x16x128xf32>
    %14 = vector.shape_cast %13 : vector<1x1x16x128xf32> to vector<1x16x128xf32>
    %15 = vector.shape_cast %14 : vector<1x16x128xf32> to vector<16x128xf32>
    %c0_14 = arith.constant 0 : index
    %c0_15 = arith.constant 0 : index
    %16 = vector.load %arg5[%c0_14, %c0_15] : memref<128x32xf32, #tpu.memory_space<vmem>>, vector<128x32xf32>
    %cst_16 = arith.constant dense<0.000000e+00> : vector<16x32xf32>
    %17 = tpu.matmul %15, %16, %cst_16 {dimension_numbers = #tpu.dot_dimension_numbers<[1], [0], [0], [1], [0, 0, 1, 1], [], []>} : vector<16x128xf32>, vector<128x32xf32>, vector<16x32xf32> -> vector<16x32xf32>
    %c0_17 = arith.constant 0 : index
    %c0_18 = arith.constant 0 : index
    %18 = vector.load %arg6[%c0_17, %c0_18] : memref<1x32xf32, #tpu.memory_space<vmem>>, vector<1x32xf32>
    %19 = vector.broadcast %18 : vector<1x32xf32> to vector<16x32xf32>
    %20 = arith.addf %17, %19 : vector<16x32xf32>
    %cst_19 = arith.constant 0.000000e+00 : f32
    %21 = vector.broadcast %cst_19 : f32 to vector<16x32xf32>
    %22 = arith.maximumf %20, %21 : vector<16x32xf32>
    %cst_20 = arith.constant 0.000000e+00 : f32
    %23 = vector.broadcast %cst_20 : f32 to vector<16x32xf32>
    %24 = arith.select %12, %22, %23 : vector<16x32xf32>
    %25 = vector.shape_cast %24 : vector<16x32xf32> to vector<1x16x32xf32>
    %c0_21 = arith.constant 0 : index
    %c0_22 = arith.constant 0 : index
    %c0_23 = arith.constant 0 : index
    %26 = vector.load %arg12[%c0_21, %c0_22, %c0_23] : memref<10x16x32xf32, #tpu.memory_space<vmem>>, vector<1x16x32xf32>
    tpu.vector_store %arg12[%c0_21, %c0_22, %c0_23], %25 {strides = array<i32>} : memref<10x16x32xf32, #tpu.memory_space<vmem>>, vector<1x16x32xf32>,
    %c1_i32 = arith.constant 1 : i32
    %27 = arith.cmpi slt, %arg1, %c1_i32 : i32
    %c0_24 = arith.constant 0 : index
    %c0_25 = arith.constant 0 : index
    %c0_26 = arith.constant 0 : index
    %c0_27 = arith.constant 0 : index
    %28 = vector.load %arg4[%c0_24, %c0_25, %c0_26, %c0_27] : memref<1x1x16x128xf32, #tpu.memory_space<vmem>>, vector<1x1x16x128xf32>
    %29 = vector.shape_cast %28 : vector<1x1x16x128xf32> to vector<1x16x128xf32>
    %30 = vector.shape_cast %29 : vector<1x16x128xf32> to vector<16x128xf32>
    %c0_28 = arith.constant 0 : index
    %c0_29 = arith.constant 0 : index
    %31 = vector.load %arg5[%c0_28, %c0_29] : memref<128x32xf32, #tpu.memory_space<vmem>>, vector<128x32xf32>
    %cst_30 = arith.constant dense<0.000000e+00> : vector<16x32xf32>
    %32 = tpu.matmul %30, %31, %cst_30 {dimension_numbers = #tpu.dot_dimension_numbers<[1], [0], [0], [1], [0, 0, 1, 1], [], []>} : vector<16x128xf32>, vector<128x32xf32>, vector<16x32xf32> -> vector<16x32xf32>
    %c0_31 = arith.constant 0 : index
    %c0_32 = arith.constant 0 : index
    %33 = vector.load %arg6[%c0_31, %c0_32] : memref<1x32xf32, #tpu.memory_space<vmem>>, vector<1x32xf32>
    %34 = vector.broadcast %33 : vector<1x32xf32> to vector<16x32xf32>
    %35 = arith.addf %32, %34 : vector<16x32xf32>
    %cst_33 = arith.constant 0.000000e+00 : f32
    %36 = vector.broadcast %cst_33 : f32 to vector<16x32xf32>
    %37 = arith.maximumf %35, %36 : vector<16x32xf32>
    %cst_34 = arith.constant 0.000000e+00 : f32
    %38 = vector.broadcast %cst_34 : f32 to vector<16x32xf32>
    %39 = arith.select %27, %37, %38 : vector<16x32xf32>
    %40 = vector.shape_cast %39 : vector<16x32xf32> to vector<1x16x32xf32>
    %c9 = arith.constant 9 : index
    %c0_35 = arith.constant 0 : index
    %c0_36 = arith.constant 0 : index
    %41 = vector.load %arg12[%c9, %c0_35, %c0_36] : memref<10x16x32xf32, #tpu.memory_space<vmem>>, vector<1x16x32xf32>
    tpu.vector_store %arg12[%c9, %c0_35, %c0_36], %40 {strides = array<i32>} : memref<10x16x32xf32, #tpu.memory_space<vmem>>, vector<1x16x32xf32>,
    %cst_37 = arith.constant 0.000000e+00 : f32
    %42 = vector.broadcast %cst_37 : f32 to vector<128x32xf32>
    %c0_38 = arith.constant 0 : index
    %c0_39 = arith.constant 0 : index
    %43 = vector.load %arg13[%c0_38, %c0_39] : memref<128x32xf32, #tpu.memory_space<vmem>>, vector<128x32xf32>
    tpu.vector_store %arg13[%c0_38, %c0_39], %42 {strides = array<i32>} : memref<128x32xf32, #tpu.memory_space<vmem>>, vector<128x32xf32>,
    %c0_40 = arith.constant 0 : index
    %c0_41 = arith.constant 0 : index
    %c0_42 = arith.constant 0 : index
    %44 = vector.load %arg12[%c0_40, %c0_41, %c0_42] : memref<10x16x32xf32, #tpu.memory_space<vmem>>, vector<10x16x32xf32>
    %cst_43 = arith.constant 0.000000e+00 : f32
    %45 = vector.broadcast %cst_43 : f32 to vector<10x1x32xf32>
    %46 = vector.extract_strided_slice %44 {offsets = [0, 0, 0], sizes = [10, 15, 32], strides = [1, 1, 1]} : vector<10x16x32xf32> to vector<10x15x32xf32>
    %47 = tpu.concatenate %45, %46 in 1 : vector<10x1x32xf32>, vector<10x15x32xf32> -> vector<10x16x32xf32>
    %48 = vector.extract_strided_slice %47 {offsets = [0, 0, 0], sizes = [8, 16, 32], strides = [1, 1, 1]} : vector<10x16x32xf32> to vector<8x16x32xf32>
    %49 = vector.shape_cast %48 : vector<8x16x32xf32> to vector<128x32xf32>
    %c0_44 = arith.constant 0 : index
    %c0_45 = arith.constant 0 : index
    %50 = vector.load %arg13[%c0_44, %c0_45] : memref<128x32xf32, #tpu.memory_space<vmem>>, vector<128x32xf32>
    %c0_46 = arith.constant 0 : index
    %c0_47 = arith.constant 0 : index
    %c0_48 = arith.constant 0 : index
    %51 = vector.load %arg7[%c0_46, %c0_47, %c0_48] : memref<9x32x32xf32, #tpu.memory_space<vmem>>, vector<1x32x32xf32>
    %52 = vector.shape_cast %51 : vector<1x32x32xf32> to vector<32x32xf32>
    %cst_49 = arith.constant dense<0.000000e+00> : vector<128x32xf32>
    %53 = tpu.matmul %49, %52, %cst_49 {dimension_numbers = #tpu.dot_dimension_numbers<[1], [0], [0], [1], [0, 0, 1, 1], [], []>} : vector<128x32xf32>, vector<32x32xf32>, vector<128x32xf32> -> vector<128x32xf32>
    %54 = arith.addf %50, %53 : vector<128x32xf32>
    %c0_50 = arith.constant 0 : index
    %c0_51 = arith.constant 0 : index
    %55 = vector.load %arg13[%c0_50, %c0_51] : memref<128x32xf32, #tpu.memory_space<vmem>>, vector<128x32xf32>
    tpu.vector_store %arg13[%c0_50, %c0_51], %54 {strides = array<i32>} : memref<128x32xf32, #tpu.memory_space<vmem>>, vector<128x32xf32>,
    %56 = vector.extract_strided_slice %47 {offsets = [1, 0, 0], sizes = [8, 16, 32], strides = [1, 1, 1]} : vector<10x16x32xf32> to vector<8x16x32xf32>
    %57 = vector.shape_cast %56 : vector<8x16x32xf32> to vector<128x32xf32>
    %c0_52 = arith.constant 0 : index
    %c0_53 = arith.constant 0 : index
    %58 = vector.load %arg13[%c0_52, %c0_53] : memref<128x32xf32, #tpu.memory_space<vmem>>, vector<128x32xf32>
    %c3 = arith.constant 3 : index
    %c0_54 = arith.constant 0 : index
    %c0_55 = arith.constant 0 : index
    %59 = vector.load %arg7[%c3, %c0_54, %c0_55] : memref<9x32x32xf32, #tpu.memory_space<vmem>>, vector<1x32x32xf32>
    %60 = vector.shape_cast %59 : vector<1x32x32xf32> to vector<32x32xf32>
    %cst_56 = arith.constant dense<0.000000e+00> : vector<128x32xf32>
    %61 = tpu.matmul %57, %60, %cst_56 {dimension_numbers = #tpu.dot_dimension_numbers<[1], [0], [0], [1], [0, 0, 1, 1], [], []>} : vector<128x32xf32>, vector<32x32xf32>, vector<128x32xf32> -> vector<128x32xf32>
    %62 = arith.addf %58, %61 : vector<128x32xf32>
    %c0_57 = arith.constant 0 : index
    %c0_58 = arith.constant 0 : index
    %63 = vector.load %arg13[%c0_57, %c0_58] : memref<128x32xf32, #tpu.memory_space<vmem>>, vector<128x32xf32>
    tpu.vector_store %arg13[%c0_57, %c0_58], %62 {strides = array<i32>} : memref<128x32xf32, #tpu.memory_space<vmem>>, vector<128x32xf32>,
    %64 = vector.extract_strided_slice %47 {offsets = [2, 0, 0], sizes = [8, 16, 32], strides = [1, 1, 1]} : vector<10x16x32xf32> to vector<8x16x32xf32>
    %65 = vector.shape_cast %64 : vector<8x16x32xf32> to vector<128x32xf32>
    %c0_59 = arith.constant 0 : index
    %c0_60 = arith.constant 0 : index
    %66 = vector.load %arg13[%c0_59, %c0_60] : memref<128x32xf32, #tpu.memory_space<vmem>>, vector<128x32xf32>
    %c6 = arith.constant 6 : index
    %c0_61 = arith.constant 0 : index
    %c0_62 = arith.constant 0 : index
    %67 = vector.load %arg7[%c6, %c0_61, %c0_62] : memref<9x32x32xf32, #tpu.memory_space<vmem>>, vector<1x32x32xf32>
    %68 = vector.shape_cast %67 : vector<1x32x32xf32> to vector<32x32xf32>
    %cst_63 = arith.constant dense<0.000000e+00> : vector<128x32xf32>
    %69 = tpu.matmul %65, %68, %cst_63 {dimension_numbers = #tpu.dot_dimension_numbers<[1], [0], [0], [1], [0, 0, 1, 1], [], []>} : vector<128x32xf32>, vector<32x32xf32>, vector<128x32xf32> -> vector<128x32xf32>
    %70 = arith.addf %66, %69 : vector<128x32xf32>
    %c0_64 = arith.constant 0 : index
    %c0_65 = arith.constant 0 : index
    %71 = vector.load %arg13[%c0_64, %c0_65] : memref<128x32xf32, #tpu.memory_space<vmem>>, vector<128x32xf32>
    tpu.vector_store %arg13[%c0_64, %c0_65], %70 {strides = array<i32>} : memref<128x32xf32, #tpu.memory_space<vmem>>, vector<128x32xf32>,
    %c0_66 = arith.constant 0 : index
    %c0_67 = arith.constant 0 : index
    %c0_68 = arith.constant 0 : index
    %72 = vector.load %arg12[%c0_66, %c0_67, %c0_68] : memref<10x16x32xf32, #tpu.memory_space<vmem>>, vector<10x16x32xf32>
    %73 = vector.extract_strided_slice %72 {offsets = [0, 0, 0], sizes = [8, 16, 32], strides = [1, 1, 1]} : vector<10x16x32xf32> to vector<8x16x32xf32>
    %74 = vector.shape_cast %73 : vector<8x16x32xf32> to vector<128x32xf32>
    %c0_69 = arith.constant 0 : index
    %c0_70 = arith.constant 0 : index
    %75 = vector.load %arg13[%c0_69, %c0_70] : memref<128x32xf32, #tpu.memory_space<vmem>>, vector<128x32xf32>
    %c1_71 = arith.constant 1 : index
    %c0_72 = arith.constant 0 : index
    %c0_73 = arith.constant 0 : index
    %76 = vector.load %arg7[%c1_71, %c0_72, %c0_73] : memref<9x32x32xf32, #tpu.memory_space<vmem>>, vector<1x32x32xf32>
    %77 = vector.shape_cast %76 : vector<1x32x32xf32> to vector<32x32xf32>
    %cst_74 = arith.constant dense<0.000000e+00> : vector<128x32xf32>
    %78 = tpu.matmul %74, %77, %cst_74 {dimension_numbers = #tpu.dot_dimension_numbers<[1], [0], [0], [1], [0, 0, 1, 1], [], []>} : vector<128x32xf32>, vector<32x32xf32>, vector<128x32xf32> -> vector<128x32xf32>
    %79 = arith.addf %75, %78 : vector<128x32xf32>
    %c0_75 = arith.constant 0 : index
    %c0_76 = arith.constant 0 : index
    %80 = vector.load %arg13[%c0_75, %c0_76] : memref<128x32xf32, #tpu.memory_space<vmem>>, vector<128x32xf32>
    tpu.vector_store %arg13[%c0_75, %c0_76], %79 {strides = array<i32>} : memref<128x32xf32, #tpu.memory_space<vmem>>, vector<128x32xf32>,
    %81 = vector.extract_strided_slice %72 {offsets = [1, 0, 0], sizes = [8, 16, 32], strides = [1, 1, 1]} : vector<10x16x32xf32> to vector<8x16x32xf32>
    %82 = vector.shape_cast %81 : vector<8x16x32xf32> to vector<128x32xf32>
    %c0_77 = arith.constant 0 : index
    %c0_78 = arith.constant 0 : index
    %83 = vector.load %arg13[%c0_77, %c0_78] : memref<128x32xf32, #tpu.memory_space<vmem>>, vector<128x32xf32>
    %c4 = arith.constant 4 : index
    %c0_79 = arith.constant 0 : index
    %c0_80 = arith.constant 0 : index
    %84 = vector.load %arg7[%c4, %c0_79, %c0_80] : memref<9x32x32xf32, #tpu.memory_space<vmem>>, vector<1x32x32xf32>
    %85 = vector.shape_cast %84 : vector<1x32x32xf32> to vector<32x32xf32>
    %cst_81 = arith.constant dense<0.000000e+00> : vector<128x32xf32>
    %86 = tpu.matmul %82, %85, %cst_81 {dimension_numbers = #tpu.dot_dimension_numbers<[1], [0], [0], [1], [0, 0, 1, 1], [], []>} : vector<128x32xf32>, vector<32x32xf32>, vector<128x32xf32> -> vector<128x32xf32>
    %87 = arith.addf %83, %86 : vector<128x32xf32>
    %c0_82 = arith.constant 0 : index
    %c0_83 = arith.constant 0 : index
    %88 = vector.load %arg13[%c0_82, %c0_83] : memref<128x32xf32, #tpu.memory_space<vmem>>, vector<128x32xf32>
    tpu.vector_store %arg13[%c0_82, %c0_83], %87 {strides = array<i32>} : memref<128x32xf32, #tpu.memory_space<vmem>>, vector<128x32xf32>,
    %89 = vector.extract_strided_slice %72 {offsets = [2, 0, 0], sizes = [8, 16, 32], strides = [1, 1, 1]} : vector<10x16x32xf32> to vector<8x16x32xf32>
    %90 = vector.shape_cast %89 : vector<8x16x32xf32> to vector<128x32xf32>
    %c0_84 = arith.constant 0 : index
    %c0_85 = arith.constant 0 : index
    %91 = vector.load %arg13[%c0_84, %c0_85] : memref<128x32xf32, #tpu.memory_space<vmem>>, vector<128x32xf32>
    %c7 = arith.constant 7 : index
    %c0_86 = arith.constant 0 : index
    %c0_87 = arith.constant 0 : index
    %92 = vector.load %arg7[%c7, %c0_86, %c0_87] : memref<9x32x32xf32, #tpu.memory_space<vmem>>, vector<1x32x32xf32>
    %93 = vector.shape_cast %92 : vector<1x32x32xf32> to vector<32x32xf32>
    %cst_88 = arith.constant dense<0.000000e+00> : vector<128x32xf32>
    %94 = tpu.matmul %90, %93, %cst_88 {dimension_numbers = #tpu.dot_dimension_numbers<[1], [0], [0], [1], [0, 0, 1, 1], [], []>} : vector<128x32xf32>, vector<32x32xf32>, vector<128x32xf32> -> vector<128x32xf32>
    %95 = arith.addf %91, %94 : vector<128x32xf32>
    %c0_89 = arith.constant 0 : index
    %c0_90 = arith.constant 0 : index
    %96 = vector.load %arg13[%c0_89, %c0_90] : memref<128x32xf32, #tpu.memory_space<vmem>>, vector<128x32xf32>
    tpu.vector_store %arg13[%c0_89, %c0_90], %95 {strides = array<i32>} : memref<128x32xf32, #tpu.memory_space<vmem>>, vector<128x32xf32>,
    %c0_91 = arith.constant 0 : index
    %c0_92 = arith.constant 0 : index
    %c0_93 = arith.constant 0 : index
    %97 = vector.load %arg12[%c0_91, %c0_92, %c0_93] : memref<10x16x32xf32, #tpu.memory_space<vmem>>, vector<10x16x32xf32>
    %cst_94 = arith.constant 0.000000e+00 : f32
    %98 = vector.broadcast %cst_94 : f32 to vector<10x1x32xf32>
    %99 = vector.extract_strided_slice %97 {offsets = [0, 1, 0], sizes = [10, 15, 32], strides = [1, 1, 1]} : vector<10x16x32xf32> to vector<10x15x32xf32>
    %100 = tpu.concatenate %99, %98 in 1 : vector<10x15x32xf32>, vector<10x1x32xf32> -> vector<10x16x32xf32>
    %101 = vector.extract_strided_slice %100 {offsets = [0, 0, 0], sizes = [8, 16, 32], strides = [1, 1, 1]} : vector<10x16x32xf32> to vector<8x16x32xf32>
    %102 = vector.shape_cast %101 : vector<8x16x32xf32> to vector<128x32xf32>
    %c0_95 = arith.constant 0 : index
    %c0_96 = arith.constant 0 : index
    %103 = vector.load %arg13[%c0_95, %c0_96] : memref<128x32xf32, #tpu.memory_space<vmem>>, vector<128x32xf32>
    %c2 = arith.constant 2 : index
    %c0_97 = arith.constant 0 : index
    %c0_98 = arith.constant 0 : index
    %104 = vector.load %arg7[%c2, %c0_97, %c0_98] : memref<9x32x32xf32, #tpu.memory_space<vmem>>, vector<1x32x32xf32>
    %105 = vector.shape_cast %104 : vector<1x32x32xf32> to vector<32x32xf32>
    %cst_99 = arith.constant dense<0.000000e+00> : vector<128x32xf32>
    %106 = tpu.matmul %102, %105, %cst_99 {dimension_numbers = #tpu.dot_dimension_numbers<[1], [0], [0], [1], [0, 0, 1, 1], [], []>} : vector<128x32xf32>, vector<32x32xf32>, vector<128x32xf32> -> vector<128x32xf32>
    %107 = arith.addf %103, %106 : vector<128x32xf32>
    %c0_100 = arith.constant 0 : index
    %c0_101 = arith.constant 0 : index
    %108 = vector.load %arg13[%c0_100, %c0_101] : memref<128x32xf32, #tpu.memory_space<vmem>>, vector<128x32xf32>
    tpu.vector_store %arg13[%c0_100, %c0_101], %107 {strides = array<i32>} : memref<128x32xf32, #tpu.memory_space<vmem>>, vector<128x32xf32>,
    %109 = vector.extract_strided_slice %100 {offsets = [1, 0, 0], sizes = [8, 16, 32], strides = [1, 1, 1]} : vector<10x16x32xf32> to vector<8x16x32xf32>
    %110 = vector.shape_cast %109 : vector<8x16x32xf32> to vector<128x32xf32>
    %c0_102 = arith.constant 0 : index
    %c0_103 = arith.constant 0 : index
    %111 = vector.load %arg13[%c0_102, %c0_103] : memref<128x32xf32, #tpu.memory_space<vmem>>, vector<128x32xf32>
    %c5 = arith.constant 5 : index
    %c0_104 = arith.constant 0 : index
    %c0_105 = arith.constant 0 : index
    %112 = vector.load %arg7[%c5, %c0_104, %c0_105] : memref<9x32x32xf32, #tpu.memory_space<vmem>>, vector<1x32x32xf32>
    %113 = vector.shape_cast %112 : vector<1x32x32xf32> to vector<32x32xf32>
    %cst_106 = arith.constant dense<0.000000e+00> : vector<128x32xf32>
    %114 = tpu.matmul %110, %113, %cst_106 {dimension_numbers = #tpu.dot_dimension_numbers<[1], [0], [0], [1], [0, 0, 1, 1], [], []>} : vector<128x32xf32>, vector<32x32xf32>, vector<128x32xf32> -> vector<128x32xf32>
    %115 = arith.addf %111, %114 : vector<128x32xf32>
    %c0_107 = arith.constant 0 : index
    %c0_108 = arith.constant 0 : index
    %116 = vector.load %arg13[%c0_107, %c0_108] : memref<128x32xf32, #tpu.memory_space<vmem>>, vector<128x32xf32>
    tpu.vector_store %arg13[%c0_107, %c0_108], %115 {strides = array<i32>} : memref<128x32xf32, #tpu.memory_space<vmem>>, vector<128x32xf32>,
    %117 = vector.extract_strided_slice %100 {offsets = [2, 0, 0], sizes = [8, 16, 32], strides = [1, 1, 1]} : vector<10x16x32xf32> to vector<8x16x32xf32>
    %118 = vector.shape_cast %117 : vector<8x16x32xf32> to vector<128x32xf32>
    %c0_109 = arith.constant 0 : index
    %c0_110 = arith.constant 0 : index
    %119 = vector.load %arg13[%c0_109, %c0_110] : memref<128x32xf32, #tpu.memory_space<vmem>>, vector<128x32xf32>
    %c8 = arith.constant 8 : index
    %c0_111 = arith.constant 0 : index
    %c0_112 = arith.constant 0 : index
    %120 = vector.load %arg7[%c8, %c0_111, %c0_112] : memref<9x32x32xf32, #tpu.memory_space<vmem>>, vector<1x32x32xf32>
    %121 = vector.shape_cast %120 : vector<1x32x32xf32> to vector<32x32xf32>
    %cst_113 = arith.constant dense<0.000000e+00> : vector<128x32xf32>
    %122 = tpu.matmul %118, %121, %cst_113 {dimension_numbers = #tpu.dot_dimension_numbers<[1], [0], [0], [1], [0, 0, 1, 1], [], []>} : vector<128x32xf32>, vector<32x32xf32>, vector<128x32xf32> -> vector<128x32xf32>
    %123 = arith.addf %119, %122 : vector<128x32xf32>
    %c0_114 = arith.constant 0 : index
    %c0_115 = arith.constant 0 : index
    %124 = vector.load %arg13[%c0_114, %c0_115] : memref<128x32xf32, #tpu.memory_space<vmem>>, vector<128x32xf32>
    tpu.vector_store %arg13[%c0_114, %c0_115], %123 {strides = array<i32>} : memref<128x32xf32, #tpu.memory_space<vmem>>, vector<128x32xf32>,
    %c0_116 = arith.constant 0 : index
    %c0_117 = arith.constant 0 : index
    %125 = vector.load %arg13[%c0_116, %c0_117] : memref<128x32xf32, #tpu.memory_space<vmem>>, vector<128x32xf32>
    %c0_118 = arith.constant 0 : index
    %c0_119 = arith.constant 0 : index
    %126 = vector.load %arg8[%c0_118, %c0_119] : memref<1x32xf32, #tpu.memory_space<vmem>>, vector<1x32xf32>
    %127 = vector.broadcast %126 : vector<1x32xf32> to vector<128x32xf32>
    %128 = arith.addf %125, %127 : vector<128x32xf32>
    %cst_120 = arith.constant 0.000000e+00 : f32
    %129 = vector.broadcast %cst_120 : f32 to vector<128x32xf32>
    %130 = arith.maximumf %128, %129 : vector<128x32xf32>
    %c0_121 = arith.constant 0 : index
    %c0_122 = arith.constant 0 : index
    %131 = vector.load %arg9[%c0_121, %c0_122] : memref<32x128xf32, #tpu.memory_space<vmem>>, vector<32x128xf32>
    %cst_123 = arith.constant dense<0.000000e+00> : vector<128x128xf32>
    %132 = tpu.matmul %130, %131, %cst_123 {dimension_numbers = #tpu.dot_dimension_numbers<[1], [0], [0], [1], [0, 0, 1, 1], [], []>} : vector<128x32xf32>, vector<32x128xf32>, vector<128x128xf32> -> vector<128x128xf32>
    %c0_124 = arith.constant 0 : index
    %c0_125 = arith.constant 0 : index
    %133 = vector.load %arg10[%c0_124, %c0_125] : memref<1x128xf32, #tpu.memory_space<vmem>>, vector<1x128xf32>
    %134 = vector.broadcast %133 : vector<1x128xf32> to vector<128x128xf32>
    %135 = arith.addf %132, %134 : vector<128x128xf32>
    %c0_126 = arith.constant 0 : index
    %c0_127 = arith.constant 0 : index
    %c0_128 = arith.constant 0 : index
    %c0_129 = arith.constant 0 : index
    %136 = vector.load %arg2[%c0_126, %c0_127, %c0_128, %c0_129] : memref<1x8x16x128xf32, #tpu.memory_space<vmem>>, vector<1x8x16x128xf32>
    %137 = vector.shape_cast %136 : vector<1x8x16x128xf32> to vector<8x16x128xf32>
    %138 = vector.shape_cast %137 : vector<8x16x128xf32> to vector<128x128xf32>
    %139 = arith.addf %135, %138 : vector<128x128xf32>
    %cst_130 = arith.constant 0.000000e+00 : f32
    %140 = vector.broadcast %cst_130 : f32 to vector<128x128xf32>
    %141 = arith.maximumf %139, %140 : vector<128x128xf32>
    %142 = vector.shape_cast %141 : vector<128x128xf32> to vector<8x16x128xf32>
    %c0_131 = arith.constant 0 : index
    %c0_132 = arith.constant 0 : index
    %c0_133 = arith.constant 0 : index
    %c0_134 = arith.constant 0 : index
    %143 = vector.load %arg11[%c0_131, %c0_132, %c0_133, %c0_134] : memref<1x8x16x128xf32, #tpu.memory_space<vmem>>, vector<1x8x16x128xf32>
    %144 = vector.shape_cast %143 : vector<1x8x16x128xf32> to vector<8x16x128xf32>
    %145 = vector.shape_cast %142 : vector<8x16x128xf32> to vector<1x8x16x128xf32>
    tpu.vector_store %arg11[%c0_131, %c0_132, %c0_133, %c0_134], %145 {strides = array<i32>} : memref<1x8x16x128xf32, #tpu.memory_space<vmem>>, vector<1x8x16x128xf32>,
    return
  }
  func.func @transform_0(%arg0: i32, %arg1: i32) -> (i32, i32, i32, i32) {
    %c0_i32 = arith.constant 0 : i32
    %c0_i32_0 = arith.constant 0 : i32
    %c0_i32_1 = arith.constant 0 : i32
    return %arg0, %arg1, %c0_i32, %c0_i32_0 : i32, i32, i32, i32
  }
  func.func @transform_1(%arg0: i32, %arg1: i32) -> (i32, i32, i32, i32) {
    %c8_i32 = arith.constant 8 : i32
    %0 = arith.muli %arg1, %c8_i32 : i32
    %c1_i32 = arith.constant 1 : i32
    %1 = arith.subi %0, %c1_i32 : i32
    %c0_i32 = arith.constant 0 : i32
    %2 = arith.maxsi %1, %c0_i32 : i32
    %c0_i32_0 = arith.constant 0 : i32
    %c0_i32_1 = arith.constant 0 : i32
    %c0_i32_2 = arith.constant 0 : i32
    return %arg0, %2, %c0_i32_0, %c0_i32_1 : i32, i32, i32, i32
  }
  func.func @transform_2(%arg0: i32, %arg1: i32) -> (i32, i32, i32, i32) {
    %c1_i32 = arith.constant 1 : i32
    %0 = arith.addi %arg1, %c1_i32 : i32
    %c8_i32 = arith.constant 8 : i32
    %1 = arith.muli %0, %c8_i32 : i32
    %c15_i32 = arith.constant 15 : i32
    %2 = arith.minsi %1, %c15_i32 : i32
    %c0_i32 = arith.constant 0 : i32
    %c0_i32_0 = arith.constant 0 : i32
    %c0_i32_1 = arith.constant 0 : i32
    return %arg0, %2, %c0_i32, %c0_i32_0 : i32, i32, i32, i32
  }
  func.func @transform_3(%arg0: i32, %arg1: i32) -> (i32, i32) {
    %c0_i32 = arith.constant 0 : i32
    %c0_i32_0 = arith.constant 0 : i32
    %c0_i32_1 = arith.constant 0 : i32
    return %c0_i32, %c0_i32_0 : i32, i32
  }
  func.func @transform_4(%arg0: i32, %arg1: i32) -> (i32, i32) {
    %c0_i32 = arith.constant 0 : i32
    %c0_i32_0 = arith.constant 0 : i32
    %c0_i32_1 = arith.constant 0 : i32
    return %c0_i32, %c0_i32_0 : i32, i32
  }
  func.func @transform_5(%arg0: i32, %arg1: i32) -> (i32, i32, i32) {
    %c0_i32 = arith.constant 0 : i32
    %c0_i32_0 = arith.constant 0 : i32
    %c0_i32_1 = arith.constant 0 : i32
    %c0_i32_2 = arith.constant 0 : i32
    return %c0_i32, %c0_i32_0, %c0_i32_1 : i32, i32, i32
  }
  func.func @transform_6(%arg0: i32, %arg1: i32) -> (i32, i32) {
    %c0_i32 = arith.constant 0 : i32
    %c0_i32_0 = arith.constant 0 : i32
    %c0_i32_1 = arith.constant 0 : i32
    return %c0_i32, %c0_i32_0 : i32, i32
  }
  func.func @transform_7(%arg0: i32, %arg1: i32) -> (i32, i32) {
    %c0_i32 = arith.constant 0 : i32
    %c0_i32_0 = arith.constant 0 : i32
    %c0_i32_1 = arith.constant 0 : i32
    return %c0_i32, %c0_i32_0 : i32, i32
  }
  func.func @transform_8(%arg0: i32, %arg1: i32) -> (i32, i32) {
    %c0_i32 = arith.constant 0 : i32
    %c0_i32_0 = arith.constant 0 : i32
    %c0_i32_1 = arith.constant 0 : i32
    return %c0_i32, %c0_i32_0 : i32, i32
  }
  func.func @transform_9(%arg0: i32, %arg1: i32) -> (i32, i32, i32, i32) {
    %c0_i32 = arith.constant 0 : i32
    %c0_i32_0 = arith.constant 0 : i32
    %c0_i32_1 = arith.constant 0 : i32
    return %arg0, %arg1, %c0_i32, %c0_i32_0 : i32, i32, i32, i32
  }
}

</mosaic_0001>

<llo_original>
// kernel: tpu_custom_call.1
$region0: #{tpu_custom_call.1}
  #allocation0 [shape = 'u32[]', space=smem, size = 0x4, offset = 0x4, fixed_abs, tag = 'smem constant byte address 0x4 - core index']
  #allocation1 [shape = 'u32[72,128]{1,0:T(1,128)}', space=vmem, size = 0x9000, scoped, tag = 'internal scratch']
  #allocation2 [shape = 'f32[10,16,32]{2,1,0:T(8,128)}', space=vmem, size = 0x14000, scoped, tag = 'scratch operand']
  #allocation3 [shape = 'f32[128,32]{1,0:T(8,128)}', space=vmem, size = 0x10000, scoped, tag = 'scratch operand']
  %s0 = inlined_call_operand.hbm [shape: f32[2,16,16,128], index: 0, kind: input, shape index: {}]
  %s1 = inlined_call_operand.hbm [shape: f32[2,16,16,128], index: 1, kind: input, shape index: {}]
  %s2 = inlined_call_operand.hbm [shape: f32[2,16,16,128], index: 2, kind: input, shape index: {}]
  %s3 = inlined_call_operand.vmem [shape: f32[128,32], index: 3, kind: input, shape index: {}]
  %s4 = inlined_call_operand.vmem [shape: f32[1,32], index: 4, kind: input, shape index: {}]
  %s5 = inlined_call_operand.hbm [shape: f32[9,32,32], index: 5, kind: input, shape index: {}]
  %s6 = inlined_call_operand.vmem [shape: f32[1,32], index: 6, kind: input, shape index: {}]
  %s7 = inlined_call_operand.vmem [shape: f32[32,128], index: 7, kind: input, shape index: {}]
  %s8 = inlined_call_operand.vmem [shape: f32[1,128], index: 8, kind: input, shape index: {}]
  %s9 = inlined_call_operand.hbm [shape: f32[2,16,16,128], index: 9, kind: output, shape index: {}]
  %s10 = sld [smem:[#allocation0]]
  $region85: #{tpu_custom_call.1} parent=0
    _
  %s12 = ssub.s32 1, %s10
  %s13 = scalar_select 0, %s12, %s10
  $region1: #{tpu_custom_call.1} parent=0
    #allocation4 [shape = 'u8[131072]{0}', space=vmem, size = 0x20000, scoped, tag = 'input window, operand 0']
    #allocation5 [shape = 's32[2]{0}', space=sflag, size = 0x8, scoped, tag = 'scoped memory for tpu_custom_call.1']
    #allocation6 [shape = 's32[2]{0}', space=sflag, size = 0x8, scoped, tag = 'scoped memory for tpu_custom_call.1']
    #allocation7 [shape = 'u8[16384]{0}', space=vmem, size = 0x4000, scoped, tag = 'input window, operand 1']
    #allocation8 [shape = 's32[2]{0}', space=sflag, size = 0x8, scoped, tag = 'scoped memory for tpu_custom_call.1']
    #allocation9 [shape = 'u8[16384]{0}', space=vmem, size = 0x4000, scoped, tag = 'input window, operand 2']
    #allocation10 [shape = 'u8[147456]{0}', space=vmem, size = 0x24000, scoped, tag = 'input window, operand 5, single buffered']
    #allocation11 [shape = 's32[1]{0}', space=sflag, size = 0x4, scoped, tag = 'scoped memory for tpu_custom_call.1']
    #allocation12 [shape = 'u8[131072]{0}', space=vmem, size = 0x20000, scoped, tag = 'output window, operand 0']
    %14 = vsyncpa [#allocation5], 0
    %s15 = scalar_lea.sflag [#allocation5], 1
    %16 = vsyncpa %s15, 0
    %17 = vsyncpa [#allocation8], 0
    %s18 = scalar_lea.sflag [#allocation8], 1
    %19 = vsyncpa %s18, 0
    %20 = vsyncpa [#allocation11], 0
    %21 = vsyncpa [#allocation6], 0
    %s22 = scalar_lea.sflag [#allocation6], 1
    %23 = vsyncpa %s22, 0
    loop: start=0, step=1, limit=6
    $region2: #{tpu_custom_call.1} parent=1 // loop_pre_header
      _
    $region3: #{tpu_custom_call.1} parent=1 // loop_header
      %s25 = sphi 0, %s29
      %p26 = scmp.ge.s32.totalorder %s25, 6
      %s32 = sphi 0, %s44
      %s33 = sphi 0, %s40
      %s34 = sphi 0, %s32
      %s35 = sphi 0, %s33
      %s36 = sphi 0, %s34
      %s37 = sphi 0, %s35
      %s49 = sphi 0, %s51
      %s52 = sphi 0, %s49
      %s53 = sphi 0, %s52
      %s69 = sphi 0, %s53
      %s85 = sphi 0, %s87
      %s88 = sphi 0, %s85
      %s89 = sphi 0, %s88
      %s105 = sphi 0, %s89
      %s121 = sphi 0, %s123
      %s124 = sphi 0, %s121
      %s125 = sphi 0, %s124
      %s141 = sphi 0, %s125
      %s145 = sphi 0, %s145
      %s147 = sphi 0, %s145
      %s148 = sphi 0, %s147
      %s162 = sphi 0, %s148
      %s166 = sphi 0, %s166
      %s168 = sphi 0, %s166
      %s169 = sphi 0, %s168
      %s183 = sphi 0, %s169
      %s187 = sphi 0, %s187
      %s189 = sphi 0, %s187
      %s190 = sphi 0, %s189
      %s204 = sphi 0, %s190
      %s208 = sphi 0, %s208
      %s210 = sphi 0, %s208
      %s211 = sphi 0, %s210
      %s225 = sphi 0, %s211
      %s229 = sphi 0, %s229
      %s231 = sphi 0, %s229
      %s232 = sphi 0, %s231
      %s246 = sphi 0, %s232
      %s250 = sphi 0, %s250
      %s252 = sphi 0, %s250
      %s253 = sphi 0, %s252
      %s267 = sphi 0, %s253
      %s275 = sphi 0, %s277
      %s278 = sphi 0, %s275
      %s279 = sphi 0, %s278
      %s295 = sphi 0, %s279
    $region4: #{tpu_custom_call.1} parent=1 // loop_header_branch
      %28 = sbr.rel (%p26) target = $region8
    $region5: #{tpu_custom_call.1} parent=1 // loop_body
      %s30 = ssub.s32 %s25, 1
      %s31 = ssub.s32 %s25, 2
      %s38 = sadd.s32 1, %s33
      %p39 = scmp.ge.s32.totalorder %s38, 2
      %s40 = scalar_select %p39, 0, %s38
      %s41 = sadd.s32 1, %s32
      %s42 = scalar_select %p39, %s41, %s32
      %p43 = scmp.ge.s32.totalorder %s42, 2
      %s44 = scalar_select %p43, 0, %s42
      %s45 = ssub.s32 %s32, %s44
      %s46 = ssub.s32 %s33, %s40
      %s47 = sor.u32 %s45, %s46
      %p48 = scmp.eq.s32.totalorder %s47, 0
      %s50 = sadd.s32 %s49, 1
      %s51 = scalar_select %p48, %s49, %s50
      %p54 = pneg %p48
      %p55 = scmp.eq.s32.totalorder %s25, 3
      %p56 = por %p54, %p55
      %p57 = scmp.ne.s32.totalorder %s49, %s52
      %p58 = scmp.eq.s32.totalorder %s25, 0
      %p59 = por %p57, %p58
      %p60 = scmp.ne.s32.totalorder %s49, %s52
      %p61 = scmp.eq.s32.totalorder %s30, 3
      %p62 = por %p60, %p61
      %p63 = scmp.ne.s32.totalorder %s52, %s53
      %p64 = scmp.eq.s32.totalorder %s30, 0
      %p65 = por %p63, %p64
      %p66 = scmp.ne.s32.totalorder %s52, %s53
      %p67 = scmp.eq.s32.totalorder %s31, 3
      %p68 = por %p66, %p67
      %p70 = scmp.ne.s32.totalorder %s53, %s69
      %p71 = scmp.eq.s32.totalorder %s31, 0
      %p72 = por %p70, %p71
      %s73 = smul.u32 %s33, 8
      %s74 = ssub.s32 %s73, 1
      %p75 = scmp.gt.s32.totalorder %s74, 0
      %s76 = scalar_select %p75, %s74, 0
      %s77 = smul.u32 %s40, 8
      %s78 = ssub.s32 %s77, 1
      %p79 = scmp.gt.s32.totalorder %s78, 0
      %s80 = scalar_select %p79, %s78, 0
      %s81 = ssub.s32 %s32, %s44
      %s82 = ssub.s32 %s76, %s80
      %s83 = sor.u32 %s81, %s82
      %p84 = scmp.eq.s32.totalorder %s83, 0
      %s86 = sadd.s32 %s85, 1
      %s87 = scalar_select %p84, %s85, %s86
      %p90 = pneg %p84
      %p91 = scmp.eq.s32.totalorder %s25, 3
      %p92 = por %p90, %p91
      %p93 = scmp.ne.s32.totalorder %s85, %s88
      %p94 = scmp.eq.s32.totalorder %s25, 0
      %p95 = por %p93, %p94
      %p96 = scmp.ne.s32.totalorder %s85, %s88
      %p97 = scmp.eq.s32.totalorder %s30, 3
      %p98 = por %p96, %p97
      %p99 = scmp.ne.s32.totalorder %s88, %s89
      %p100 = scmp.eq.s32.totalorder %s30, 0
      %p101 = por %p99, %p100
      %p102 = scmp.ne.s32.totalorder %s88, %s89
      %p103 = scmp.eq.s32.totalorder %s31, 3
      %p104 = por %p102, %p103
      %p106 = scmp.ne.s32.totalorder %s89, %s105
      %p107 = scmp.eq.s32.totalorder %s31, 0
      %p108 = por %p106, %p107
      %s109 = sadd.s32 %s33, 1
      %s110 = smul.u32 %s109, 8
      %p111 = scmp.lt.s32.totalorder %s110, 15
      %s112 = scalar_select %p111, %s110, 15
      %s113 = sadd.s32 %s40, 1
      %s114 = smul.u32 %s113, 8
      %p115 = scmp.lt.s32.totalorder %s114, 15
      %s116 = scalar_select %p115, %s114, 15
      %s117 = ssub.s32 %s32, %s44
      %s118 = ssub.s32 %s112, %s116
      %s119 = sor.u32 %s117, %s118
      %p120 = scmp.eq.s32.totalorder %s119, 0
      %s122 = sadd.s32 %s121, 1
      %s123 = scalar_select %p120, %s121, %s122
      %p126 = pneg %p120
      %p127 = scmp.eq.s32.totalorder %s25, 3
      %p128 = por %p126, %p127
      %p129 = scmp.ne.s32.totalorder %s121, %s124
      %p130 = scmp.eq.s32.totalorder %s25, 0
      %p131 = por %p129, %p130
      %p132 = scmp.ne.s32.totalorder %s121, %s124
      %p133 = scmp.eq.s32.totalorder %s30, 3
      %p134 = por %p132, %p133
      %p135 = scmp.ne.s32.totalorder %s124, %s125
      %p136 = scmp.eq.s32.totalorder %s30, 0
      %p137 = por %p135, %p136
      %p138 = scmp.ne.s32.totalorder %s124, %s125
      %p139 = scmp.eq.s32.totalorder %s31, 3
      %p140 = por %p138, %p139
      %p142 = scmp.ne.s32.totalorder %s125, %s141
      %p143 = scmp.eq.s32.totalorder %s31, 0
      %p144 = por %p142, %p143
      %s146 = sadd.s32 %s145, 1
      %p149 = scmp.eq.s32.totalorder %s25, 3
      %p150 = scmp.ne.s32.totalorder %s145, %s147
      %p151 = scmp.eq.s32.totalorder %s25, 0
      %p152 = por %p150, %p151
      %p153 = scmp.ne.s32.totalorder %s145, %s147
      %p154 = scmp.eq.s32.totalorder %s30, 3
      %p155 = por %p153, %p154
      %p156 = scmp.ne.s32.totalorder %s147, %s148
      %p157 = scmp.eq.s32.totalorder %s30, 0
      %p158 = por %p156, %p157
      %p159 = scmp.ne.s32.totalorder %s147, %s148
      %p160 = scmp.eq.s32.totalorder %s31, 3
      %p161 = por %p159, %p160
      %p163 = scmp.ne.s32.totalorder %s148, %s162
      %p164 = scmp.eq.s32.totalorder %s31, 0
      %p165 = por %p163, %p164
      %s167 = sadd.s32 %s166, 1
      %p170 = scmp.eq.s32.totalorder %s25, 3
      %p171 = scmp.ne.s32.totalorder %s166, %s168
      %p172 = scmp.eq.s32.totalorder %s25, 0
      %p173 = por %p171, %p172
      %p174 = scmp.ne.s32.totalorder %s166, %s168
      %p175 = scmp.eq.s32.totalorder %s30, 3
      %p176 = por %p174, %p175
      %p177 = scmp.ne.s32.totalorder %s168, %s169
      %p178 = scmp.eq.s32.totalorder %s30, 0
      %p179 = por %p177, %p178
      %p180 = scmp.ne.s32.totalorder %s168, %s169
      %p181 = scmp.eq.s32.totalorder %s31, 3
      %p182 = por %p180, %p181
      %p184 = scmp.ne.s32.totalorder %s169, %s183
      %p185 = scmp.eq.s32.totalorder %s31, 0
      %p186 = por %p184, %p185
      %s188 = sadd.s32 %s187, 1
      %p191 = scmp.eq.s32.totalorder %s25, 3
      %p192 = scmp.ne.s32.totalorder %s187, %s189
      %p193 = scmp.eq.s32.totalorder %s25, 0
      %p194 = por %p192, %p193
      %p195 = scmp.ne.s32.totalorder %s187, %s189
      %p196 = scmp.eq.s32.totalorder %s30, 3
      %p197 = por %p195, %p196
      %p198 = scmp.ne.s32.totalorder %s189, %s190
      %p199 = scmp.eq.s32.totalorder %s30, 0
      %p200 = por %p198, %p199
      %p201 = scmp.ne.s32.totalorder %s189, %s190
      %p202 = scmp.eq.s32.totalorder %s31, 3
      %p203 = por %p201, %p202
      %p205 = scmp.ne.s32.totalorder %s190, %s204
      %p206 = scmp.eq.s32.totalorder %s31, 0
      %p207 = por %p205, %p206
      %s209 = sadd.s32 %s208, 1
      %p212 = scmp.eq.s32.totalorder %s25, 3
      %p213 = scmp.ne.s32.totalorder %s208, %s210
      %p214 = scmp.eq.s32.totalorder %s25, 0
      %p215 = por %p213, %p214
      %p216 = scmp.ne.s32.totalorder %s208, %s210
      %p217 = scmp.eq.s32.totalorder %s30, 3
      %p218 = por %p216, %p217
      %p219 = scmp.ne.s32.totalorder %s210, %s211
      %p220 = scmp.eq.s32.totalorder %s30, 0
      %p221 = por %p219, %p220
      %p222 = scmp.ne.s32.totalorder %s210, %s211
      %p223 = scmp.eq.s32.totalorder %s31, 3
      %p224 = por %p222, %p223
      %p226 = scmp.ne.s32.totalorder %s211, %s225
      %p227 = scmp.eq.s32.totalorder %s31, 0
      %p228 = por %p226, %p227
      %s230 = sadd.s32 %s229, 1
      %p233 = scmp.eq.s32.totalorder %s25, 3
      %p234 = scmp.ne.s32.totalorder %s229, %s231
      %p235 = scmp.eq.s32.totalorder %s25, 0
      %p236 = por %p234, %p235
      %p237 = scmp.ne.s32.totalorder %s229, %s231
      %p238 = scmp.eq.s32.totalorder %s30, 3
      %p239 = por %p237, %p238
      %p240 = scmp.ne.s32.totalorder %s231, %s232
      %p241 = scmp.eq.s32.totalorder %s30, 0
      %p242 = por %p240, %p241
      %p243 = scmp.ne.s32.totalorder %s231, %s232
      %p244 = scmp.eq.s32.totalorder %s31, 3
      %p245 = por %p243, %p244
      %p247 = scmp.ne.s32.totalorder %s232, %s246
      %p248 = scmp.eq.s32.totalorder %s31, 0
      %p249 = por %p247, %p248
      %s251 = sadd.s32 %s250, 1
      %p254 = scmp.eq.s32.totalorder %s25, 3
      %p255 = scmp.ne.s32.totalorder %s250, %s252
      %p256 = scmp.eq.s32.totalorder %s25, 0
      %p257 = por %p255, %p256
      %p258 = scmp.ne.s32.totalorder %s250, %s252
      %p259 = scmp.eq.s32.totalorder %s30, 3
      %p260 = por %p258, %p259
      %p261 = scmp.ne.s32.totalorder %s252, %s253
      %p262 = scmp.eq.s32.totalorder %s30, 0
      %p263 = por %p261, %p262
      %p264 = scmp.ne.s32.totalorder %s252, %s253
      %p265 = scmp.eq.s32.totalorder %s31, 3
      %p266 = por %p264, %p265
      %p268 = scmp.ne.s32.totalorder %s253, %s267
      %p269 = scmp.eq.s32.totalorder %s31, 0
      %p270 = por %p268, %p269
      %s271 = ssub.s32 %s32, %s44
      %s272 = ssub.s32 %s33, %s40
      %s273 = sor.u32 %s271, %s272
      %p274 = scmp.eq.s32.totalorder %s273, 0
      %s276 = sadd.s32 %s275, 1
      %s277 = scalar_select %p274, %s275, %s276
      %p280 = pneg %p274
      %p281 = scmp.eq.s32.totalorder %s25, 3
      %p282 = por %p280, %p281
      %p283 = scmp.ne.s32.totalorder %s275, %s278
      %p284 = scmp.eq.s32.totalorder %s25, 0
      %p285 = por %p283, %p284
      %p286 = scmp.ne.s32.totalorder %s275, %s278
      %p287 = scmp.eq.s32.totalorder %s30, 3
      %p288 = por %p286, %p287
      %p289 = scmp.ne.s32.totalorder %s278, %s279
      %p290 = scmp.eq.s32.totalorder %s30, 0
      %p291 = por %p289, %p290
      %p292 = scmp.ne.s32.totalorder %s278, %s279
      %p293 = scmp.eq.s32.totalorder %s31, 3
      %p294 = por %p292, %p293
      %p296 = scmp.ne.s32.totalorder %s279, %s295
      %p297 = scmp.eq.s32.totalorder %s31, 0
      %p298 = por %p296, %p297
      %p299 = scmp.le.s32.totalorder 1, %s25
      %p300 = scmp.lt.s32.totalorder %s25, 5
      %p301 = pnand %p299, %p300
      %p302 = pneg %p301
      // Predicated region
      $region9: #{tpu_custom_call.1} parent=5 // pred_check
        _
      $region10: #{tpu_custom_call.1} parent=5 // pred_check_branch
        %304 = sbr.rel (%p301) target = $region12
      $region11: #{tpu_custom_call.1} parent=5 // pred_region
        %s305 = ssub.s32 %s25, 1
        // Predicated region
        $region13: #{tpu_custom_call.1} parent=11 // pred_check
          %p306 = pneg %p158
        $region14: #{tpu_custom_call.1} parent=11 // pred_check_branch
          %308 = sbr.rel (%p306) target = $region16
        $region15: #{tpu_custom_call.1} parent=11 // pred_region
          _
        $region16: #{tpu_custom_call.1} parent=11 // pred_fallthru
          _
        // Predicated region
        $region17: #{tpu_custom_call.1} parent=11 // pred_check
          %p309 = pneg %p179
        $region18: #{tpu_custom_call.1} parent=11 // pred_check_branch
          %311 = sbr.rel (%p309) target = $region20
        $region19: #{tpu_custom_call.1} parent=11 // pred_region
          _
        $region20: #{tpu_custom_call.1} parent=11 // pred_fallthru
          _
        // Predicated region
        $region21: #{tpu_custom_call.1} parent=11 // pred_check
          %p312 = pneg %p200
        $region22: #{tpu_custom_call.1} parent=11 // pred_check_branch
          %314 = sbr.rel (%p312) target = $region24
        $region23: #{tpu_custom_call.1} parent=11 // pred_region
          %316 = vsyncadd [#allocation11], 0
          %s317 = sshll.u32 %s5, 4
          %s318 = int_to_ptr.hbm [resolvable:$true] %s317
          %s319 = sshll.u32 [#allocation10], 4
          %s320 = int_to_ptr.vmem [resolvable:$true] %s319
          %325 = dma.hbm_to_vmem [thread:$0]  %s318, 4608, %s320, [#allocation11], 128, 128, 8
        $region24: #{tpu_custom_call.1} parent=11 // pred_fallthru
          _
        // Predicated region
        $region25: #{tpu_custom_call.1} parent=11 // pred_check
          %p326 = pneg %p221
        $region26: #{tpu_custom_call.1} parent=11 // pred_check_branch
          %328 = sbr.rel (%p326) target = $region28
        $region27: #{tpu_custom_call.1} parent=11 // pred_region
          _
        $region28: #{tpu_custom_call.1} parent=11 // pred_fallthru
          _
        // Predicated region
        $region29: #{tpu_custom_call.1} parent=11 // pred_check
          %p329 = pneg %p242
        $region30: #{tpu_custom_call.1} parent=11 // pred_check_branch
          %331 = sbr.rel (%p329) target = $region32
        $region31: #{tpu_custom_call.1} parent=11 // pred_region
          _
        $region32: #{tpu_custom_call.1} parent=11 // pred_fallthru
          _
        // Predicated region
        $region33: #{tpu_custom_call.1} parent=11 // pred_check
          %p332 = pneg %p263
        $region34: #{tpu_custom_call.1} parent=11 // pred_check_branch
          %334 = sbr.rel (%p332) target = $region36
        $region35: #{tpu_custom_call.1} parent=11 // pred_region
          _
        $region36: #{tpu_custom_call.1} parent=11 // pred_fallthru
          _
      $region12: #{tpu_custom_call.1} parent=5 // pred_fallthru
        _
      %p335 = scmp.lt.s32.totalorder %s25, 4
      // Predicated region
      $region37: #{tpu_custom_call.1} parent=5 // pred_check
        %p336 = pneg %p335
      $region38: #{tpu_custom_call.1} parent=5 // pred_check_branch
        %338 = sbr.rel (%p336) target = $region40
      $region39: #{tpu_custom_call.1} parent=5 // pred_region
        // Predicated region
        $region41: #{tpu_custom_call.1} parent=39 // pred_check
          %p339 = pneg %p59
        $region42: #{tpu_custom_call.1} parent=39 // pred_check_branch
          %341 = sbr.rel (%p339) target = $region44
        $region43: #{tpu_custom_call.1} parent=39 // pred_region
          %s342 = sand.u32 %s49, 1
          %s343 = scalar_lea.sflag [#allocation5], %s342
          %s344 = sand.u32 %s49, 1
          %s345 = smul.addr %s344, 128
          %s346 = scalar_lea.vmem [#allocation4], %s345
          %s347 = smul.u32 8, %s33
          %349 = vsyncadd %s343, 0
          %s350 = smul.addr %s347, 2
          %s351 = smul.addr %s32, 32
          %s352 = sadd.s32 %s350, %s351
          %s353 = smul.addr %s352, 8
          %s354 = scalar_lea.hbm %s0, %s353
          %s355 = sshll.u32 %s354, 4
          %s356 = int_to_ptr.hbm [resolvable:$true] %s355
          %s357 = sshll.u32 %s346, 4
          %s358 = int_to_ptr.vmem [resolvable:$true] %s357
          %363 = dma.hbm_to_vmem [thread:$0]  %s356, 2048, %s358, %s343, 128, 128, 8
        $region44: #{tpu_custom_call.1} parent=39 // pred_fallthru
          _
        // Predicated region
        $region45: #{tpu_custom_call.1} parent=39 // pred_check
          %p364 = pneg %p95
        $region46: #{tpu_custom_call.1} parent=39 // pred_check_branch
          %366 = sbr.rel (%p364) target = $region48
        $region47: #{tpu_custom_call.1} parent=39 // pred_region
          %s367 = sand.u32 %s25, 1
          %s368 = scalar_lea.sflag [#allocation8], %s367
          %s369 = sand.u32 %s85, 1
          %s370 = smul.addr %s369, 16
          %s371 = scalar_lea.vmem [#allocation7], %s370
          %s372 = smul.u32 %s33, 8
          %s373 = ssub.s32 %s372, 1
          %p374 = scmp.gt.s32.totalorder %s373, 0
          %s375 = scalar_select %p374, %s373, 0
          %377 = vsyncadd %s368, 0
          %s378 = smul.addr %s375, 2
          %s379 = smul.addr %s32, 32
          %s380 = sadd.s32 %s378, %s379
          %s381 = smul.addr %s380, 8
          %s382 = scalar_lea.hbm %s1, %s381
          %s383 = sshll.u32 %s382, 4
          %s384 = int_to_ptr.hbm [resolvable:$true] %s383
          %s385 = sshll.u32 %s371, 4
          %s386 = int_to_ptr.vmem [resolvable:$true] %s385
          %391 = dma.hbm_to_vmem [thread:$0]  %s384, 256, %s386, %s368, 128, 128, 8
        $region48: #{tpu_custom_call.1} parent=39 // pred_fallthru
          _
        // Predicated region
        $region49: #{tpu_custom_call.1} parent=39 // pred_check
          %p392 = pneg %p131
        $region50: #{tpu_custom_call.1} parent=39 // pred_check_branch
          %394 = sbr.rel (%p392) target = $region52
        $region51: #{tpu_custom_call.1} parent=39 // pred_region
          %s395 = sand.u32 %s25, 1
          %s396 = scalar_lea.sflag [#allocation8], %s395
          %s397 = sand.u32 %s121, 1
          %s398 = smul.addr %s397, 16
          %s399 = scalar_lea.vmem [#allocation9], %s398
          %s400 = sadd.s32 %s33, 1
          %s401 = smul.u32 %s400, 8
          %p402 = scmp.lt.s32.totalorder %s401, 15
          %s403 = scalar_select %p402, %s401, 15
          %405 = vsyncadd %s396, 0
          %s406 = smul.addr %s403, 2
          %s407 = smul.addr %s32, 32
          %s408 = sadd.s32 %s406, %s407
          %s409 = smul.addr %s408, 8
          %s410 = scalar_lea.hbm %s2, %s409
          %s411 = sshll.u32 %s410, 4
          %s412 = int_to_ptr.hbm [resolvable:$true] %s411
          %s413 = sshll.u32 %s399, 4
          %s414 = int_to_ptr.vmem [resolvable:$true] %s413
          %419 = dma.hbm_to_vmem [thread:$0]  %s412, 256, %s414, %s396, 128, 128, 8
        $region52: #{tpu_custom_call.1} parent=39 // pred_fallthru
          _
      $region40: #{tpu_custom_call.1} parent=5 // pred_fallthru
        _
      %p420 = scmp.le.s32.totalorder 1, %s25
      %p421 = scmp.lt.s32.totalorder %s25, 5
      %p422 = pnand %p420, %p421
      %p423 = pneg %p422
      // Predicated region
      $region53: #{tpu_custom_call.1} parent=5 // pred_check
        _
      $region54: #{tpu_custom_call.1} parent=5 // pred_check_branch
        %425 = sbr.rel (%p422) target = $region56
      $region55: #{tpu_custom_call.1} parent=5 // pred_region
        %s426 = ssub.s32 %s25, 1
        %s427 = sand.u32 %s52, 1
        %s428 = scalar_lea.sflag [#allocation5], %s427
        %s429 = sand.u32 %s52, 1
        %s430 = smul.addr %s429, 128
        %s431 = scalar_lea.vmem [#allocation4], %s430
        // Predicated region
        $region57: #{tpu_custom_call.1} parent=55 // pred_check
          %p432 = pneg %p65
        $region58: #{tpu_custom_call.1} parent=55 // pred_check_branch
          %434 = sbr.rel (%p432) target = $region60
        $region59: #{tpu_custom_call.1} parent=55 // pred_region
          %436 = dma.done %s428, 2048
        $region60: #{tpu_custom_call.1} parent=55 // pred_fallthru
          _
        %s437 = sand.u32 %s30, 1
        %s438 = scalar_lea.sflag [#allocation8], %s437
        %s439 = sand.u32 %s88, 1
        %s440 = smul.addr %s439, 16
        %s441 = scalar_lea.vmem [#allocation7], %s440
        // Predicated region
        $region61: #{tpu_custom_call.1} parent=55 // pred_check
          %p442 = pneg %p101
        $region62: #{tpu_custom_call.1} parent=55 // pred_check_branch
          %444 = sbr.rel (%p442) target = $region64
        $region63: #{tpu_custom_call.1} parent=55 // pred_region
          %446 = dma.done %s438, 256
        $region64: #{tpu_custom_call.1} parent=55 // pred_fallthru
          _
        %s447 = sand.u32 %s30, 1
        %s448 = scalar_lea.sflag [#allocation8], %s447
        %s449 = sand.u32 %s124, 1
        %s450 = smul.addr %s449, 16
        %s451 = scalar_lea.vmem [#allocation9], %s450
        // Predicated region
        $region65: #{tpu_custom_call.1} parent=55 // pred_check
          %p452 = pneg %p137
        $region66: #{tpu_custom_call.1} parent=55 // pred_check_branch
          %454 = sbr.rel (%p452) target = $region68
        $region67: #{tpu_custom_call.1} parent=55 // pred_region
          %456 = dma.done %s448, 256
        $region68: #{tpu_custom_call.1} parent=55 // pred_fallthru
          _
        // Predicated region
        $region69: #{tpu_custom_call.1} parent=55 // pred_check
          %p457 = pneg %p200
        $region70: #{tpu_custom_call.1} parent=55 // pred_check_branch
          %459 = sbr.rel (%p457) target = $region72
        $region71: #{tpu_custom_call.1} parent=55 // pred_region
          %461 = dma.done [#allocation11], 4608
        $region72: #{tpu_custom_call.1} parent=55 // pred_fallthru
          _
        %s462 = sand.u32 %s52, 1
        %s463 = scalar_lea.sflag [#allocation5], %s462
        %s464 = sand.u32 %s52, 1
        %s465 = smul.addr %s464, 128
        %s466 = scalar_lea.vmem [#allocation4], %s465
        %p467 = pneg %p65
        %p468 = pneg %p62
        %s469 = sand.u32 %s30, 1
        %s470 = scalar_lea.sflag [#allocation8], %s469
        %s471 = sand.u32 %s88, 1
        %s472 = smul.addr %s471, 16
        %s473 = scalar_lea.vmem [#allocation7], %s472
        %p474 = pneg %p101
        %p475 = pneg %p98
        %s476 = sand.u32 %s30, 1
        %s477 = scalar_lea.sflag [#allocation8], %s476
        %s478 = sand.u32 %s124, 1
        %s479 = smul.addr %s478, 16
        %s480 = scalar_lea.vmem [#allocation9], %s479
        %p481 = pneg %p137
        %p482 = pneg %p134
        %p483 = pneg %p158
        %p484 = pneg %p155
        %p485 = pneg %p179
        %p486 = pneg %p176
        %p487 = pneg %p200
        %p488 = pneg %p197
        %p489 = pneg %p221
        %p490 = pneg %p218
        %p491 = pneg %p242
        %p492 = pneg %p239
        %p493 = pneg %p263
        %p494 = pneg %p260
        %p495 = pneg %p291
        %p496 = pneg %p288
        %s497 = sand.u32 %s278, 1
        %s498 = scalar_lea.sflag [#allocation6], %s497
        %s499 = sand.u32 %s278, 1
        %s500 = smul.addr %s499, 128
        %s501 = scalar_lea.vmem [#allocation12], %s500
        %s502 = smul.u32 8, %s35
        %s503 = smul.u32 %s35, 8
        %s504 = ssub.s32 %s503, 1
        %p505 = scmp.gt.s32.totalorder %s504, 0
        %s506 = scalar_select %p505, %s504, 0
        %s507 = sadd.s32 %s35, 1
        %s508 = smul.u32 %s507, 8
        %p509 = scmp.lt.s32.totalorder %s508, 15
        %s510 = scalar_select %p509, %s508, 15
        %s511 = smul.u32 8, %s35
        %v512 = vld [vmem:[%s431] sm:$0xff]
        %v513 = vld [vmem:[%s431 + $0x8] sm:$0xff]
        %v514 = vld [vmem:[%s431 + $0x10] sm:$0xff]
        %v515 = vld [vmem:[%s431 + $0x18] sm:$0xff]
        %v516 = vld [vmem:[%s431 + $0x20] sm:$0xff]
        %v517 = vld [vmem:[%s431 + $0x28] sm:$0xff]
        %v518 = vld [vmem:[%s431 + $0x30] sm:$0xff]
        %v519 = vld [vmem:[%s431 + $0x38] sm:$0xff]
        %v520 = vld [vmem:[%s431 + $0x40] sm:$0xff]
        %v521 = vld [vmem:[%s431 + $0x48] sm:$0xff]
        %v522 = vld [vmem:[%s431 + $0x50] sm:$0xff]
        %v523 = vld [vmem:[%s431 + $0x58] sm:$0xff]
        %v524 = vld [vmem:[%s431 + $0x60] sm:$0xff]
        %v525 = vld [vmem:[%s431 + $0x68] sm:$0xff]
        %v526 = vld [vmem:[%s431 + $0x70] sm:$0xff]
        %v527 = vld [vmem:[%s431 + $0x78] sm:$0xff]
        %v528 = vld [vmem:[%s3] sm:$0xff]
        %v529 = vld [vmem:[%s3 + $0x8] sm:$0xff]
        %v530 = vld [vmem:[%s3 + $0x10] sm:$0xff]
        %v531 = vld [vmem:[%s3 + $0x18] sm:$0xff]
        %v532 = vld [vmem:[%s3 + $0x20] sm:$0xff]
        %v533 = vld [vmem:[%s3 + $0x28] sm:$0xff]
        %v534 = vld [vmem:[%s3 + $0x30] sm:$0xff]
        %v535 = vld [vmem:[%s3 + $0x38] sm:$0xff]
        %v536 = vld [vmem:[%s3 + $0x40] sm:$0xff]
        %v537 = vld [vmem:[%s3 + $0x48] sm:$0xff]
        %v538 = vld [vmem:[%s3 + $0x50] sm:$0xff]
        %v539 = vld [vmem:[%s3 + $0x58] sm:$0xff]
        %v540 = vld [vmem:[%s3 + $0x60] sm:$0xff]
        %v541 = vld [vmem:[%s3 + $0x68] sm:$0xff]
        %v542 = vld [vmem:[%s3 + $0x70] sm:$0xff]
        %v543 = vld [vmem:[%s3 + $0x78] sm:$0xff]
        %v544 = vld [vmem:[%s4] sm:$0x1]
        %v546 = vperm.slane %v544, 0
        %548 = vmatpush.msra.mxu0 %v543
        %549 = vmatpush.msra.mxu0 %v542
        %550 = vmatpush.msra.mxu0 %v541
        %551 = vmatpush.msra.mxu0 %v540
        %552 = vmatpush.msra.mxu0 %v539
        %553 = vmatpush.msra.mxu0 %v538
        %554 = vmatpush.msra.mxu0 %v537
        %555 = vmatpush.msra.mxu0 %v536
        %556 = vmatpush.msra.mxu0 %v535
        %557 = vmatpush.msra.mxu0 %v534
        %558 = vmatpush.msra.mxu0 %v533
        %559 = vmatpush.msra.mxu0 %v532
        %560 = vmatpush.msra.mxu0 %v531
        %561 = vmatpush.msra.mxu0 %v530
        %562 = vmatpush.msra.mxu0 %v529
        %563 = vmatpush.msra.mxu0 %v528
        %564 = vmatmul.f32.gmra.mxu0 %v512
        %v565 = vpop.f32.mrf.mxu0
        %v566 = vadd.f32 %v546, %v565
        %567 = vmatmul.f32.gmra.mxu0 %v513
        %v568 = vpop.f32.mrf.mxu0
        %v569 = vadd.f32 %v546, %v568
        %570 = vmatmul.f32.gmra.mxu0 %v514
        %v571 = vpop.f32.mrf.mxu0
        %v572 = vadd.f32 %v546, %v571
        %573 = vmatmul.f32.gmra.mxu0 %v515
        %v574 = vpop.f32.mrf.mxu0
        %v575 = vadd.f32 %v546, %v574
        %576 = vmatmul.f32.gmra.mxu0 %v516
        %v577 = vpop.f32.mrf.mxu0
        %v578 = vadd.f32 %v546, %v577
        %579 = vmatmul.f32.gmra.mxu0 %v517
        %v580 = vpop.f32.mrf.mxu0
        %v581 = vadd.f32 %v546, %v580
        %582 = vmatmul.f32.gmra.mxu0 %v518
        %v583 = vpop.f32.mrf.mxu0
        %v584 = vadd.f32 %v546, %v583
        %585 = vmatmul.f32.gmra.mxu0 %v519
        %v586 = vpop.f32.mrf.mxu0
        %v587 = vadd.f32 %v546, %v586
        %588 = vmatmul.f32.gmra.mxu0 %v520
        %v589 = vpop.f32.mrf.mxu0
        %v590 = vadd.f32 %v546, %v589
        %591 = vmatmul.f32.gmra.mxu0 %v521
        %v592 = vpop.f32.mrf.mxu0
        %v593 = vadd.f32 %v546, %v592
        %594 = vmatmul.f32.gmra.mxu0 %v522
        %v595 = vpop.f32.mrf.mxu0
        %v596 = vadd.f32 %v546, %v595
        %597 = vmatmul.f32.gmra.mxu0 %v523
        %v598 = vpop.f32.mrf.mxu0
        %v599 = vadd.f32 %v546, %v598
        %600 = vmatmul.f32.gmra.mxu0 %v524
        %v601 = vpop.f32.mrf.mxu0
        %v602 = vadd.f32 %v546, %v601
        %603 = vmatmul.f32.gmra.mxu0 %v525
        %v604 = vpop.f32.mrf.mxu0
        %v605 = vadd.f32 %v546, %v604
        %606 = vmatmul.f32.gmra.mxu0 %v526
        %v607 = vpop.f32.mrf.mxu0
        %v608 = vadd.f32 %v546, %v607
        %609 = vmatmul.f32.gmra.mxu0 %v527
        %v610 = vpop.f32.mrf.mxu0
        %v611 = vadd.f32 %v546, %v610
        %612 = vdwg.mxu0
        %v613 = vmax.f32 %v566, 0.0
        %v614 = vmax.f32 %v569, 0.0
        %v615 = vmax.f32 %v572, 0.0
        %v616 = vmax.f32 %v575, 0.0
        %v617 = vmax.f32 %v578, 0.0
        %v618 = vmax.f32 %v581, 0.0
        %v619 = vmax.f32 %v584, 0.0
        %v620 = vmax.f32 %v587, 0.0
        %v621 = vmax.f32 %v590, 0.0
        %v622 = vmax.f32 %v593, 0.0
        %v623 = vmax.f32 %v596, 0.0
        %v624 = vmax.f32 %v599, 0.0
        %v625 = vmax.f32 %v602, 0.0
        %v626 = vmax.f32 %v605, 0.0
        %v627 = vmax.f32 %v608, 0.0
        %v628 = vmax.f32 %v611, 0.0
        %s629 = scalar_lea.vmem [#allocation2], 16
        %vm630 = vcmask 261120
        %631 = vst.msk [vmem:[%s629] sm:$0xff] %vm630, %v613
        %632 = vst.msk [vmem:[%s629 + $0x8] sm:$0xff] %vm630, %v614
        %633 = vst.msk [vmem:[%s629 + $0x10] sm:$0xff] %vm630, %v615
        %634 = vst.msk [vmem:[%s629 + $0x18] sm:$0xff] %vm630, %v616
        %635 = vst.msk [vmem:[%s629 + $0x20] sm:$0xff] %vm630, %v617
        %636 = vst.msk [vmem:[%s629 + $0x28] sm:$0xff] %vm630, %v618
        %637 = vst.msk [vmem:[%s629 + $0x30] sm:$0xff] %vm630, %v619
        %638 = vst.msk [vmem:[%s629 + $0x38] sm:$0xff] %vm630, %v620
        %639 = vst.msk [vmem:[%s629 + $0x40] sm:$0xff] %vm630, %v621
        %640 = vst.msk [vmem:[%s629 + $0x48] sm:$0xff] %vm630, %v622
        %641 = vst.msk [vmem:[%s629 + $0x50] sm:$0xff] %vm630, %v623
        %642 = vst.msk [vmem:[%s629 + $0x58] sm:$0xff] %vm630, %v624
        %643 = vst.msk [vmem:[%s629 + $0x60] sm:$0xff] %vm630, %v625
        %644 = vst.msk [vmem:[%s629 + $0x68] sm:$0xff] %vm630, %v626
        %645 = vst.msk [vmem:[%s629 + $0x70] sm:$0xff] %vm630, %v627
        %646 = vst.msk [vmem:[%s629 + $0x78] sm:$0xff] %vm630, %v628
        %p647 = scmp.gt.s32.totalorder %s35, 0
        %v648 = vld [vmem:[%s441] sm:$0xff]
        %v649 = vld [vmem:[%s441 + $0x8] sm:$0xff]
        %v650 = vld [vmem:[%s3] sm:$0xff]
        %v651 = vld [vmem:[%s3 + $0x8] sm:$0xff]
        %v652 = vld [vmem:[%s3 + $0x10] sm:$0xff]
        %v653 = vld [vmem:[%s3 + $0x18] sm:$0xff]
        %v654 = vld [vmem:[%s3 + $0x20] sm:$0xff]
        %v655 = vld [vmem:[%s3 + $0x28] sm:$0xff]
        %v656 = vld [vmem:[%s3 + $0x30] sm:$0xff]
        %v657 = vld [vmem:[%s3 + $0x38] sm:$0xff]
        %v658 = vld [vmem:[%s3 + $0x40] sm:$0xff]
        %v659 = vld [vmem:[%s3 + $0x48] sm:$0xff]
        %v660 = vld [vmem:[%s3 + $0x50] sm:$0xff]
        %v661 = vld [vmem:[%s3 + $0x58] sm:$0xff]
        %v662 = vld [vmem:[%s3 + $0x60] sm:$0xff]
        %v663 = vld [vmem:[%s3 + $0x68] sm:$0xff]
        %v664 = vld [vmem:[%s3 + $0x70] sm:$0xff]
        %v665 = vld [vmem:[%s3 + $0x78] sm:$0xff]
        %v666 = vld [vmem:[%s4] sm:$0x1]
        %v668 = vperm.slane %v666, 0
        %670 = vmatpush.msra.mxu0 %v665
        %671 = vmatpush.msra.mxu0 %v664
        %672 = vmatpush.msra.mxu0 %v663
        %673 = vmatpush.msra.mxu0 %v662
        %674 = vmatpush.msra.mxu0 %v661
        %675 = vmatpush.msra.mxu0 %v660
        %676 = vmatpush.msra.mxu0 %v659
        %677 = vmatpush.msra.mxu0 %v658
        %678 = vmatpush.msra.mxu0 %v657
        %679 = vmatpush.msra.mxu0 %v656
        %680 = vmatpush.msra.mxu0 %v655
        %681 = vmatpush.msra.mxu0 %v654
        %682 = vmatpush.msra.mxu0 %v653
        %683 = vmatpush.msra.mxu0 %v652
        %684 = vmatpush.msra.mxu0 %v651
        %685 = vmatpush.msra.mxu0 %v650
        %686 = vmatmul.f32.gmra.mxu0 %v648
        %v687 = vpop.f32.mrf.mxu0
        %v688 = vadd.f32 %v668, %v687
        %689 = vmatmul.f32.gmra.mxu0 %v649
        %v690 = vpop.f32.mrf.mxu0
        %v691 = vadd.f32 %v668, %v690
        %692 = vdwg.mxu0
        %v693 = vmax.f32 %v688, 0.0
        %v694 = vmax.f32 %v691, 0.0
        %s695 = scalar_select %p647, 1, 0
        %v696 = vstv %s695
        %vm697 = vcmp.eq.s32.totalorder %v696, 1
        %v698 = vsel %vm697, %v693, 0.0
        %v699 = vsel %vm697, %v694, 0.0
        %700 = vst.msk [vmem:[#allocation2] sm:$0xff] %vm630, %v698
        %701 = vst.msk [vmem:[#allocation2 + $0x8] sm:$0xff] %vm630, %v699
        %p702 = scmp.lt.s32.totalorder %s35, 1
        %v703 = vld [vmem:[%s451] sm:$0xff]
        %v704 = vld [vmem:[%s451 + $0x8] sm:$0xff]
        %v705 = vld [vmem:[%s3] sm:$0xff]
        %v706 = vld [vmem:[%s3 + $0x8] sm:$0xff]
        %v707 = vld [vmem:[%s3 + $0x10] sm:$0xff]
        %v708 = vld [vmem:[%s3 + $0x18] sm:$0xff]
        %v709 = vld [vmem:[%s3 + $0x20] sm:$0xff]
        %v710 = vld [vmem:[%s3 + $0x28] sm:$0xff]
        %v711 = vld [vmem:[%s3 + $0x30] sm:$0xff]
        %v712 = vld [vmem:[%s3 + $0x38] sm:$0xff]
        %v713 = vld [vmem:[%s3 + $0x40] sm:$0xff]
        %v714 = vld [vmem:[%s3 + $0x48] sm:$0xff]
        %v715 = vld [vmem:[%s3 + $0x50] sm:$0xff]
        %v716 = vld [vmem:[%s3 + $0x58] sm:$0xff]
        %v717 = vld [vmem:[%s3 + $0x60] sm:$0xff]
        %v718 = vld [vmem:[%s3 + $0x68] sm:$0xff]
        %v719 = vld [vmem:[%s3 + $0x70] sm:$0xff]
        %v720 = vld [vmem:[%s3 + $0x78] sm:$0xff]
        %v721 = vld [vmem:[%s4] sm:$0x1]
        %v723 = vperm.slane %v721, 0
        %725 = vmatpush.msra.mxu0 %v720
        %726 = vmatpush.msra.mxu0 %v719
        %727 = vmatpush.msra.mxu0 %v718
        %728 = vmatpush.msra.mxu0 %v717
        %729 = vmatpush.msra.mxu0 %v716
        %730 = vmatpush.msra.mxu0 %v715
        %731 = vmatpush.msra.mxu0 %v714
        %732 = vmatpush.msra.mxu0 %v713
        %733 = vmatpush.msra.mxu0 %v712
        %734 = vmatpush.msra.mxu0 %v711
        %735 = vmatpush.msra.mxu0 %v710
        %736 = vmatpush.msra.mxu0 %v709
        %737 = vmatpush.msra.mxu0 %v708
        %738 = vmatpush.msra.mxu0 %v707
        %739 = vmatpush.msra.mxu0 %v706
        %740 = vmatpush.msra.mxu0 %v705
        %741 = vmatmul.f32.gmra.mxu0 %v703
        %v742 = vpop.f32.mrf.mxu0
        %v743 = vadd.f32 %v723, %v742
        %744 = vmatmul.f32.gmra.mxu0 %v704
        %v745 = vpop.f32.mrf.mxu0
        %v746 = vadd.f32 %v723, %v745
        %747 = vdwg.mxu0
        %v748 = vmax.f32 %v743, 0.0
        %v749 = vmax.f32 %v746, 0.0
        %s750 = scalar_select %p702, 1, 0
        %v751 = vstv %s750
        %vm752 = vcmp.eq.s32.totalorder %v751, 1
        %v753 = vsel %vm752, %v748, 0.0
        %v754 = vsel %vm752, %v749, 0.0
        %s755 = scalar_lea.vmem [#allocation2], 144
        %756 = vst.msk [vmem:[%s755] sm:$0xff] %vm630, %v753
        %757 = vst.msk [vmem:[%s755 + $0x8] sm:$0xff] %vm630, %v754
        %758 = vst.msk [vmem:[#allocation3] sm:$0xff] %vm630, 0.0
        %759 = vst.msk [vmem:[#allocation3 + $0x8] sm:$0xff] %vm630, 0.0
        %760 = vst.msk [vmem:[#allocation3 + $0x10] sm:$0xff] %vm630, 0.0
        %761 = vst.msk [vmem:[#allocation3 + $0x18] sm:$0xff] %vm630, 0.0
        %762 = vst.msk [vmem:[#allocation3 + $0x20] sm:$0xff] %vm630, 0.0
        %763 = vst.msk [vmem:[#allocation3 + $0x28] sm:$0xff] %vm630, 0.0
        %764 = vst.msk [vmem:[#allocation3 + $0x30] sm:$0xff] %vm630, 0.0
        %765 = vst.msk [vmem:[#allocation3 + $0x38] sm:$0xff] %vm630, 0.0
        %766 = vst.msk [vmem:[#allocation3 + $0x40] sm:$0xff] %vm630, 0.0
        %767 = vst.msk [vmem:[#allocation3 + $0x48] sm:$0xff] %vm630, 0.0
        %768 = vst.msk [vmem:[#allocation3 + $0x50] sm:$0xff] %vm630, 0.0
        %769 = vst.msk [vmem:[#allocation3 + $0x58] sm:$0xff] %vm630, 0.0
        %770 = vst.msk [vmem:[#allocation3 + $0x60] sm:$0xff] %vm630, 0.0
        %771 = vst.msk [vmem:[#allocation3 + $0x68] sm:$0xff] %vm630, 0.0
        %772 = vst.msk [vmem:[#allocation3 + $0x70] sm:$0xff] %vm630, 0.0
        %773 = vst.msk [vmem:[#allocation3 + $0x78] sm:$0xff] %vm630, 0.0
        %v774 = vld [vmem:[#allocation2] sm:$0xff]
        %v775 = vld [vmem:[#allocation2 + $0x8] sm:$0xff]
        %v776 = vld [vmem:[#allocation2 + $0x10] sm:$0xff]
        %v777 = vld [vmem:[#allocation2 + $0x18] sm:$0xff]
        %v778 = vld [vmem:[#allocation2 + $0x20] sm:$0xff]
        %v779 = vld [vmem:[#allocation2 + $0x28] sm:$0xff]
        %v780 = vld [vmem:[#allocation2 + $0x30] sm:$0xff]
        %v781 = vld [vmem:[#allocation2 + $0x38] sm:$0xff]
        %v782 = vld [vmem:[#allocation2 + $0x40] sm:$0xff]
        %v783 = vld [vmem:[#allocation2 + $0x48] sm:$0xff]
        %v784 = vld [vmem:[#allocation2 + $0x50] sm:$0xff]
        %v785 = vld [vmem:[#allocation2 + $0x58] sm:$0xff]
        %v786 = vld [vmem:[#allocation2 + $0x60] sm:$0xff]
        %v787 = vld [vmem:[#allocation2 + $0x68] sm:$0xff]
        %v788 = vld [vmem:[#allocation2 + $0x70] sm:$0xff]
        %v789 = vld [vmem:[#allocation2 + $0x78] sm:$0xff]
        %v790 = vld [vmem:[#allocation2 + $0x80] sm:$0xff]
        %v791 = vld [vmem:[#allocation2 + $0x88] sm:$0xff]
        %v792 = vld [vmem:[#allocation2 + $0x90] sm:$0xff]
        %v793 = vld [vmem:[#allocation2 + $0x98] sm:$0xff]
        %vm814 = vcmask 1040384
        %v815 = vrot.slane %v774, 7
        %v816 = vrot.slane %v775, 7
        %v817 = vsel %vm814, %v815, %v816
        %v818 = vrot.slane %v776, 7
        %v819 = vrot.slane %v777, 7
        %v820 = vsel %vm814, %v818, %v819
        %v821 = vrot.slane %v778, 7
        %v822 = vrot.slane %v779, 7
        %v823 = vsel %vm814, %v821, %v822
        %v824 = vrot.slane %v780, 7
        %v825 = vrot.slane %v781, 7
        %v826 = vsel %vm814, %v824, %v825
        %v827 = vrot.slane %v782, 7
        %v828 = vrot.slane %v783, 7
        %v829 = vsel %vm814, %v827, %v828
        %v830 = vrot.slane %v784, 7
        %v831 = vrot.slane %v785, 7
        %v832 = vsel %vm814, %v830, %v831
        %v833 = vrot.slane %v786, 7
        %v834 = vrot.slane %v787, 7
        %v835 = vsel %vm814, %v833, %v834
        %v836 = vrot.slane %v788, 7
        %v837 = vrot.slane %v789, 7
        %v838 = vsel %vm814, %v836, %v837
        %v839 = vrot.slane %v790, 7
        %v840 = vrot.slane %v791, 7
        %v841 = vsel %vm814, %v839, %v840
        %v842 = vrot.slane %v792, 7
        %v843 = vrot.slane %v793, 7
        %v844 = vsel %vm814, %v842, %v843
        %v855 = vsel %vm814, 0.0, %v815
        %v856 = vsel %vm814, 0.0, %v818
        %v857 = vsel %vm814, 0.0, %v821
        %v858 = vsel %vm814, 0.0, %v824
        %v859 = vsel %vm814, 0.0, %v827
        %v860 = vsel %vm814, 0.0, %v830
        %v861 = vsel %vm814, 0.0, %v833
        %v862 = vsel %vm814, 0.0, %v836
        %v863 = vsel %vm814, 0.0, %v839
        %v864 = vsel %vm814, 0.0, %v842
        %v865 = vld [vmem:[#allocation3] sm:$0xff]
        %v866 = vld [vmem:[#allocation3 + $0x8] sm:$0xff]
        %v867 = vld [vmem:[#allocation3 + $0x10] sm:$0xff]
        %v868 = vld [vmem:[#allocation3 + $0x18] sm:$0xff]
        %v869 = vld [vmem:[#allocation3 + $0x20] sm:$0xff]
        %v870 = vld [vmem:[#allocation3 + $0x28] sm:$0xff]
        %v871 = vld [vmem:[#allocation3 + $0x30] sm:$0xff]
        %v872 = vld [vmem:[#allocation3 + $0x38] sm:$0xff]
        %v873 = vld [vmem:[#allocation3 + $0x40] sm:$0xff]
        %v874 = vld [vmem:[#allocation3 + $0x48] sm:$0xff]
        %v875 = vld [vmem:[#allocation3 + $0x50] sm:$0xff]
        %v876 = vld [vmem:[#allocation3 + $0x58] sm:$0xff]
        %v877 = vld [vmem:[#allocation3 + $0x60] sm:$0xff]
        %v878 = vld [vmem:[#allocation3 + $0x68] sm:$0xff]
        %v879 = vld [vmem:[#allocation3 + $0x70] sm:$0xff]
        %v880 = vld [vmem:[#allocation3 + $0x78] sm:$0xff]
        %v881 = vld [vmem:[#allocation10] sm:$0xff]
        %v882 = vld [vmem:[#allocation10 + $0x8] sm:$0xff]
        %v883 = vld [vmem:[#allocation10 + $0x10] sm:$0xff]
        %v884 = vld [vmem:[#allocation10 + $0x18] sm:$0xff]
        %v886 = vsel %vm630, %v855, 0
        %v888 = vsel %vm630, %v817, 0
        %v891 = vsel %vm630, %v856, 0
        %v893 = vsel %vm630, %v820, 0
        %v896 = vsel %vm630, %v857, 0
        %v898 = vsel %vm630, %v823, 0
        %v901 = vsel %vm630, %v858, 0
        %v903 = vsel %vm630, %v826, 0
        %v906 = vsel %vm630, %v859, 0
        %v908 = vsel %vm630, %v829, 0
        %v911 = vsel %vm630, %v860, 0
        %v913 = vsel %vm630, %v832, 0
        %v916 = vsel %vm630, %v861, 0
        %v918 = vsel %vm630, %v835, 0
        %v921 = vsel %vm630, %v862, 0
        %v923 = vsel %vm630, %v838, 0
        %925 = vmatpush.msra.mxu0 0.0
        %926 = vmatpush.msra.mxu0 0.0
        %927 = vmatpush.msra.mxu0 0.0
        %928 = vmatpush.msra.mxu0 0.0
        %929 = vmatpush.msra.mxu0 0.0
        %930 = vmatpush.msra.mxu0 0.0
        %931 = vmatpush.msra.mxu0 0.0
        %932 = vmatpush.msra.mxu0 0.0
        %933 = vmatpush.msra.mxu0 0.0
        %934 = vmatpush.msra.mxu0 0.0
        %935 = vmatpush.msra.mxu0 0.0
        %936 = vmatpush.msra.mxu0 0.0
        %937 = vmatpush.msra.mxu0 %v884
        %938 = vmatpush.msra.mxu0 %v883
        %939 = vmatpush.msra.mxu0 %v882
        %940 = vmatpush.msra.mxu0 %v881
        %941 = vmatmul.f32.gmra.mxu0 %v886
        %v942 = vpop.f32.mrf.mxu0
        %v943 = vadd.f32 0.0, %v942
        %944 = vmatmul.f32.gmra.mxu0 %v888
        %v945 = vpop.f32.mrf.mxu0
        %v946 = vadd.f32 0.0, %v945
        %947 = vmatmul.f32.gmra.mxu0 %v891
        %v948 = vpop.f32.mrf.mxu0
        %v949 = vadd.f32 0.0, %v948
        %950 = vmatmul.f32.gmra.mxu0 %v893
        %v951 = vpop.f32.mrf.mxu0
        %v952 = vadd.f32 0.0, %v951
        %953 = vmatmul.f32.gmra.mxu0 %v896
        %v954 = vpop.f32.mrf.mxu0
        %v955 = vadd.f32 0.0, %v954
        %956 = vmatmul.f32.gmra.mxu0 %v898
        %v957 = vpop.f32.mrf.mxu0
        %v958 = vadd.f32 0.0, %v957
        %959 = vmatmul.f32.gmra.mxu0 %v901
        %v960 = vpop.f32.mrf.mxu0
        %v961 = vadd.f32 0.0, %v960
        %962 = vmatmul.f32.gmra.mxu0 %v903
        %v963 = vpop.f32.mrf.mxu0
        %v964 = vadd.f32 0.0, %v963
        %965 = vmatmul.f32.gmra.mxu0 %v906
        %v966 = vpop.f32.mrf.mxu0
        %v967 = vadd.f32 0.0, %v966
        %968 = vmatmul.f32.gmra.mxu0 %v908
        %v969 = vpop.f32.mrf.mxu0
        %v970 = vadd.f32 0.0, %v969
        %971 = vmatmul.f32.gmra.mxu0 %v911
        %v972 = vpop.f32.mrf.mxu0
        %v973 = vadd.f32 0.0, %v972
        %974 = vmatmul.f32.gmra.mxu0 %v913
        %v975 = vpop.f32.mrf.mxu0
        %v976 = vadd.f32 0.0, %v975
        %977 = vmatmul.f32.gmra.mxu0 %v916
        %v978 = vpop.f32.mrf.mxu0
        %v979 = vadd.f32 0.0, %v978
        %980 = vmatmul.f32.gmra.mxu0 %v918
        %v981 = vpop.f32.mrf.mxu0
        %v982 = vadd.f32 0.0, %v981
        %983 = vmatmul.f32.gmra.mxu0 %v921
        %v984 = vpop.f32.mrf.mxu0
        %v985 = vadd.f32 0.0, %v984
        %986 = vmatmul.f32.gmra.mxu0 %v923
        %v987 = vpop.f32.mrf.mxu0
        %v988 = vadd.f32 0.0, %v987
        %989 = vdwg.mxu0
        %v990 = vadd.f32 %v865, %v943
        %v991 = vadd.f32 %v866, %v946
        %v992 = vadd.f32 %v867, %v949
        %v993 = vadd.f32 %v868, %v952
        %v994 = vadd.f32 %v869, %v955
        %v995 = vadd.f32 %v870, %v958
        %v996 = vadd.f32 %v871, %v961
        %v997 = vadd.f32 %v872, %v964
        %v998 = vadd.f32 %v873, %v967
        %v999 = vadd.f32 %v874, %v970
        %v1000 = vadd.f32 %v875, %v973
        %v1001 = vadd.f32 %v876, %v976
        %v1002 = vadd.f32 %v877, %v979
        %v1003 = vadd.f32 %v878, %v982
        %v1004 = vadd.f32 %v879, %v985
        %v1005 = vadd.f32 %v880, %v988
        %1006 = vst.msk [vmem:[#allocation3] sm:$0xff] %vm630, %v990
        %1007 = vst.msk [vmem:[#allocation3 + $0x8] sm:$0xff] %vm630, %v991
        %1008 = vst.msk [vmem:[#allocation3 + $0x10] sm:$0xff] %vm630, %v992
        %1009 = vst.msk [vmem:[#allocation3 + $0x18] sm:$0xff] %vm630, %v993
        %1010 = vst.msk [vmem:[#allocation3 + $0x20] sm:$0xff] %vm630, %v994
        %1011 = vst.msk [vmem:[#allocation3 + $0x28] sm:$0xff] %vm630, %v995
        %1012 = vst.msk [vmem:[#allocation3 + $0x30] sm:$0xff] %vm630, %v996
        %1013 = vst.msk [vmem:[#allocation3 + $0x38] sm:$0xff] %vm630, %v997
        %1014 = vst.msk [vmem:[#allocation3 + $0x40] sm:$0xff] %vm630, %v998
        %1015 = vst.msk [vmem:[#allocation3 + $0x48] sm:$0xff] %vm630, %v999
        %1016 = vst.msk [vmem:[#allocation3 + $0x50] sm:$0xff] %vm630, %v1000
        %1017 = vst.msk [vmem:[#allocation3 + $0x58] sm:$0xff] %vm630, %v1001
        %1018 = vst.msk [vmem:[#allocation3 + $0x60] sm:$0xff] %vm630, %v1002
        %1019 = vst.msk [vmem:[#allocation3 + $0x68] sm:$0xff] %vm630, %v1003
        %1020 = vst.msk [vmem:[#allocation3 + $0x70] sm:$0xff] %vm630, %v1004
        %1021 = vst.msk [vmem:[#allocation3 + $0x78] sm:$0xff] %vm630, %v1005
        %v1022 = vld [vmem:[#allocation3] sm:$0xff]
        %v1023 = vld [vmem:[#allocation3 + $0x8] sm:$0xff]
        %v1024 = vld [vmem:[#allocation3 + $0x10] sm:$0xff]
        %v1025 = vld [vmem:[#allocation3 + $0x18] sm:$0xff]
        %v1026 = vld [vmem:[#allocation3 + $0x20] sm:$0xff]
        %v1027 = vld [vmem:[#allocation3 + $0x28] sm:$0xff]
        %v1028 = vld [vmem:[#allocation3 + $0x30] sm:$0xff]
        %v1029 = vld [vmem:[#allocation3 + $0x38] sm:$0xff]
        %v1030 = vld [vmem:[#allocation3 + $0x40] sm:$0xff]
        %v1031 = vld [vmem:[#allocation3 + $0x48] sm:$0xff]
        %v1032 = vld [vmem:[#allocation3 + $0x50] sm:$0xff]
        %v1033 = vld [vmem:[#allocation3 + $0x58] sm:$0xff]
        %v1034 = vld [vmem:[#allocation3 + $0x60] sm:$0xff]
        %v1035 = vld [vmem:[#allocation3 + $0x68] sm:$0xff]
        %v1036 = vld [vmem:[#allocation3 + $0x70] sm:$0xff]
        %v1037 = vld [vmem:[#allocation3 + $0x78] sm:$0xff]
        %s1038 = scalar_lea.vmem [#allocation10], 96
        %v1039 = vld [vmem:[%s1038] sm:$0xff]
        %v1040 = vld [vmem:[%s1038 + $0x8] sm:$0xff]
        %v1041 = vld [vmem:[%s1038 + $0x10] sm:$0xff]
        %v1042 = vld [vmem:[%s1038 + $0x18] sm:$0xff]
        %v1044 = vsel %vm630, %v863, 0
        %v1046 = vsel %vm630, %v841, 0
        %1048 = vmatpush.msra.mxu0 0.0
        %1049 = vmatpush.msra.mxu0 0.0
        %1050 = vmatpush.msra.mxu0 0.0
        %1051 = vmatpush.msra.mxu0 0.0
        %1052 = vmatpush.msra.mxu0 0.0
        %1053 = vmatpush.msra.mxu0 0.0
        %1054 = vmatpush.msra.mxu0 0.0
        %1055 = vmatpush.msra.mxu0 0.0
        %1056 = vmatpush.msra.mxu0 0.0
        %1057 = vmatpush.msra.mxu0 0.0
        %1058 = vmatpush.msra.mxu0 0.0
        %1059 = vmatpush.msra.mxu0 0.0
        %1060 = vmatpush.msra.mxu0 %v1042
        %1061 = vmatpush.msra.mxu0 %v1041
        %1062 = vmatpush.msra.mxu0 %v1040
        %1063 = vmatpush.msra.mxu0 %v1039
        %1064 = vmatmul.f32.gmra.mxu0 %v891
        %v1065 = vpop.f32.mrf.mxu0
        %v1066 = vadd.f32 0.0, %v1065
        %1067 = vmatmul.f32.gmra.mxu0 %v893
        %v1068 = vpop.f32.mrf.mxu0
        %v1069 = vadd.f32 0.0, %v1068
        %1070 = vmatmul.f32.gmra.mxu0 %v896
        %v1071 = vpop.f32.mrf.mxu0
        %v1072 = vadd.f32 0.0, %v1071
        %1073 = vmatmul.f32.gmra.mxu0 %v898
        %v1074 = vpop.f32.mrf.mxu0
        %v1075 = vadd.f32 0.0, %v1074
        %1076 = vmatmul.f32.gmra.mxu0 %v901
        %v1077 = vpop.f32.mrf.mxu0
        %v1078 = vadd.f32 0.0, %v1077
        %1079 = vmatmul.f32.gmra.mxu0 %v903
        %v1080 = vpop.f32.mrf.mxu0
        %v1081 = vadd.f32 0.0, %v1080
        %1082 = vmatmul.f32.gmra.mxu0 %v906
        %v1083 = vpop.f32.mrf.mxu0
        %v1084 = vadd.f32 0.0, %v1083
        %1085 = vmatmul.f32.gmra.mxu0 %v908
        %v1086 = vpop.f32.mrf.mxu0
        %v1087 = vadd.f32 0.0, %v1086
        %1088 = vmatmul.f32.gmra.mxu0 %v911
        %v1089 = vpop.f32.mrf.mxu0
        %v1090 = vadd.f32 0.0, %v1089
        %1091 = vmatmul.f32.gmra.mxu0 %v913
        %v1092 = vpop.f32.mrf.mxu0
        %v1093 = vadd.f32 0.0, %v1092
        %1094 = vmatmul.f32.gmra.mxu0 %v916
        %v1095 = vpop.f32.mrf.mxu0
        %v1096 = vadd.f32 0.0, %v1095
        %1097 = vmatmul.f32.gmra.mxu0 %v918
        %v1098 = vpop.f32.mrf.mxu0
        %v1099 = vadd.f32 0.0, %v1098
        %1100 = vmatmul.f32.gmra.mxu0 %v921
        %v1101 = vpop.f32.mrf.mxu0
        %v1102 = vadd.f32 0.0, %v1101
        %1103 = vmatmul.f32.gmra.mxu0 %v923
        %v1104 = vpop.f32.mrf.mxu0
        %v1105 = vadd.f32 0.0, %v1104
        %1106 = vmatmul.f32.gmra.mxu0 %v1044
        %v1107 = vpop.f32.mrf.mxu0
        %v1108 = vadd.f32 0.0, %v1107
        %1109 = vmatmul.f32.gmra.mxu0 %v1046
        %v1110 = vpop.f32.mrf.mxu0
        %v1111 = vadd.f32 0.0, %v1110
        %1112 = vdwg.mxu0
        %v1113 = vadd.f32 %v1022, %v1066
        %v1114 = vadd.f32 %v1023, %v1069
        %v1115 = vadd.f32 %v1024, %v1072
        %v1116 = vadd.f32 %v1025, %v1075
        %v1117 = vadd.f32 %v1026, %v1078
        %v1118 = vadd.f32 %v1027, %v1081
        %v1119 = vadd.f32 %v1028, %v1084
        %v1120 = vadd.f32 %v1029, %v1087
        %v1121 = vadd.f32 %v1030, %v1090
        %v1122 = vadd.f32 %v1031, %v1093
        %v1123 = vadd.f32 %v1032, %v1096
        %v1124 = vadd.f32 %v1033, %v1099
        %v1125 = vadd.f32 %v1034, %v1102
        %v1126 = vadd.f32 %v1035, %v1105
        %v1127 = vadd.f32 %v1036, %v1108
        %v1128 = vadd.f32 %v1037, %v1111
        %1129 = vst.msk [vmem:[#allocation3] sm:$0xff] %vm630, %v1113
        %1130 = vst.msk [vmem:[#allocation3 + $0x8] sm:$0xff] %vm630, %v1114
        %1131 = vst.msk [vmem:[#allocation3 + $0x10] sm:$0xff] %vm630, %v1115
        %1132 = vst.msk [vmem:[#allocation3 + $0x18] sm:$0xff] %vm630, %v1116
        %1133 = vst.msk [vmem:[#allocation3 + $0x20] sm:$0xff] %vm630, %v1117
        %1134 = vst.msk [vmem:[#allocation3 + $0x28] sm:$0xff] %vm630, %v1118
        %1135 = vst.msk [vmem:[#allocation3 + $0x30] sm:$0xff] %vm630, %v1119
        %1136 = vst.msk [vmem:[#allocation3 + $0x38] sm:$0xff] %vm630, %v1120
        %1137 = vst.msk [vmem:[#allocation3 + $0x40] sm:$0xff] %vm630, %v1121
        %1138 = vst.msk [vmem:[#allocation3 + $0x48] sm:$0xff] %vm630, %v1122
        %1139 = vst.msk [vmem:[#allocation3 + $0x50] sm:$0xff] %vm630, %v1123
        %1140 = vst.msk [vmem:[#allocation3 + $0x58] sm:$0xff] %vm630, %v1124
        %1141 = vst.msk [vmem:[#allocation3 + $0x60] sm:$0xff] %vm630, %v1125
        %1142 = vst.msk [vmem:[#allocation3 + $0x68] sm:$0xff] %vm630, %v1126
        %1143 = vst.msk [vmem:[#allocation3 + $0x70] sm:$0xff] %vm630, %v1127
        %1144 = vst.msk [vmem:[#allocation3 + $0x78] sm:$0xff] %vm630, %v1128
        %v1145 = vld [vmem:[#allocation3] sm:$0xff]
        %v1146 = vld [vmem:[#allocation3 + $0x8] sm:$0xff]
        %v1147 = vld [vmem:[#allocation3 + $0x10] sm:$0xff]
        %v1148 = vld [vmem:[#allocation3 + $0x18] sm:$0xff]
        %v1149 = vld [vmem:[#allocation3 + $0x20] sm:$0xff]
        %v1150 = vld [vmem:[#allocation3 + $0x28] sm:$0xff]
        %v1151 = vld [vmem:[#allocation3 + $0x30] sm:$0xff]
        %v1152 = vld [vmem:[#allocation3 + $0x38] sm:$0xff]
        %v1153 = vld [vmem:[#allocation3 + $0x40] sm:$0xff]
        %v1154 = vld [vmem:[#allocation3 + $0x48] sm:$0xff]
        %v1155 = vld [vmem:[#allocation3 + $0x50] sm:$0xff]
        %v1156 = vld [vmem:[#allocation3 + $0x58] sm:$0xff]
        %v1157 = vld [vmem:[#allocation3 + $0x60] sm:$0xff]
        %v1158 = vld [vmem:[#allocation3 + $0x68] sm:$0xff]
        %v1159 = vld [vmem:[#allocation3 + $0x70] sm:$0xff]
        %v1160 = vld [vmem:[#allocation3 + $0x78] sm:$0xff]
        %s1161 = scalar_lea.vmem [#allocation10], 192
        %v1162 = vld [vmem:[%s1161] sm:$0xff]
        %v1163 = vld [vmem:[%s1161 + $0x8] sm:$0xff]
        %v1164 = vld [vmem:[%s1161 + $0x10] sm:$0xff]
        %v1165 = vld [vmem:[%s1161 + $0x18] sm:$0xff]
        %v1167 = vsel %vm630, %v864, 0
        %v1169 = vsel %vm630, %v844, 0
        %1171 = vmatpush.msra.mxu0 0.0
        %1172 = vmatpush.msra.mxu0 0.0
        %1173 = vmatpush.msra.mxu0 0.0
        %1174 = vmatpush.msra.mxu0 0.0
        %1175 = vmatpush.msra.mxu0 0.0
        %1176 = vmatpush.msra.mxu0 0.0
        %1177 = vmatpush.msra.mxu0 0.0
        %1178 = vmatpush.msra.mxu0 0.0
        %1179 = vmatpush.msra.mxu0 0.0
        %1180 = vmatpush.msra.mxu0 0.0
        %1181 = vmatpush.msra.mxu0 0.0
        %1182 = vmatpush.msra.mxu0 0.0
        %1183 = vmatpush.msra.mxu0 %v1165
        %1184 = vmatpush.msra.mxu0 %v1164
        %1185 = vmatpush.msra.mxu0 %v1163
        %1186 = vmatpush.msra.mxu0 %v1162
        %1187 = vmatmul.f32.gmra.mxu0 %v896
        %v1188 = vpop.f32.mrf.mxu0
        %v1189 = vadd.f32 0.0, %v1188
        %1190 = vmatmul.f32.gmra.mxu0 %v898
        %v1191 = vpop.f32.mrf.mxu0
        %v1192 = vadd.f32 0.0, %v1191
        %1193 = vmatmul.f32.gmra.mxu0 %v901
        %v1194 = vpop.f32.mrf.mxu0
        %v1195 = vadd.f32 0.0, %v1194
        %1196 = vmatmul.f32.gmra.mxu0 %v903
        %v1197 = vpop.f32.mrf.mxu0
        %v1198 = vadd.f32 0.0, %v1197
        %1199 = vmatmul.f32.gmra.mxu0 %v906
        %v1200 = vpop.f32.mrf.mxu0
        %v1201 = vadd.f32 0.0, %v1200
        %1202 = vmatmul.f32.gmra.mxu0 %v908
        %v1203 = vpop.f32.mrf.mxu0
        %v1204 = vadd.f32 0.0, %v1203
        %1205 = vmatmul.f32.gmra.mxu0 %v911
        %v1206 = vpop.f32.mrf.mxu0
        %v1207 = vadd.f32 0.0, %v1206
        %1208 = vmatmul.f32.gmra.mxu0 %v913
        %v1209 = vpop.f32.mrf.mxu0
        %v1210 = vadd.f32 0.0, %v1209
        %1211 = vmatmul.f32.gmra.mxu0 %v916
        %v1212 = vpop.f32.mrf.mxu0
        %v1213 = vadd.f32 0.0, %v1212
        %1214 = vmatmul.f32.gmra.mxu0 %v918
        %v1215 = vpop.f32.mrf.mxu0
        %v1216 = vadd.f32 0.0, %v1215
        %1217 = vmatmul.f32.gmra.mxu0 %v921
        %v1218 = vpop.f32.mrf.mxu0
        %v1219 = vadd.f32 0.0, %v1218
        %1220 = vmatmul.f32.gmra.mxu0 %v923
        %v1221 = vpop.f32.mrf.mxu0
        %v1222 = vadd.f32 0.0, %v1221
        %1223 = vmatmul.f32.gmra.mxu0 %v1044
        %v1224 = vpop.f32.mrf.mxu0
        %v1225 = vadd.f32 0.0, %v1224
        %1226 = vmatmul.f32.gmra.mxu0 %v1046
        %v1227 = vpop.f32.mrf.mxu0
        %v1228 = vadd.f32 0.0, %v1227
        %1229 = vmatmul.f32.gmra.mxu0 %v1167
        %v1230 = vpop.f32.mrf.mxu0
        %v1231 = vadd.f32 0.0, %v1230
        %1232 = vmatmul.f32.gmra.mxu0 %v1169
        %v1233 = vpop.f32.mrf.mxu0
        %v1234 = vadd.f32 0.0, %v1233
        %1235 = vdwg.mxu0
        %v1236 = vadd.f32 %v1145, %v1189
        %v1237 = vadd.f32 %v1146, %v1192
        %v1238 = vadd.f32 %v1147, %v1195
        %v1239 = vadd.f32 %v1148, %v1198
        %v1240 = vadd.f32 %v1149, %v1201
        %v1241 = vadd.f32 %v1150, %v1204
        %v1242 = vadd.f32 %v1151, %v1207
        %v1243 = vadd.f32 %v1152, %v1210
        %v1244 = vadd.f32 %v1153, %v1213
        %v1245 = vadd.f32 %v1154, %v1216
        %v1246 = vadd.f32 %v1155, %v1219
        %v1247 = vadd.f32 %v1156, %v1222
        %v1248 = vadd.f32 %v1157, %v1225
        %v1249 = vadd.f32 %v1158, %v1228
        %v1250 = vadd.f32 %v1159, %v1231
        %v1251 = vadd.f32 %v1160, %v1234
        %1252 = vst.msk [vmem:[#allocation3] sm:$0xff] %vm630, %v1236
        %1253 = vst.msk [vmem:[#allocation3 + $0x8] sm:$0xff] %vm630, %v1237
        %1254 = vst.msk [vmem:[#allocation3 + $0x10] sm:$0xff] %vm630, %v1238
        %1255 = vst.msk [vmem:[#allocation3 + $0x18] sm:$0xff] %vm630, %v1239
        %1256 = vst.msk [vmem:[#allocation3 + $0x20] sm:$0xff] %vm630, %v1240
        %1257 = vst.msk [vmem:[#allocation3 + $0x28] sm:$0xff] %vm630, %v1241
        %1258 = vst.msk [vmem:[#allocation3 + $0x30] sm:$0xff] %vm630, %v1242
        %1259 = vst.msk [vmem:[#allocation3 + $0x38] sm:$0xff] %vm630, %v1243
        %1260 = vst.msk [vmem:[#allocation3 + $0x40] sm:$0xff] %vm630, %v1244
        %1261 = vst.msk [vmem:[#allocation3 + $0x48] sm:$0xff] %vm630, %v1245
        %1262 = vst.msk [vmem:[#allocation3 + $0x50] sm:$0xff] %vm630, %v1246
        %1263 = vst.msk [vmem:[#allocation3 + $0x58] sm:$0xff] %vm630, %v1247
        %1264 = vst.msk [vmem:[#allocation3 + $0x60] sm:$0xff] %vm630, %v1248
        %1265 = vst.msk [vmem:[#allocation3 + $0x68] sm:$0xff] %vm630, %v1249
        %1266 = vst.msk [vmem:[#allocation3 + $0x70] sm:$0xff] %vm630, %v1250
        %1267 = vst.msk [vmem:[#allocation3 + $0x78] sm:$0xff] %vm630, %v1251
        %v1268 = vld [vmem:[#allocation2] sm:$0xff]
        %v1269 = vld [vmem:[#allocation2 + $0x8] sm:$0xff]
        %v1270 = vld [vmem:[#allocation2 + $0x10] sm:$0xff]
        %v1271 = vld [vmem:[#allocation2 + $0x18] sm:$0xff]
        %v1272 = vld [vmem:[#allocation2 + $0x20] sm:$0xff]
        %v1273 = vld [vmem:[#allocation2 + $0x28] sm:$0xff]
        %v1274 = vld [vmem:[#allocation2 + $0x30] sm:$0xff]
        %v1275 = vld [vmem:[#allocation2 + $0x38] sm:$0xff]
        %v1276 = vld [vmem:[#allocation2 + $0x40] sm:$0xff]
        %v1277 = vld [vmem:[#allocation2 + $0x48] sm:$0xff]
        %v1278 = vld [vmem:[#allocation2 + $0x50] sm:$0xff]
        %v1279 = vld [vmem:[#allocation2 + $0x58] sm:$0xff]
        %v1280 = vld [vmem:[#allocation2 + $0x60] sm:$0xff]
        %v1281 = vld [vmem:[#allocation2 + $0x68] sm:$0xff]
        %v1282 = vld [vmem:[#allocation2 + $0x70] sm:$0xff]
        %v1283 = vld [vmem:[#allocation2 + $0x78] sm:$0xff]
        %v1284 = vld [vmem:[#allocation2 + $0x80] sm:$0xff]
        %v1285 = vld [vmem:[#allocation2 + $0x88] sm:$0xff]
        %v1286 = vld [vmem:[#allocation2 + $0x90] sm:$0xff]
        %v1287 = vld [vmem:[#allocation2 + $0x98] sm:$0xff]
        %v1288 = vld [vmem:[#allocation3] sm:$0xff]
        %v1289 = vld [vmem:[#allocation3 + $0x8] sm:$0xff]
        %v1290 = vld [vmem:[#allocation3 + $0x10] sm:$0xff]
        %v1291 = vld [vmem:[#allocation3 + $0x18] sm:$0xff]
        %v1292 = vld [vmem:[#allocation3 + $0x20] sm:$0xff]
        %v1293 = vld [vmem:[#allocation3 + $0x28] sm:$0xff]
        %v1294 = vld [vmem:[#allocation3 + $0x30] sm:$0xff]
        %v1295 = vld [vmem:[#allocation3 + $0x38] sm:$0xff]
        %v1296 = vld [vmem:[#allocation3 + $0x40] sm:$0xff]
        %v1297 = vld [vmem:[#allocation3 + $0x48] sm:$0xff]
        %v1298 = vld [vmem:[#allocation3 + $0x50] sm:$0xff]
        %v1299 = vld [vmem:[#allocation3 + $0x58] sm:$0xff]
        %v1300 = vld [vmem:[#allocation3 + $0x60] sm:$0xff]
        %v1301 = vld [vmem:[#allocation3 + $0x68] sm:$0xff]
        %v1302 = vld [vmem:[#allocation3 + $0x70] sm:$0xff]
        %v1303 = vld [vmem:[#allocation3 + $0x78] sm:$0xff]
        %s1304 = scalar_lea.vmem [#allocation10], 32
        %v1305 = vld [vmem:[%s1304] sm:$0xff]
        %v1306 = vld [vmem:[%s1304 + $0x8] sm:$0xff]
        %v1307 = vld [vmem:[%s1304 + $0x10] sm:$0xff]
        %v1308 = vld [vmem:[%s1304 + $0x18] sm:$0xff]
        %v1310 = vsel %vm630, %v1268, 0
        %v1313 = vsel %vm630, %v1269, 0
        %v1316 = vsel %vm630, %v1270, 0
        %v1319 = vsel %vm630, %v1271, 0
        %v1322 = vsel %vm630, %v1272, 0
        %v1325 = vsel %vm630, %v1273, 0
        %v1328 = vsel %vm630, %v1274, 0
        %v1331 = vsel %vm630, %v1275, 0
        %v1334 = vsel %vm630, %v1276, 0
        %v1337 = vsel %vm630, %v1277, 0
        %v1340 = vsel %vm630, %v1278, 0
        %v1343 = vsel %vm630, %v1279, 0
        %v1346 = vsel %vm630, %v1280, 0
        %v1349 = vsel %vm630, %v1281, 0
        %v1352 = vsel %vm630, %v1282, 0
        %v1355 = vsel %vm630, %v1283, 0
        %1357 = vmatpush.msra.mxu0 0.0
        %1358 = vmatpush.msra.mxu0 0.0
        %1359 = vmatpush.msra.mxu0 0.0
        %1360 = vmatpush.msra.mxu0 0.0
        %1361 = vmatpush.msra.mxu0 0.0
        %1362 = vmatpush.msra.mxu0 0.0
        %1363 = vmatpush.msra.mxu0 0.0
        %1364 = vmatpush.msra.mxu0 0.0
        %1365 = vmatpush.msra.mxu0 0.0
        %1366 = vmatpush.msra.mxu0 0.0
        %1367 = vmatpush.msra.mxu0 0.0
        %1368 = vmatpush.msra.mxu0 0.0
        %1369 = vmatpush.msra.mxu0 %v1308
        %1370 = vmatpush.msra.mxu0 %v1307
        %1371 = vmatpush.msra.mxu0 %v1306
        %1372 = vmatpush.msra.mxu0 %v1305
        %1373 = vmatmul.f32.gmra.mxu0 %v1310
        %v1374 = vpop.f32.mrf.mxu0
        %v1375 = vadd.f32 0.0, %v1374
        %1376 = vmatmul.f32.gmra.mxu0 %v1313
        %v1377 = vpop.f32.mrf.mxu0
        %v1378 = vadd.f32 0.0, %v1377
        %1379 = vmatmul.f32.gmra.mxu0 %v1316
        %v1380 = vpop.f32.mrf.mxu0
        %v1381 = vadd.f32 0.0, %v1380
        %1382 = vmatmul.f32.gmra.mxu0 %v1319
        %v1383 = vpop.f32.mrf.mxu0
        %v1384 = vadd.f32 0.0, %v1383
        %1385 = vmatmul.f32.gmra.mxu0 %v1322
        %v1386 = vpop.f32.mrf.mxu0
        %v1387 = vadd.f32 0.0, %v1386
        %1388 = vmatmul.f32.gmra.mxu0 %v1325
        %v1389 = vpop.f32.mrf.mxu0
        %v1390 = vadd.f32 0.0, %v1389
        %1391 = vmatmul.f32.gmra.mxu0 %v1328
        %v1392 = vpop.f32.mrf.mxu0
        %v1393 = vadd.f32 0.0, %v1392
        %1394 = vmatmul.f32.gmra.mxu0 %v1331
        %v1395 = vpop.f32.mrf.mxu0
        %v1396 = vadd.f32 0.0, %v1395
        %1397 = vmatmul.f32.gmra.mxu0 %v1334
        %v1398 = vpop.f32.mrf.mxu0
        %v1399 = vadd.f32 0.0, %v1398
        %1400 = vmatmul.f32.gmra.mxu0 %v1337
        %v1401 = vpop.f32.mrf.mxu0
        %v1402 = vadd.f32 0.0, %v1401
        %1403 = vmatmul.f32.gmra.mxu0 %v1340
        %v1404 = vpop.f32.mrf.mxu0
        %v1405 = vadd.f32 0.0, %v1404
        %1406 = vmatmul.f32.gmra.mxu0 %v1343
        %v1407 = vpop.f32.mrf.mxu0
        %v1408 = vadd.f32 0.0, %v1407
        %1409 = vmatmul.f32.gmra.mxu0 %v1346
        %v1410 = vpop.f32.mrf.mxu0
        %v1411 = vadd.f32 0.0, %v1410
        %1412 = vmatmul.f32.gmra.mxu0 %v1349
        %v1413 = vpop.f32.mrf.mxu0
        %v1414 = vadd.f32 0.0, %v1413
        %1415 = vmatmul.f32.gmra.mxu0 %v1352
        %v1416 = vpop.f32.mrf.mxu0
        %v1417 = vadd.f32 0.0, %v1416
        %1418 = vmatmul.f32.gmra.mxu0 %v1355
        %v1419 = vpop.f32.mrf.mxu0
        %v1420 = vadd.f32 0.0, %v1419
        %1421 = vdwg.mxu0
        %v1422 = vadd.f32 %v1288, %v1375
        %v1423 = vadd.f32 %v1289, %v1378
        %v1424 = vadd.f32 %v1290, %v1381
        %v1425 = vadd.f32 %v1291, %v1384
        %v1426 = vadd.f32 %v1292, %v1387
        %v1427 = vadd.f32 %v1293, %v1390
        %v1428 = vadd.f32 %v1294, %v1393
        %v1429 = vadd.f32 %v1295, %v1396
        %v1430 = vadd.f32 %v1296, %v1399
        %v1431 = vadd.f32 %v1297, %v1402
        %v1432 = vadd.f32 %v1298, %v1405
        %v1433 = vadd.f32 %v1299, %v1408
        %v1434 = vadd.f32 %v1300, %v1411
        %v1435 = vadd.f32 %v1301, %v1414
        %v1436 = vadd.f32 %v1302, %v1417
        %v1437 = vadd.f32 %v1303, %v1420
        %1438 = vst.msk [vmem:[#allocation3] sm:$0xff] %vm630, %v1422
        %1439 = vst.msk [vmem:[#allocation3 + $0x8] sm:$0xff] %vm630, %v1423
        %1440 = vst.msk [vmem:[#allocation3 + $0x10] sm:$0xff] %vm630, %v1424
        %1441 = vst.msk [vmem:[#allocation3 + $0x18] sm:$0xff] %vm630, %v1425
        %1442 = vst.msk [vmem:[#allocation3 + $0x20] sm:$0xff] %vm630, %v1426
        %1443 = vst.msk [vmem:[#allocation3 + $0x28] sm:$0xff] %vm630, %v1427
        %1444 = vst.msk [vmem:[#allocation3 + $0x30] sm:$0xff] %vm630, %v1428
        %1445 = vst.msk [vmem:[#allocation3 + $0x38] sm:$0xff] %vm630, %v1429
        %1446 = vst.msk [vmem:[#allocation3 + $0x40] sm:$0xff] %vm630, %v1430
        %1447 = vst.msk [vmem:[#allocation3 + $0x48] sm:$0xff] %vm630, %v1431
        %1448 = vst.msk [vmem:[#allocation3 + $0x50] sm:$0xff] %vm630, %v1432
        %1449 = vst.msk [vmem:[#allocation3 + $0x58] sm:$0xff] %vm630, %v1433
        %1450 = vst.msk [vmem:[#allocation3 + $0x60] sm:$0xff] %vm630, %v1434
        %1451 = vst.msk [vmem:[#allocation3 + $0x68] sm:$0xff] %vm630, %v1435
        %1452 = vst.msk [vmem:[#allocation3 + $0x70] sm:$0xff] %vm630, %v1436
        %1453 = vst.msk [vmem:[#allocation3 + $0x78] sm:$0xff] %vm630, %v1437
        %v1454 = vld [vmem:[#allocation3] sm:$0xff]
        %v1455 = vld [vmem:[#allocation3 + $0x8] sm:$0xff]
        %v1456 = vld [vmem:[#allocation3 + $0x10] sm:$0xff]
        %v1457 = vld [vmem:[#allocation3 + $0x18] sm:$0xff]
        %v1458 = vld [vmem:[#allocation3 + $0x20] sm:$0xff]
        %v1459 = vld [vmem:[#allocation3 + $0x28] sm:$0xff]
        %v1460 = vld [vmem:[#allocation3 + $0x30] sm:$0xff]
        %v1461 = vld [vmem:[#allocation3 + $0x38] sm:$0xff]
        %v1462 = vld [vmem:[#allocation3 + $0x40] sm:$0xff]
        %v1463 = vld [vmem:[#allocation3 + $0x48] sm:$0xff]
        %v1464 = vld [vmem:[#allocation3 + $0x50] sm:$0xff]
        %v1465 = vld [vmem:[#allocation3 + $0x58] sm:$0xff]
        %v1466 = vld [vmem:[#allocation3 + $0x60] sm:$0xff]
        %v1467 = vld [vmem:[#allocation3 + $0x68] sm:$0xff]
        %v1468 = vld [vmem:[#allocation3 + $0x70] sm:$0xff]
        %v1469 = vld [vmem:[#allocation3 + $0x78] sm:$0xff]
        %s1470 = scalar_lea.vmem [#allocation10], 128
        %v1471 = vld [vmem:[%s1470] sm:$0xff]
        %v1472 = vld [vmem:[%s1470 + $0x8] sm:$0xff]
        %v1473 = vld [vmem:[%s1470 + $0x10] sm:$0xff]
        %v1474 = vld [vmem:[%s1470 + $0x18] sm:$0xff]
        %v1476 = vsel %vm630, %v1284, 0
        %v1479 = vsel %vm630, %v1285, 0
        %1481 = vmatpush.msra.mxu0 0.0
        %1482 = vmatpush.msra.mxu0 0.0
        %1483 = vmatpush.msra.mxu0 0.0
        %1484 = vmatpush.msra.mxu0 0.0
        %1485 = vmatpush.msra.mxu0 0.0
        %1486 = vmatpush.msra.mxu0 0.0
        %1487 = vmatpush.msra.mxu0 0.0
        %1488 = vmatpush.msra.mxu0 0.0
        %1489 = vmatpush.msra.mxu0 0.0
        %1490 = vmatpush.msra.mxu0 0.0
        %1491 = vmatpush.msra.mxu0 0.0
        %1492 = vmatpush.msra.mxu0 0.0
        %1493 = vmatpush.msra.mxu0 %v1474
        %1494 = vmatpush.msra.mxu0 %v1473
        %1495 = vmatpush.msra.mxu0 %v1472
        %1496 = vmatpush.msra.mxu0 %v1471
        %1497 = vmatmul.f32.gmra.mxu0 %v1316
        %v1498 = vpop.f32.mrf.mxu0
        %v1499 = vadd.f32 0.0, %v1498
        %1500 = vmatmul.f32.gmra.mxu0 %v1319
        %v1501 = vpop.f32.mrf.mxu0
        %v1502 = vadd.f32 0.0, %v1501
        %1503 = vmatmul.f32.gmra.mxu0 %v1322
        %v1504 = vpop.f32.mrf.mxu0
        %v1505 = vadd.f32 0.0, %v1504
        %1506 = vmatmul.f32.gmra.mxu0 %v1325
        %v1507 = vpop.f32.mrf.mxu0
        %v1508 = vadd.f32 0.0, %v1507
        %1509 = vmatmul.f32.gmra.mxu0 %v1328
        %v1510 = vpop.f32.mrf.mxu0
        %v1511 = vadd.f32 0.0, %v1510
        %1512 = vmatmul.f32.gmra.mxu0 %v1331
        %v1513 = vpop.f32.mrf.mxu0
        %v1514 = vadd.f32 0.0, %v1513
        %1515 = vmatmul.f32.gmra.mxu0 %v1334
        %v1516 = vpop.f32.mrf.mxu0
        %v1517 = vadd.f32 0.0, %v1516
        %1518 = vmatmul.f32.gmra.mxu0 %v1337
        %v1519 = vpop.f32.mrf.mxu0
        %v1520 = vadd.f32 0.0, %v1519
        %1521 = vmatmul.f32.gmra.mxu0 %v1340
        %v1522 = vpop.f32.mrf.mxu0
        %v1523 = vadd.f32 0.0, %v1522
        %1524 = vmatmul.f32.gmra.mxu0 %v1343
        %v1525 = vpop.f32.mrf.mxu0
        %v1526 = vadd.f32 0.0, %v1525
        %1527 = vmatmul.f32.gmra.mxu0 %v1346
        %v1528 = vpop.f32.mrf.mxu0
        %v1529 = vadd.f32 0.0, %v1528
        %1530 = vmatmul.f32.gmra.mxu0 %v1349
        %v1531 = vpop.f32.mrf.mxu0
        %v1532 = vadd.f32 0.0, %v1531
        %1533 = vmatmul.f32.gmra.mxu0 %v1352
        %v1534 = vpop.f32.mrf.mxu0
        %v1535 = vadd.f32 0.0, %v1534
        %1536 = vmatmul.f32.gmra.mxu0 %v1355
        %v1537 = vpop.f32.mrf.mxu0
        %v1538 = vadd.f32 0.0, %v1537
        %1539 = vmatmul.f32.gmra.mxu0 %v1476
        %v1540 = vpop.f32.mrf.mxu0
        %v1541 = vadd.f32 0.0, %v1540
        %1542 = vmatmul.f32.gmra.mxu0 %v1479
        %v1543 = vpop.f32.mrf.mxu0
        %v1544 = vadd.f32 0.0, %v1543
        %1545 = vdwg.mxu0
        %v1546 = vadd.f32 %v1454, %v1499
        %v1547 = vadd.f32 %v1455, %v1502
        %v1548 = vadd.f32 %v1456, %v1505
        %v1549 = vadd.f32 %v1457, %v1508
        %v1550 = vadd.f32 %v1458, %v1511
        %v1551 = vadd.f32 %v1459, %v1514
        %v1552 = vadd.f32 %v1460, %v1517
        %v1553 = vadd.f32 %v1461, %v1520
        %v1554 = vadd.f32 %v1462, %v1523
        %v1555 = vadd.f32 %v1463, %v1526
        %v1556 = vadd.f32 %v1464, %v1529
        %v1557 = vadd.f32 %v1465, %v1532
        %v1558 = vadd.f32 %v1466, %v1535
        %v1559 = vadd.f32 %v1467, %v1538
        %v1560 = vadd.f32 %v1468, %v1541
        %v1561 = vadd.f32 %v1469, %v1544
        %1562 = vst.msk [vmem:[#allocation3] sm:$0xff] %vm630, %v1546
        %1563 = vst.msk [vmem:[#allocation3 + $0x8] sm:$0xff] %vm630, %v1547
        %1564 = vst.msk [vmem:[#allocation3 + $0x10] sm:$0xff] %vm630, %v1548
        %1565 = vst.msk [vmem:[#allocation3 + $0x18] sm:$0xff] %vm630, %v1549
        %1566 = vst.msk [vmem:[#allocation3 + $0x20] sm:$0xff] %vm630, %v1550
        %1567 = vst.msk [vmem:[#allocation3 + $0x28] sm:$0xff] %vm630, %v1551
        %1568 = vst.msk [vmem:[#allocation3 + $0x30] sm:$0xff] %vm630, %v1552
        %1569 = vst.msk [vmem:[#allocation3 + $0x38] sm:$0xff] %vm630, %v1553
        %1570 = vst.msk [vmem:[#allocation3 + $0x40] sm:$0xff] %vm630, %v1554
        %1571 = vst.msk [vmem:[#allocation3 + $0x48] sm:$0xff] %vm630, %v1555
        %1572 = vst.msk [vmem:[#allocation3 + $0x50] sm:$0xff] %vm630, %v1556
        %1573 = vst.msk [vmem:[#allocation3 + $0x58] sm:$0xff] %vm630, %v1557
        %1574 = vst.msk [vmem:[#allocation3 + $0x60] sm:$0xff] %vm630, %v1558
        %1575 = vst.msk [vmem:[#allocation3 + $0x68] sm:$0xff] %vm630, %v1559
        %1576 = vst.msk [vmem:[#allocation3 + $0x70] sm:$0xff] %vm630, %v1560
        %1577 = vst.msk [vmem:[#allocation3 + $0x78] sm:$0xff] %vm630, %v1561
        %v1578 = vld [vmem:[#allocation3] sm:$0xff]
        %v1579 = vld [vmem:[#allocation3 + $0x8] sm:$0xff]
        %v1580 = vld [vmem:[#allocation3 + $0x10] sm:$0xff]
        %v1581 = vld [vmem:[#allocation3 + $0x18] sm:$0xff]
        %v1582 = vld [vmem:[#allocation3 + $0x20] sm:$0xff]
        %v1583 = vld [vmem:[#allocation3 + $0x28] sm:$0xff]
        %v1584 = vld [vmem:[#allocation3 + $0x30] sm:$0xff]
        %v1585 = vld [vmem:[#allocation3 + $0x38] sm:$0xff]
        %v1586 = vld [vmem:[#allocation3 + $0x40] sm:$0xff]
        %v1587 = vld [vmem:[#allocation3 + $0x48] sm:$0xff]
        %v1588 = vld [vmem:[#allocation3 + $0x50] sm:$0xff]
        %v1589 = vld [vmem:[#allocation3 + $0x58] sm:$0xff]
        %v1590 = vld [vmem:[#allocation3 + $0x60] sm:$0xff]
        %v1591 = vld [vmem:[#allocation3 + $0x68] sm:$0xff]
        %v1592 = vld [vmem:[#allocation3 + $0x70] sm:$0xff]
        %v1593 = vld [vmem:[#allocation3 + $0x78] sm:$0xff]
        %s1594 = scalar_lea.vmem [#allocation10], 224
        %v1595 = vld [vmem:[%s1594] sm:$0xff]
        %v1596 = vld [vmem:[%s1594 + $0x8] sm:$0xff]
        %v1597 = vld [vmem:[%s1594 + $0x10] sm:$0xff]
        %v1598 = vld [vmem:[%s1594 + $0x18] sm:$0xff]
        %v1600 = vsel %vm630, %v1286, 0
        %v1603 = vsel %vm630, %v1287, 0
        %1605 = vmatpush.msra.mxu0 0.0
        %1606 = vmatpush.msra.mxu0 0.0
        %1607 = vmatpush.msra.mxu0 0.0
        %1608 = vmatpush.msra.mxu0 0.0
        %1609 = vmatpush.msra.mxu0 0.0
        %1610 = vmatpush.msra.mxu0 0.0
        %1611 = vmatpush.msra.mxu0 0.0
        %1612 = vmatpush.msra.mxu0 0.0
        %1613 = vmatpush.msra.mxu0 0.0
        %1614 = vmatpush.msra.mxu0 0.0
        %1615 = vmatpush.msra.mxu0 0.0
        %1616 = vmatpush.msra.mxu0 0.0
        %1617 = vmatpush.msra.mxu0 %v1598
        %1618 = vmatpush.msra.mxu0 %v1597
        %1619 = vmatpush.msra.mxu0 %v1596
        %1620 = vmatpush.msra.mxu0 %v1595
        %1621 = vmatmul.f32.gmra.mxu0 %v1322
        %v1622 = vpop.f32.mrf.mxu0
        %v1623 = vadd.f32 0.0, %v1622
        %1624 = vmatmul.f32.gmra.mxu0 %v1325
        %v1625 = vpop.f32.mrf.mxu0
        %v1626 = vadd.f32 0.0, %v1625
        %1627 = vmatmul.f32.gmra.mxu0 %v1328
        %v1628 = vpop.f32.mrf.mxu0
        %v1629 = vadd.f32 0.0, %v1628
        %1630 = vmatmul.f32.gmra.mxu0 %v1331
        %v1631 = vpop.f32.mrf.mxu0
        %v1632 = vadd.f32 0.0, %v1631
        %1633 = vmatmul.f32.gmra.mxu0 %v1334
        %v1634 = vpop.f32.mrf.mxu0
        %v1635 = vadd.f32 0.0, %v1634
        %1636 = vmatmul.f32.gmra.mxu0 %v1337
        %v1637 = vpop.f32.mrf.mxu0
        %v1638 = vadd.f32 0.0, %v1637
        %1639 = vmatmul.f32.gmra.mxu0 %v1340
        %v1640 = vpop.f32.mrf.mxu0
        %v1641 = vadd.f32 0.0, %v1640
        %1642 = vmatmul.f32.gmra.mxu0 %v1343
        %v1643 = vpop.f32.mrf.mxu0
        %v1644 = vadd.f32 0.0, %v1643
        %1645 = vmatmul.f32.gmra.mxu0 %v1346
        %v1646 = vpop.f32.mrf.mxu0
        %v1647 = vadd.f32 0.0, %v1646
        %1648 = vmatmul.f32.gmra.mxu0 %v1349
        %v1649 = vpop.f32.mrf.mxu0
        %v1650 = vadd.f32 0.0, %v1649
        %1651 = vmatmul.f32.gmra.mxu0 %v1352
        %v1652 = vpop.f32.mrf.mxu0
        %v1653 = vadd.f32 0.0, %v1652
        %1654 = vmatmul.f32.gmra.mxu0 %v1355
        %v1655 = vpop.f32.mrf.mxu0
        %v1656 = vadd.f32 0.0, %v1655
        %1657 = vmatmul.f32.gmra.mxu0 %v1476
        %v1658 = vpop.f32.mrf.mxu0
        %v1659 = vadd.f32 0.0, %v1658
        %1660 = vmatmul.f32.gmra.mxu0 %v1479
        %v1661 = vpop.f32.mrf.mxu0
        %v1662 = vadd.f32 0.0, %v1661
        %1663 = vmatmul.f32.gmra.mxu0 %v1600
        %v1664 = vpop.f32.mrf.mxu0
        %v1665 = vadd.f32 0.0, %v1664
        %1666 = vmatmul.f32.gmra.mxu0 %v1603
        %v1667 = vpop.f32.mrf.mxu0
        %v1668 = vadd.f32 0.0, %v1667
        %1669 = vdwg.mxu0
        %v1670 = vadd.f32 %v1578, %v1623
        %v1671 = vadd.f32 %v1579, %v1626
        %v1672 = vadd.f32 %v1580, %v1629
        %v1673 = vadd.f32 %v1581, %v1632
        %v1674 = vadd.f32 %v1582, %v1635
        %v1675 = vadd.f32 %v1583, %v1638
        %v1676 = vadd.f32 %v1584, %v1641
        %v1677 = vadd.f32 %v1585, %v1644
        %v1678 = vadd.f32 %v1586, %v1647
        %v1679 = vadd.f32 %v1587, %v1650
        %v1680 = vadd.f32 %v1588, %v1653
        %v1681 = vadd.f32 %v1589, %v1656
        %v1682 = vadd.f32 %v1590, %v1659
        %v1683 = vadd.f32 %v1591, %v1662
        %v1684 = vadd.f32 %v1592, %v1665
        %v1685 = vadd.f32 %v1593, %v1668
        %1686 = vst.msk [vmem:[#allocation3] sm:$0xff] %vm630, %v1670
        %1687 = vst.msk [vmem:[#allocation3 + $0x8] sm:$0xff] %vm630, %v1671
        %1688 = vst.msk [vmem:[#allocation3 + $0x10] sm:$0xff] %vm630, %v1672
        %1689 = vst.msk [vmem:[#allocation3 + $0x18] sm:$0xff] %vm630, %v1673
        %1690 = vst.msk [vmem:[#allocation3 + $0x20] sm:$0xff] %vm630, %v1674
        %1691 = vst.msk [vmem:[#allocation3 + $0x28] sm:$0xff] %vm630, %v1675
        %1692 = vst.msk [vmem:[#allocation3 + $0x30] sm:$0xff] %vm630, %v1676
        %1693 = vst.msk [vmem:[#allocation3 + $0x38] sm:$0xff] %vm630, %v1677
        %1694 = vst.msk [vmem:[#allocation3 + $0x40] sm:$0xff] %vm630, %v1678
        %1695 = vst.msk [vmem:[#allocation3 + $0x48] sm:$0xff] %vm630, %v1679
        %1696 = vst.msk [vmem:[#allocation3 + $0x50] sm:$0xff] %vm630, %v1680
        %1697 = vst.msk [vmem:[#allocation3 + $0x58] sm:$0xff] %vm630, %v1681
        %1698 = vst.msk [vmem:[#allocation3 + $0x60] sm:$0xff] %vm630, %v1682
        %1699 = vst.msk [vmem:[#allocation3 + $0x68] sm:$0xff] %vm630, %v1683
        %1700 = vst.msk [vmem:[#allocation3 + $0x70] sm:$0xff] %vm630, %v1684
        %1701 = vst.msk [vmem:[#allocation3 + $0x78] sm:$0xff] %vm630, %v1685
        %v1702 = vld [vmem:[#allocation2] sm:$0xff]
        %v1703 = vld [vmem:[#allocation2 + $0x8] sm:$0xff]
        %v1704 = vld [vmem:[#allocation2 + $0x10] sm:$0xff]
        %v1705 = vld [vmem:[#allocation2 + $0x18] sm:$0xff]
        %v1706 = vld [vmem:[#allocation2 + $0x20] sm:$0xff]
        %v1707 = vld [vmem:[#allocation2 + $0x28] sm:$0xff]
        %v1708 = vld [vmem:[#allocation2 + $0x30] sm:$0xff]
        %v1709 = vld [vmem:[#allocation2 + $0x38] sm:$0xff]
        %v1710 = vld [vmem:[#allocation2 + $0x40] sm:$0xff]
        %v1711 = vld [vmem:[#allocation2 + $0x48] sm:$0xff]
        %v1712 = vld [vmem:[#allocation2 + $0x50] sm:$0xff]
        %v1713 = vld [vmem:[#allocation2 + $0x58] sm:$0xff]
        %v1714 = vld [vmem:[#allocation2 + $0x60] sm:$0xff]
        %v1715 = vld [vmem:[#allocation2 + $0x68] sm:$0xff]
        %v1716 = vld [vmem:[#allocation2 + $0x70] sm:$0xff]
        %v1717 = vld [vmem:[#allocation2 + $0x78] sm:$0xff]
        %v1718 = vld [vmem:[#allocation2 + $0x80] sm:$0xff]
        %v1719 = vld [vmem:[#allocation2 + $0x88] sm:$0xff]
        %v1720 = vld [vmem:[#allocation2 + $0x90] sm:$0xff]
        %v1721 = vld [vmem:[#allocation2 + $0x98] sm:$0xff]
        %vm1742 = vcmask 1046528
        %v1743 = vrot.slane %v1702, 1
        %v1744 = vrot.slane %v1703, 1
        %v1745 = vsel %vm1742, %v1743, %v1744
        %v1746 = vrot.slane %v1704, 1
        %v1747 = vrot.slane %v1705, 1
        %v1748 = vsel %vm1742, %v1746, %v1747
        %v1749 = vrot.slane %v1706, 1
        %v1750 = vrot.slane %v1707, 1
        %v1751 = vsel %vm1742, %v1749, %v1750
        %v1752 = vrot.slane %v1708, 1
        %v1753 = vrot.slane %v1709, 1
        %v1754 = vsel %vm1742, %v1752, %v1753
        %v1755 = vrot.slane %v1710, 1
        %v1756 = vrot.slane %v1711, 1
        %v1757 = vsel %vm1742, %v1755, %v1756
        %v1758 = vrot.slane %v1712, 1
        %v1759 = vrot.slane %v1713, 1
        %v1760 = vsel %vm1742, %v1758, %v1759
        %v1761 = vrot.slane %v1714, 1
        %v1762 = vrot.slane %v1715, 1
        %v1763 = vsel %vm1742, %v1761, %v1762
        %v1764 = vrot.slane %v1716, 1
        %v1765 = vrot.slane %v1717, 1
        %v1766 = vsel %vm1742, %v1764, %v1765
        %v1767 = vrot.slane %v1718, 1
        %v1768 = vrot.slane %v1719, 1
        %v1769 = vsel %vm1742, %v1767, %v1768
        %v1770 = vrot.slane %v1720, 1
        %v1771 = vrot.slane %v1721, 1
        %v1772 = vsel %vm1742, %v1770, %v1771
        %v1783 = vsel %vm1742, %v1744, 0.0
        %v1784 = vsel %vm1742, %v1747, 0.0
        %v1785 = vsel %vm1742, %v1750, 0.0
        %v1786 = vsel %vm1742, %v1753, 0.0
        %v1787 = vsel %vm1742, %v1756, 0.0
        %v1788 = vsel %vm1742, %v1759, 0.0
        %v1789 = vsel %vm1742, %v1762, 0.0
        %v1790 = vsel %vm1742, %v1765, 0.0
        %v1791 = vsel %vm1742, %v1768, 0.0
        %v1792 = vsel %vm1742, %v1771, 0.0
        %v1793 = vld [vmem:[#allocation3] sm:$0xff]
        %v1794 = vld [vmem:[#allocation3 + $0x8] sm:$0xff]
        %v1795 = vld [vmem:[#allocation3 + $0x10] sm:$0xff]
        %v1796 = vld [vmem:[#allocation3 + $0x18] sm:$0xff]
        %v1797 = vld [vmem:[#allocation3 + $0x20] sm:$0xff]
        %v1798 = vld [vmem:[#allocation3 + $0x28] sm:$0xff]
        %v1799 = vld [vmem:[#allocation3 + $0x30] sm:$0xff]
        %v1800 = vld [vmem:[#allocation3 + $0x38] sm:$0xff]
        %v1801 = vld [vmem:[#allocation3 + $0x40] sm:$0xff]
        %v1802 = vld [vmem:[#allocation3 + $0x48] sm:$0xff]
        %v1803 = vld [vmem:[#allocation3 + $0x50] sm:$0xff]
        %v1804 = vld [vmem:[#allocation3 + $0x58] sm:$0xff]
        %v1805 = vld [vmem:[#allocation3 + $0x60] sm:$0xff]
        %v1806 = vld [vmem:[#allocation3 + $0x68] sm:$0xff]
        %v1807 = vld [vmem:[#allocation3 + $0x70] sm:$0xff]
        %v1808 = vld [vmem:[#allocation3 + $0x78] sm:$0xff]
        %s1809 = scalar_lea.vmem [#allocation10], 64
        %v1810 = vld [vmem:[%s1809] sm:$0xff]
        %v1811 = vld [vmem:[%s1809 + $0x8] sm:$0xff]
        %v1812 = vld [vmem:[%s1809 + $0x10] sm:$0xff]
        %v1813 = vld [vmem:[%s1809 + $0x18] sm:$0xff]
        %v1814 = vsel %vm630, %v1745, 0
        %v1817 = vsel %vm630, %v1783, 0
        %v1819 = vsel %vm630, %v1748, 0
        %v1822 = vsel %vm630, %v1784, 0
        %v1824 = vsel %vm630, %v1751, 0
        %v1827 = vsel %vm630, %v1785, 0
        %v1829 = vsel %vm630, %v1754, 0
        %v1832 = vsel %vm630, %v1786, 0
        %v1834 = vsel %vm630, %v1757, 0
        %v1837 = vsel %vm630, %v1787, 0
        %v1839 = vsel %vm630, %v1760, 0
        %v1842 = vsel %vm630, %v1788, 0
        %v1844 = vsel %vm630, %v1763, 0
        %v1847 = vsel %vm630, %v1789, 0
        %v1849 = vsel %vm630, %v1766, 0
        %v1852 = vsel %vm630, %v1790, 0
        %1854 = vmatpush.msra.mxu0 0.0
        %1855 = vmatpush.msra.mxu0 0.0
        %1856 = vmatpush.msra.mxu0 0.0
        %1857 = vmatpush.msra.mxu0 0.0
        %1858 = vmatpush.msra.mxu0 0.0
        %1859 = vmatpush.msra.mxu0 0.0
        %1860 = vmatpush.msra.mxu0 0.0
        %1861 = vmatpush.msra.mxu0 0.0
        %1862 = vmatpush.msra.mxu0 0.0
        %1863 = vmatpush.msra.mxu0 0.0
        %1864 = vmatpush.msra.mxu0 0.0
        %1865 = vmatpush.msra.mxu0 0.0
        %1866 = vmatpush.msra.mxu0 %v1813
        %1867 = vmatpush.msra.mxu0 %v1812
        %1868 = vmatpush.msra.mxu0 %v1811
        %1869 = vmatpush.msra.mxu0 %v1810
        %1870 = vmatmul.f32.gmra.mxu0 %v1814
        %v1871 = vpop.f32.mrf.mxu0
        %v1872 = vadd.f32 0.0, %v1871
        %1873 = vmatmul.f32.gmra.mxu0 %v1817
        %v1874 = vpop.f32.mrf.mxu0
        %v1875 = vadd.f32 0.0, %v1874
        %1876 = vmatmul.f32.gmra.mxu0 %v1819
        %v1877 = vpop.f32.mrf.mxu0
        %v1878 = vadd.f32 0.0, %v1877
        %1879 = vmatmul.f32.gmra.mxu0 %v1822
        %v1880 = vpop.f32.mrf.mxu0
        %v1881 = vadd.f32 0.0, %v1880
        %1882 = vmatmul.f32.gmra.mxu0 %v1824
        %v1883 = vpop.f32.mrf.mxu0
        %v1884 = vadd.f32 0.0, %v1883
        %1885 = vmatmul.f32.gmra.mxu0 %v1827
        %v1886 = vpop.f32.mrf.mxu0
        %v1887 = vadd.f32 0.0, %v1886
        %1888 = vmatmul.f32.gmra.mxu0 %v1829
        %v1889 = vpop.f32.mrf.mxu0
        %v1890 = vadd.f32 0.0, %v1889
        %1891 = vmatmul.f32.gmra.mxu0 %v1832
        %v1892 = vpop.f32.mrf.mxu0
        %v1893 = vadd.f32 0.0, %v1892
        %1894 = vmatmul.f32.gmra.mxu0 %v1834
        %v1895 = vpop.f32.mrf.mxu0
        %v1896 = vadd.f32 0.0, %v1895
        %1897 = vmatmul.f32.gmra.mxu0 %v1837
        %v1898 = vpop.f32.mrf.mxu0
        %v1899 = vadd.f32 0.0, %v1898
        %1900 = vmatmul.f32.gmra.mxu0 %v1839
        %v1901 = vpop.f32.mrf.mxu0
        %v1902 = vadd.f32 0.0, %v1901
        %1903 = vmatmul.f32.gmra.mxu0 %v1842
        %v1904 = vpop.f32.mrf.mxu0
        %v1905 = vadd.f32 0.0, %v1904
        %1906 = vmatmul.f32.gmra.mxu0 %v1844
        %v1907 = vpop.f32.mrf.mxu0
        %v1908 = vadd.f32 0.0, %v1907
        %1909 = vmatmul.f32.gmra.mxu0 %v1847
        %v1910 = vpop.f32.mrf.mxu0
        %v1911 = vadd.f32 0.0, %v1910
        %1912 = vmatmul.f32.gmra.mxu0 %v1849
        %v1913 = vpop.f32.mrf.mxu0
        %v1914 = vadd.f32 0.0, %v1913
        %1915 = vmatmul.f32.gmra.mxu0 %v1852
        %v1916 = vpop.f32.mrf.mxu0
        %v1917 = vadd.f32 0.0, %v1916
        %1918 = vdwg.mxu0
        %v1919 = vadd.f32 %v1793, %v1872
        %v1920 = vadd.f32 %v1794, %v1875
        %v1921 = vadd.f32 %v1795, %v1878
        %v1922 = vadd.f32 %v1796, %v1881
        %v1923 = vadd.f32 %v1797, %v1884
        %v1924 = vadd.f32 %v1798, %v1887
        %v1925 = vadd.f32 %v1799, %v1890
        %v1926 = vadd.f32 %v1800, %v1893
        %v1927 = vadd.f32 %v1801, %v1896
        %v1928 = vadd.f32 %v1802, %v1899
        %v1929 = vadd.f32 %v1803, %v1902
        %v1930 = vadd.f32 %v1804, %v1905
        %v1931 = vadd.f32 %v1805, %v1908
        %v1932 = vadd.f32 %v1806, %v1911
        %v1933 = vadd.f32 %v1807, %v1914
        %v1934 = vadd.f32 %v1808, %v1917
        %1935 = vst.msk [vmem:[#allocation3] sm:$0xff] %vm630, %v1919
        %1936 = vst.msk [vmem:[#allocation3 + $0x8] sm:$0xff] %vm630, %v1920
        %1937 = vst.msk [vmem:[#allocation3 + $0x10] sm:$0xff] %vm630, %v1921
        %1938 = vst.msk [vmem:[#allocation3 + $0x18] sm:$0xff] %vm630, %v1922
        %1939 = vst.msk [vmem:[#allocation3 + $0x20] sm:$0xff] %vm630, %v1923
        %1940 = vst.msk [vmem:[#allocation3 + $0x28] sm:$0xff] %vm630, %v1924
        %1941 = vst.msk [vmem:[#allocation3 + $0x30] sm:$0xff] %vm630, %v1925
        %1942 = vst.msk [vmem:[#allocation3 + $0x38] sm:$0xff] %vm630, %v1926
        %1943 = vst.msk [vmem:[#allocation3 + $0x40] sm:$0xff] %vm630, %v1927
        %1944 = vst.msk [vmem:[#allocation3 + $0x48] sm:$0xff] %vm630, %v1928
        %1945 = vst.msk [vmem:[#allocation3 + $0x50] sm:$0xff] %vm630, %v1929
        %1946 = vst.msk [vmem:[#allocation3 + $0x58] sm:$0xff] %vm630, %v1930
        %1947 = vst.msk [vmem:[#allocation3 + $0x60] sm:$0xff] %vm630, %v1931
        %1948 = vst.msk [vmem:[#allocation3 + $0x68] sm:$0xff] %vm630, %v1932
        %1949 = vst.msk [vmem:[#allocation3 + $0x70] sm:$0xff] %vm630, %v1933
        %1950 = vst.msk [vmem:[#allocation3 + $0x78] sm:$0xff] %vm630, %v1934
        %v1951 = vld [vmem:[#allocation3] sm:$0xff]
        %v1952 = vld [vmem:[#allocation3 + $0x8] sm:$0xff]
        %v1953 = vld [vmem:[#allocation3 + $0x10] sm:$0xff]
        %v1954 = vld [vmem:[#allocation3 + $0x18] sm:$0xff]
        %v1955 = vld [vmem:[#allocation3 + $0x20] sm:$0xff]
        %v1956 = vld [vmem:[#allocation3 + $0x28] sm:$0xff]
        %v1957 = vld [vmem:[#allocation3 + $0x30] sm:$0xff]
        %v1958 = vld [vmem:[#allocation3 + $0x38] sm:$0xff]
        %v1959 = vld [vmem:[#allocation3 + $0x40] sm:$0xff]
        %v1960 = vld [vmem:[#allocation3 + $0x48] sm:$0xff]
        %v1961 = vld [vmem:[#allocation3 + $0x50] sm:$0xff]
        %v1962 = vld [vmem:[#allocation3 + $0x58] sm:$0xff]
        %v1963 = vld [vmem:[#allocation3 + $0x60] sm:$0xff]
        %v1964 = vld [vmem:[#allocation3 + $0x68] sm:$0xff]
        %v1965 = vld [vmem:[#allocation3 + $0x70] sm:$0xff]
        %v1966 = vld [vmem:[#allocation3 + $0x78] sm:$0xff]
        %s1967 = scalar_lea.vmem [#allocation10], 160
        %v1968 = vld [vmem:[%s1967] sm:$0xff]
        %v1969 = vld [vmem:[%s1967 + $0x8] sm:$0xff]
        %v1970 = vld [vmem:[%s1967 + $0x10] sm:$0xff]
        %v1971 = vld [vmem:[%s1967 + $0x18] sm:$0xff]
        %v1972 = vsel %vm630, %v1769, 0
        %v1975 = vsel %vm630, %v1791, 0
        %1977 = vmatpush.msra.mxu0 0.0
        %1978 = vmatpush.msra.mxu0 0.0
        %1979 = vmatpush.msra.mxu0 0.0
        %1980 = vmatpush.msra.mxu0 0.0
        %1981 = vmatpush.msra.mxu0 0.0
        %1982 = vmatpush.msra.mxu0 0.0
        %1983 = vmatpush.msra.mxu0 0.0
        %1984 = vmatpush.msra.mxu0 0.0
        %1985 = vmatpush.msra.mxu0 0.0
        %1986 = vmatpush.msra.mxu0 0.0
        %1987 = vmatpush.msra.mxu0 0.0
        %1988 = vmatpush.msra.mxu0 0.0
        %1989 = vmatpush.msra.mxu0 %v1971
        %1990 = vmatpush.msra.mxu0 %v1970
        %1991 = vmatpush.msra.mxu0 %v1969
        %1992 = vmatpush.msra.mxu0 %v1968
        %1993 = vmatmul.f32.gmra.mxu0 %v1819
        %v1994 = vpop.f32.mrf.mxu0
        %v1995 = vadd.f32 0.0, %v1994
        %1996 = vmatmul.f32.gmra.mxu0 %v1822
        %v1997 = vpop.f32.mrf.mxu0
        %v1998 = vadd.f32 0.0, %v1997
        %1999 = vmatmul.f32.gmra.mxu0 %v1824
        %v2000 = vpop.f32.mrf.mxu0
        %v2001 = vadd.f32 0.0, %v2000
        %2002 = vmatmul.f32.gmra.mxu0 %v1827
        %v2003 = vpop.f32.mrf.mxu0
        %v2004 = vadd.f32 0.0, %v2003
        %2005 = vmatmul.f32.gmra.mxu0 %v1829
        %v2006 = vpop.f32.mrf.mxu0
        %v2007 = vadd.f32 0.0, %v2006
        %2008 = vmatmul.f32.gmra.mxu0 %v1832
        %v2009 = vpop.f32.mrf.mxu0
        %v2010 = vadd.f32 0.0, %v2009
        %2011 = vmatmul.f32.gmra.mxu0 %v1834
        %v2012 = vpop.f32.mrf.mxu0
        %v2013 = vadd.f32 0.0, %v2012
        %2014 = vmatmul.f32.gmra.mxu0 %v1837
        %v2015 = vpop.f32.mrf.mxu0
        %v2016 = vadd.f32 0.0, %v2015
        %2017 = vmatmul.f32.gmra.mxu0 %v1839
        %v2018 = vpop.f32.mrf.mxu0
        %v2019 = vadd.f32 0.0, %v2018
        %2020 = vmatmul.f32.gmra.mxu0 %v1842
        %v2021 = vpop.f32.mrf.mxu0
        %v2022 = vadd.f32 0.0, %v2021
        %2023 = vmatmul.f32.gmra.mxu0 %v1844
        %v2024 = vpop.f32.mrf.mxu0
        %v2025 = vadd.f32 0.0, %v2024
        %2026 = vmatmul.f32.gmra.mxu0 %v1847
        %v2027 = vpop.f32.mrf.mxu0
        %v2028 = vadd.f32 0.0, %v2027
        %2029 = vmatmul.f32.gmra.mxu0 %v1849
        %v2030 = vpop.f32.mrf.mxu0
        %v2031 = vadd.f32 0.0, %v2030
        %2032 = vmatmul.f32.gmra.mxu0 %v1852
        %v2033 = vpop.f32.mrf.mxu0
        %v2034 = vadd.f32 0.0, %v2033
        %2035 = vmatmul.f32.gmra.mxu0 %v1972
        %v2036 = vpop.f32.mrf.mxu0
        %v2037 = vadd.f32 0.0, %v2036
        %2038 = vmatmul.f32.gmra.mxu0 %v1975
        %v2039 = vpop.f32.mrf.mxu0
        %v2040 = vadd.f32 0.0, %v2039
        %2041 = vdwg.mxu0
        %v2042 = vadd.f32 %v1951, %v1995
        %v2043 = vadd.f32 %v1952, %v1998
        %v2044 = vadd.f32 %v1953, %v2001
        %v2045 = vadd.f32 %v1954, %v2004
        %v2046 = vadd.f32 %v1955, %v2007
        %v2047 = vadd.f32 %v1956, %v2010
        %v2048 = vadd.f32 %v1957, %v2013
        %v2049 = vadd.f32 %v1958, %v2016
        %v2050 = vadd.f32 %v1959, %v2019
        %v2051 = vadd.f32 %v1960, %v2022
        %v2052 = vadd.f32 %v1961, %v2025
        %v2053 = vadd.f32 %v1962, %v2028
        %v2054 = vadd.f32 %v1963, %v2031
        %v2055 = vadd.f32 %v1964, %v2034
        %v2056 = vadd.f32 %v1965, %v2037
        %v2057 = vadd.f32 %v1966, %v2040
        %2058 = vst.msk [vmem:[#allocation3] sm:$0xff] %vm630, %v2042
        %2059 = vst.msk [vmem:[#allocation3 + $0x8] sm:$0xff] %vm630, %v2043
        %2060 = vst.msk [vmem:[#allocation3 + $0x10] sm:$0xff] %vm630, %v2044
        %2061 = vst.msk [vmem:[#allocation3 + $0x18] sm:$0xff] %vm630, %v2045
        %2062 = vst.msk [vmem:[#allocation3 + $0x20] sm:$0xff] %vm630, %v2046
        %2063 = vst.msk [vmem:[#allocation3 + $0x28] sm:$0xff] %vm630, %v2047
        %2064 = vst.msk [vmem:[#allocation3 + $0x30] sm:$0xff] %vm630, %v2048
        %2065 = vst.msk [vmem:[#allocation3 + $0x38] sm:$0xff] %vm630, %v2049
        %2066 = vst.msk [vmem:[#allocation3 + $0x40] sm:$0xff] %vm630, %v2050
        %2067 = vst.msk [vmem:[#allocation3 + $0x48] sm:$0xff] %vm630, %v2051
        %2068 = vst.msk [vmem:[#allocation3 + $0x50] sm:$0xff] %vm630, %v2052
        %2069 = vst.msk [vmem:[#allocation3 + $0x58] sm:$0xff] %vm630, %v2053
        %2070 = vst.msk [vmem:[#allocation3 + $0x60] sm:$0xff] %vm630, %v2054
        %2071 = vst.msk [vmem:[#allocation3 + $0x68] sm:$0xff] %vm630, %v2055
        %2072 = vst.msk [vmem:[#allocation3 + $0x70] sm:$0xff] %vm630, %v2056
        %2073 = vst.msk [vmem:[#allocation3 + $0x78] sm:$0xff] %vm630, %v2057
        %v2074 = vld [vmem:[#allocation3] sm:$0xff]
        %v2075 = vld [vmem:[#allocation3 + $0x8] sm:$0xff]
        %v2076 = vld [vmem:[#allocation3 + $0x10] sm:$0xff]
        %v2077 = vld [vmem:[#allocation3 + $0x18] sm:$0xff]
        %v2078 = vld [vmem:[#allocation3 + $0x20] sm:$0xff]
        %v2079 = vld [vmem:[#allocation3 + $0x28] sm:$0xff]
        %v2080 = vld [vmem:[#allocation3 + $0x30] sm:$0xff]
        %v2081 = vld [vmem:[#allocation3 + $0x38] sm:$0xff]
        %v2082 = vld [vmem:[#allocation3 + $0x40] sm:$0xff]
        %v2083 = vld [vmem:[#allocation3 + $0x48] sm:$0xff]
        %v2084 = vld [vmem:[#allocation3 + $0x50] sm:$0xff]
        %v2085 = vld [vmem:[#allocation3 + $0x58] sm:$0xff]
        %v2086 = vld [vmem:[#allocation3 + $0x60] sm:$0xff]
        %v2087 = vld [vmem:[#allocation3 + $0x68] sm:$0xff]
        %v2088 = vld [vmem:[#allocation3 + $0x70] sm:$0xff]
        %v2089 = vld [vmem:[#allocation3 + $0x78] sm:$0xff]
        %s2090 = scalar_lea.vmem [#allocation10], 256
        %v2091 = vld [vmem:[%s2090] sm:$0xff]
        %v2092 = vld [vmem:[%s2090 + $0x8] sm:$0xff]
        %v2093 = vld [vmem:[%s2090 + $0x10] sm:$0xff]
        %v2094 = vld [vmem:[%s2090 + $0x18] sm:$0xff]
        %v2095 = vsel %vm630, %v1772, 0
        %v2098 = vsel %vm630, %v1792, 0
        %2100 = vmatpush.msra.mxu0 0.0
        %2101 = vmatpush.msra.mxu0 0.0
        %2102 = vmatpush.msra.mxu0 0.0
        %2103 = vmatpush.msra.mxu0 0.0
        %2104 = vmatpush.msra.mxu0 0.0
        %2105 = vmatpush.msra.mxu0 0.0
        %2106 = vmatpush.msra.mxu0 0.0
        %2107 = vmatpush.msra.mxu0 0.0
        %2108 = vmatpush.msra.mxu0 0.0
        %2109 = vmatpush.msra.mxu0 0.0
        %2110 = vmatpush.msra.mxu0 0.0
        %2111 = vmatpush.msra.mxu0 0.0
        %2112 = vmatpush.msra.mxu0 %v2094
        %2113 = vmatpush.msra.mxu0 %v2093
        %2114 = vmatpush.msra.mxu0 %v2092
        %2115 = vmatpush.msra.mxu0 %v2091
        %2116 = vmatmul.f32.gmra.mxu0 %v1824
        %v2117 = vpop.f32.mrf.mxu0
        %v2118 = vadd.f32 0.0, %v2117
        %2119 = vmatmul.f32.gmra.mxu0 %v1827
        %v2120 = vpop.f32.mrf.mxu0
        %v2121 = vadd.f32 0.0, %v2120
        %2122 = vmatmul.f32.gmra.mxu0 %v1829
        %v2123 = vpop.f32.mrf.mxu0
        %v2124 = vadd.f32 0.0, %v2123
        %2125 = vmatmul.f32.gmra.mxu0 %v1832
        %v2126 = vpop.f32.mrf.mxu0
        %v2127 = vadd.f32 0.0, %v2126
        %2128 = vmatmul.f32.gmra.mxu0 %v1834
        %v2129 = vpop.f32.mrf.mxu0
        %v2130 = vadd.f32 0.0, %v2129
        %2131 = vmatmul.f32.gmra.mxu0 %v1837
        %v2132 = vpop.f32.mrf.mxu0
        %v2133 = vadd.f32 0.0, %v2132
        %2134 = vmatmul.f32.gmra.mxu0 %v1839
        %v2135 = vpop.f32.mrf.mxu0
        %v2136 = vadd.f32 0.0, %v2135
        %2137 = vmatmul.f32.gmra.mxu0 %v1842
        %v2138 = vpop.f32.mrf.mxu0
        %v2139 = vadd.f32 0.0, %v2138
        %2140 = vmatmul.f32.gmra.mxu0 %v1844
        %v2141 = vpop.f32.mrf.mxu0
        %v2142 = vadd.f32 0.0, %v2141
        %2143 = vmatmul.f32.gmra.mxu0 %v1847
        %v2144 = vpop.f32.mrf.mxu0
        %v2145 = vadd.f32 0.0, %v2144
        %2146 = vmatmul.f32.gmra.mxu0 %v1849
        %v2147 = vpop.f32.mrf.mxu0
        %v2148 = vadd.f32 0.0, %v2147
        %2149 = vmatmul.f32.gmra.mxu0 %v1852
        %v2150 = vpop.f32.mrf.mxu0
        %v2151 = vadd.f32 0.0, %v2150
        %2152 = vmatmul.f32.gmra.mxu0 %v1972
        %v2153 = vpop.f32.mrf.mxu0
        %v2154 = vadd.f32 0.0, %v2153
        %2155 = vmatmul.f32.gmra.mxu0 %v1975
        %v2156 = vpop.f32.mrf.mxu0
        %v2157 = vadd.f32 0.0, %v2156
        %2158 = vmatmul.f32.gmra.mxu0 %v2095
        %v2159 = vpop.f32.mrf.mxu0
        %v2160 = vadd.f32 0.0, %v2159
        %2161 = vmatmul.f32.gmra.mxu0 %v2098
        %v2162 = vpop.f32.mrf.mxu0
        %v2163 = vadd.f32 0.0, %v2162
        %2164 = vdwg.mxu0
        %v2165 = vadd.f32 %v2074, %v2118
        %v2166 = vadd.f32 %v2075, %v2121
        %v2167 = vadd.f32 %v2076, %v2124
        %v2168 = vadd.f32 %v2077, %v2127
        %v2169 = vadd.f32 %v2078, %v2130
        %v2170 = vadd.f32 %v2079, %v2133
        %v2171 = vadd.f32 %v2080, %v2136
        %v2172 = vadd.f32 %v2081, %v2139
        %v2173 = vadd.f32 %v2082, %v2142
        %v2174 = vadd.f32 %v2083, %v2145
        %v2175 = vadd.f32 %v2084, %v2148
        %v2176 = vadd.f32 %v2085, %v2151
        %v2177 = vadd.f32 %v2086, %v2154
        %v2178 = vadd.f32 %v2087, %v2157
        %v2179 = vadd.f32 %v2088, %v2160
        %v2180 = vadd.f32 %v2089, %v2163
        %2181 = vst.msk [vmem:[#allocation3] sm:$0xff] %vm630, %v2165
        %2182 = vst.msk [vmem:[#allocation3 + $0x8] sm:$0xff] %vm630, %v2166
        %2183 = vst.msk [vmem:[#allocation3 + $0x10] sm:$0xff] %vm630, %v2167
        %2184 = vst.msk [vmem:[#allocation3 + $0x18] sm:$0xff] %vm630, %v2168
        %2185 = vst.msk [vmem:[#allocation3 + $0x20] sm:$0xff] %vm630, %v2169
        %2186 = vst.msk [vmem:[#allocation3 + $0x28] sm:$0xff] %vm630, %v2170
        %2187 = vst.msk [vmem:[#allocation3 + $0x30] sm:$0xff] %vm630, %v2171
        %2188 = vst.msk [vmem:[#allocation3 + $0x38] sm:$0xff] %vm630, %v2172
        %2189 = vst.msk [vmem:[#allocation3 + $0x40] sm:$0xff] %vm630, %v2173
        %2190 = vst.msk [vmem:[#allocation3 + $0x48] sm:$0xff] %vm630, %v2174
        %2191 = vst.msk [vmem:[#allocation3 + $0x50] sm:$0xff] %vm630, %v2175
        %2192 = vst.msk [vmem:[#allocation3 + $0x58] sm:$0xff] %vm630, %v2176
        %2193 = vst.msk [vmem:[#allocation3 + $0x60] sm:$0xff] %vm630, %v2177
        %2194 = vst.msk [vmem:[#allocation3 + $0x68] sm:$0xff] %vm630, %v2178
        %2195 = vst.msk [vmem:[#allocation3 + $0x70] sm:$0xff] %vm630, %v2179
        %2196 = vst.msk [vmem:[#allocation3 + $0x78] sm:$0xff] %vm630, %v2180
        %v2197 = vld [vmem:[#allocation3] sm:$0xff]
        %v2198 = vld [vmem:[#allocation3 + $0x8] sm:$0xff]
        %v2199 = vld [vmem:[#allocation3 + $0x10] sm:$0xff]
        %v2200 = vld [vmem:[#allocation3 + $0x18] sm:$0xff]
        %v2201 = vld [vmem:[#allocation3 + $0x20] sm:$0xff]
        %v2202 = vld [vmem:[#allocation3 + $0x28] sm:$0xff]
        %v2203 = vld [vmem:[#allocation3 + $0x30] sm:$0xff]
        %v2204 = vld [vmem:[#allocation3 + $0x38] sm:$0xff]
        %v2205 = vld [vmem:[#allocation3 + $0x40] sm:$0xff]
        %v2206 = vld [vmem:[#allocation3 + $0x48] sm:$0xff]
        %v2207 = vld [vmem:[#allocation3 + $0x50] sm:$0xff]
        %v2208 = vld [vmem:[#allocation3 + $0x58] sm:$0xff]
        %v2209 = vld [vmem:[#allocation3 + $0x60] sm:$0xff]
        %v2210 = vld [vmem:[#allocation3 + $0x68] sm:$0xff]
        %v2211 = vld [vmem:[#allocation3 + $0x70] sm:$0xff]
        %v2212 = vld [vmem:[#allocation3 + $0x78] sm:$0xff]
        %v2213 = vld [vmem:[%s6] sm:$0x1]
        %v2215 = vperm.slane %v2213, 0
        %v2217 = vadd.f32 %v2197, %v2215
        %v2218 = vadd.f32 %v2198, %v2215
        %v2219 = vadd.f32 %v2199, %v2215
        %v2220 = vadd.f32 %v2200, %v2215
        %v2221 = vadd.f32 %v2201, %v2215
        %v2222 = vadd.f32 %v2202, %v2215
        %v2223 = vadd.f32 %v2203, %v2215
        %v2224 = vadd.f32 %v2204, %v2215
        %v2225 = vadd.f32 %v2205, %v2215
        %v2226 = vadd.f32 %v2206, %v2215
        %v2227 = vadd.f32 %v2207, %v2215
        %v2228 = vadd.f32 %v2208, %v2215
        %v2229 = vadd.f32 %v2209, %v2215
        %v2230 = vadd.f32 %v2210, %v2215
        %v2231 = vadd.f32 %v2211, %v2215
        %v2232 = vadd.f32 %v2212, %v2215
        %v2233 = vmax.f32 %v2217, 0.0
        %v2234 = vmax.f32 %v2218, 0.0
        %v2235 = vmax.f32 %v2219, 0.0
        %v2236 = vmax.f32 %v2220, 0.0
        %v2237 = vmax.f32 %v2221, 0.0
        %v2238 = vmax.f32 %v2222, 0.0
        %v2239 = vmax.f32 %v2223, 0.0
        %v2240 = vmax.f32 %v2224, 0.0
        %v2241 = vmax.f32 %v2225, 0.0
        %v2242 = vmax.f32 %v2226, 0.0
        %v2243 = vmax.f32 %v2227, 0.0
        %v2244 = vmax.f32 %v2228, 0.0
        %v2245 = vmax.f32 %v2229, 0.0
        %v2246 = vmax.f32 %v2230, 0.0
        %v2247 = vmax.f32 %v2231, 0.0
        %v2248 = vmax.f32 %v2232, 0.0
        %v2249 = vld [vmem:[%s7] sm:$0xff]
        %v2250 = vld [vmem:[%s7 + $0x8] sm:$0xff]
        %v2251 = vld [vmem:[%s7 + $0x10] sm:$0xff]
        %v2252 = vld [vmem:[%s7 + $0x18] sm:$0xff]
        %v2253 = vld [vmem:[%s8] sm:$0x1]
        %v2255 = vperm.slane %v2253, 0
        %v2258 = vsel %vm630, %v2233, 0
        %v2261 = vsel %vm630, %v2234, 0
        %v2264 = vsel %vm630, %v2235, 0
        %v2267 = vsel %vm630, %v2236, 0
        %v2270 = vsel %vm630, %v2237, 0
        %v2273 = vsel %vm630, %v2238, 0
        %v2276 = vsel %vm630, %v2239, 0
        %v2279 = vsel %vm630, %v2240, 0
        %v2282 = vsel %vm630, %v2241, 0
        %v2285 = vsel %vm630, %v2242, 0
        %v2288 = vsel %vm630, %v2243, 0
        %v2291 = vsel %vm630, %v2244, 0
        %v2294 = vsel %vm630, %v2245, 0
        %v2297 = vsel %vm630, %v2246, 0
        %v2300 = vsel %vm630, %v2247, 0
        %v2303 = vsel %vm630, %v2248, 0
        %2305 = vmatpush.msra.mxu0 0.0
        %2306 = vmatpush.msra.mxu0 0.0
        %2307 = vmatpush.msra.mxu0 0.0
        %2308 = vmatpush.msra.mxu0 0.0
        %2309 = vmatpush.msra.mxu0 0.0
        %2310 = vmatpush.msra.mxu0 0.0
        %2311 = vmatpush.msra.mxu0 0.0
        %2312 = vmatpush.msra.mxu0 0.0
        %2313 = vmatpush.msra.mxu0 0.0
        %2314 = vmatpush.msra.mxu0 0.0
        %2315 = vmatpush.msra.mxu0 0.0
        %2316 = vmatpush.msra.mxu0 0.0
        %2317 = vmatpush.msra.mxu0 %v2252
        %2318 = vmatpush.msra.mxu0 %v2251
        %2319 = vmatpush.msra.mxu0 %v2250
        %2320 = vmatpush.msra.mxu0 %v2249
        %2321 = vmatmul.f32.gmra.mxu0 %v2258
        %v2322 = vpop.f32.mrf.mxu0
        %v2323 = vadd.f32 %v2255, %v2322
        %2324 = vmatmul.f32.gmra.mxu0 %v2261
        %v2325 = vpop.f32.mrf.mxu0
        %v2326 = vadd.f32 %v2255, %v2325
        %2327 = vmatmul.f32.gmra.mxu0 %v2264
        %v2328 = vpop.f32.mrf.mxu0
        %v2329 = vadd.f32 %v2255, %v2328
        %2330 = vmatmul.f32.gmra.mxu0 %v2267
        %v2331 = vpop.f32.mrf.mxu0
        %v2332 = vadd.f32 %v2255, %v2331
        %2333 = vmatmul.f32.gmra.mxu0 %v2270
        %v2334 = vpop.f32.mrf.mxu0
        %v2335 = vadd.f32 %v2255, %v2334
        %2336 = vmatmul.f32.gmra.mxu0 %v2273
        %v2337 = vpop.f32.mrf.mxu0
        %v2338 = vadd.f32 %v2255, %v2337
        %2339 = vmatmul.f32.gmra.mxu0 %v2276
        %v2340 = vpop.f32.mrf.mxu0
        %v2341 = vadd.f32 %v2255, %v2340
        %2342 = vmatmul.f32.gmra.mxu0 %v2279
        %v2343 = vpop.f32.mrf.mxu0
        %v2344 = vadd.f32 %v2255, %v2343
        %2345 = vmatmul.f32.gmra.mxu0 %v2282
        %v2346 = vpop.f32.mrf.mxu0
        %v2347 = vadd.f32 %v2255, %v2346
        %2348 = vmatmul.f32.gmra.mxu0 %v2285
        %v2349 = vpop.f32.mrf.mxu0
        %v2350 = vadd.f32 %v2255, %v2349
        %2351 = vmatmul.f32.gmra.mxu0 %v2288
        %v2352 = vpop.f32.mrf.mxu0
        %v2353 = vadd.f32 %v2255, %v2352
        %2354 = vmatmul.f32.gmra.mxu0 %v2291
        %v2355 = vpop.f32.mrf.mxu0
        %v2356 = vadd.f32 %v2255, %v2355
        %2357 = vmatmul.f32.gmra.mxu0 %v2294
        %v2358 = vpop.f32.mrf.mxu0
        %v2359 = vadd.f32 %v2255, %v2358
        %2360 = vmatmul.f32.gmra.mxu0 %v2297
        %v2361 = vpop.f32.mrf.mxu0
        %v2362 = vadd.f32 %v2255, %v2361
        %2363 = vmatmul.f32.gmra.mxu0 %v2300
        %v2364 = vpop.f32.mrf.mxu0
        %v2365 = vadd.f32 %v2255, %v2364
        %2366 = vmatmul.f32.gmra.mxu0 %v2303
        %v2367 = vpop.f32.mrf.mxu0
        %v2368 = vadd.f32 %v2255, %v2367
        %2369 = vdwg.mxu0
        %v2370 = vld [vmem:[%s431] sm:$0xff]
        %v2371 = vld [vmem:[%s431 + $0x8] sm:$0xff]
        %v2372 = vld [vmem:[%s431 + $0x10] sm:$0xff]
        %v2373 = vld [vmem:[%s431 + $0x18] sm:$0xff]
        %v2374 = vld [vmem:[%s431 + $0x20] sm:$0xff]
        %v2375 = vld [vmem:[%s431 + $0x28] sm:$0xff]
        %v2376 = vld [vmem:[%s431 + $0x30] sm:$0xff]
        %v2377 = vld [vmem:[%s431 + $0x38] sm:$0xff]
        %v2378 = vld [vmem:[%s431 + $0x40] sm:$0xff]
        %v2379 = vld [vmem:[%s431 + $0x48] sm:$0xff]
        %v2380 = vld [vmem:[%s431 + $0x50] sm:$0xff]
        %v2381 = vld [vmem:[%s431 + $0x58] sm:$0xff]
        %v2382 = vld [vmem:[%s431 + $0x60] sm:$0xff]
        %v2383 = vld [vmem:[%s431 + $0x68] sm:$0xff]
        %v2384 = vld [vmem:[%s431 + $0x70] sm:$0xff]
        %v2385 = vld [vmem:[%s431 + $0x78] sm:$0xff]
        %v2386 = vadd.f32 %v2323, %v2370
        %v2387 = vadd.f32 %v2326, %v2371
        %v2388 = vadd.f32 %v2329, %v2372
        %v2389 = vadd.f32 %v2332, %v2373
        %v2390 = vadd.f32 %v2335, %v2374
        %v2391 = vadd.f32 %v2338, %v2375
        %v2392 = vadd.f32 %v2341, %v2376
        %v2393 = vadd.f32 %v2344, %v2377
        %v2394 = vadd.f32 %v2347, %v2378
        %v2395 = vadd.f32 %v2350, %v2379
        %v2396 = vadd.f32 %v2353, %v2380
        %v2397 = vadd.f32 %v2356, %v2381
        %v2398 = vadd.f32 %v2359, %v2382
        %v2399 = vadd.f32 %v2362, %v2383
        %v2400 = vadd.f32 %v2365, %v2384
        %v2401 = vadd.f32 %v2368, %v2385
        %v2402 = vmax.f32 %v2386, 0.0
        %v2403 = vmax.f32 %v2387, 0.0
        %v2404 = vmax.f32 %v2388, 0.0
        %v2405 = vmax.f32 %v2389, 0.0
        %v2406 = vmax.f32 %v2390, 0.0
        %v2407 = vmax.f32 %v2391, 0.0
        %v2408 = vmax.f32 %v2392, 0.0
        %v2409 = vmax.f32 %v2393, 0.0
        %v2410 = vmax.f32 %v2394, 0.0
        %v2411 = vmax.f32 %v2395, 0.0
        %v2412 = vmax.f32 %v2396, 0.0
        %v2413 = vmax.f32 %v2397, 0.0
        %v2414 = vmax.f32 %v2398, 0.0
        %v2415 = vmax.f32 %v2399, 0.0
        %v2416 = vmax.f32 %v2400, 0.0
        %v2417 = vmax.f32 %v2401, 0.0
        %2418 = vst [vmem:[%s501] sm:$0xff] %v2402
        %2419 = vst [vmem:[%s501 + $0x8] sm:$0xff] %v2403
        %2420 = vst [vmem:[%s501 + $0x10] sm:$0xff] %v2404
        %2421 = vst [vmem:[%s501 + $0x18] sm:$0xff] %v2405
        %2422 = vst [vmem:[%s501 + $0x20] sm:$0xff] %v2406
        %2423 = vst [vmem:[%s501 + $0x28] sm:$0xff] %v2407
        %2424 = vst [vmem:[%s501 + $0x30] sm:$0xff] %v2408
        %2425 = vst [vmem:[%s501 + $0x38] sm:$0xff] %v2409
        %2426 = vst [vmem:[%s501 + $0x40] sm:$0xff] %v2410
        %2427 = vst [vmem:[%s501 + $0x48] sm:$0xff] %v2411
        %2428 = vst [vmem:[%s501 + $0x50] sm:$0xff] %v2412
        %2429 = vst [vmem:[%s501 + $0x58] sm:$0xff] %v2413
        %2430 = vst [vmem:[%s501 + $0x60] sm:$0xff] %v2414
        %2431 = vst [vmem:[%s501 + $0x68] sm:$0xff] %v2415
        %2432 = vst [vmem:[%s501 + $0x70] sm:$0xff] %v2416
        %2433 = vst [vmem:[%s501 + $0x78] sm:$0xff] %v2417
        %s2434 = sand.u32 %s278, 1
        %s2435 = scalar_lea.sflag [#allocation6], %s2434
        %s2436 = sand.u32 %s278, 1
        %s2437 = smul.addr %s2436, 128
        %s2438 = scalar_lea.vmem [#allocation12], %s2437
        // Predicated region
        $region73: #{tpu_custom_call.1} parent=55 // pred_check
          %p2439 = pneg %p288
        $region74: #{tpu_custom_call.1} parent=55 // pred_check_branch
          %2441 = sbr.rel (%p2439) target = $region76
        $region75: #{tpu_custom_call.1} parent=55 // pred_region
          %s2442 = smul.u32 8, %s35
          %2444 = vsyncadd %s2435, 0
          %s2445 = smul.addr %s2442, 2
          %s2446 = smul.addr %s34, 32
          %s2447 = sadd.s32 %s2445, %s2446
          %s2448 = smul.addr %s2447, 8
          %s2449 = scalar_lea.hbm %s9, %s2448
          %s2450 = sshll.u32 %s2438, 4
          %s2451 = int_to_ptr.vmem [resolvable:$true] %s2450
          %s2452 = sshll.u32 %s2449, 4
          %s2453 = int_to_ptr.hbm [resolvable:$true] %s2452
          %2458 = dma.vmem_to_hbm [thread:$0]  %s2451, 2048, %s2453, %s2435, 128, 128, 8
        $region76: #{tpu_custom_call.1} parent=55 // pred_fallthru
          _
      $region56: #{tpu_custom_call.1} parent=5 // pred_fallthru
        _
      %p2459 = scmp.le.s32.totalorder 2, %s25
      // Predicated region
      $region77: #{tpu_custom_call.1} parent=5 // pred_check
        %p2460 = pneg %p2459
      $region78: #{tpu_custom_call.1} parent=5 // pred_check_branch
        %2462 = sbr.rel (%p2460) target = $region80
      $region79: #{tpu_custom_call.1} parent=5 // pred_region
        %s2463 = ssub.s32 %s25, 2
        // Predicated region
        $region81: #{tpu_custom_call.1} parent=79 // pred_check
          %p2464 = pneg %p294
        $region82: #{tpu_custom_call.1} parent=79 // pred_check_branch
          %2466 = sbr.rel (%p2464) target = $region84
        $region83: #{tpu_custom_call.1} parent=79 // pred_region
          %s2467 = sand.u32 %s279, 1
          %s2468 = scalar_lea.sflag [#allocation6], %s2467
          %s2469 = sand.u32 %s279, 1
          %s2470 = smul.addr %s2469, 128
          %s2471 = scalar_lea.vmem [#allocation12], %s2470
          %2473 = dma.done %s2468, 2048
        $region84: #{tpu_custom_call.1} parent=79 // pred_fallthru
          _
      $region80: #{tpu_custom_call.1} parent=5 // pred_fallthru
        _
    $region6: #{tpu_custom_call.1} parent=1 // loop_footer
      %s29 = sadd.s32 1, %s25
    $region7: #{tpu_custom_call.1} parent=1 // loop_footer_branch
      %24 = sbr.rel target = $region3
    $region8: #{tpu_custom_call.1} parent=1 // loop_exit
      _
    %2474 = vsyncpa [#allocation5], 1
    %s2475 = scalar_lea.sflag [#allocation5], 1
    %2476 = vsyncpa %s2475, 1
    %2477 = vsyncpa [#allocation8], 1
    %s2478 = scalar_lea.sflag [#allocation8], 1
    %2479 = vsyncpa %s2478, 1
    %2480 = vsyncpa [#allocation11], 1
    %2481 = vsyncpa [#allocation6], 1
    %s2482 = scalar_lea.sflag [#allocation6], 1
    %2483 = vsyncpa %s2482, 1

</llo_original>
